<compile_context>
chip_gen: v7x
topology: tpu7x:2x2x1
jax: 0.10.0
libtpu: 0.0.40
codegen_flags: <defaults>
</compile_context>

<pallas_src>
import functools

import numpy as np
import jax
import jax.numpy as jnp
from jax.experimental import pallas as pl
from jax.experimental.pallas import tpu as pltpu


def _vmem_spec():
    return pl.BlockSpec(memory_space=pltpu.MemorySpace.VMEM)


# ------------------------------ fused kernel ------------------------------- #

def _net_kernel(x_ref, w1b_ref, b1t_ref, sel1_ref, w2b_ref, b2t_ref, sel2_ref,
                wf1_ref, bf1_ref, wf2_ref, bf2_ref, wf3_ref, bf3_ref, out_ref,
                *, n_batch):
    f32 = jnp.float32
    L1 = 32 * (n_batch - 1) + 28      # conv1 slab height (both images stacked)
    L2 = 14 * (n_batch - 1) + 10      # conv2 slab height

    # ---- conv1 + bias + ReLU: 5 banded matmuls, both images at once ----
    a1 = jnp.dot(x_ref[0:L1, :], w1b_ref[0, :, :], preferred_element_type=f32)
    for i in range(1, 5):
        a1 = a1 + jnp.dot(x_ref[i:i + L1, :], w1b_ref[i, :, :],
                          preferred_element_type=f32)
    a1 = jnp.maximum(a1 + b1t_ref[...], 0.0)           # (L1, 168), col = x*6 + co

    # ---- pool1: shifted-lane max (W), shifted-sublane max (H), row-gather matmul ----
    a1x = jnp.maximum(a1[:, :162], a1[:, 6:])           # (L1, 162)
    m1 = jnp.maximum(a1x[:L1 - 1, :], a1x[1:L1, :])     # (L1-1, 162)
    p1 = jnp.dot(sel1_ref[...], m1, preferred_element_type=f32)   # (14*n, 162)

    # ---- conv2 + bias + ReLU: 5 banded matmuls (stride-2 W-selection folded into w2b) ----
    a2 = jnp.dot(p1[0:L2, :], w2b_ref[0, :, :], preferred_element_type=f32)
    for i in range(1, 5):
        a2 = a2 + jnp.dot(p1[i:i + L2, :], w2b_ref[i, :, :],
                          preferred_element_type=f32)
    a2 = jnp.maximum(a2 + b2t_ref[...], 0.0)            # (L2, 160), col = x*16 + co

    # ---- pool2: same vectorized pattern; gather straight into fc1's banded layout ----
    a2x = jnp.maximum(a2[:, :144], a2[:, 16:])           # (L2, 144)
    m2 = jnp.maximum(a2x[:L2 - 1, :], a2x[1:L2, :])      # (L2-1, 144)
    p2 = jnp.dot(sel2_ref[...], m2, preferred_element_type=f32)   # (5*n, 144), row = y*n + img

    # ---- fc1 (banded over pooled row y) -> fc2 -> fc3 ----
    h = jnp.dot(p2[0:n_batch, :], wf1_ref[0, :, :], preferred_element_type=f32)
    for y in range(1, 5):
        h = h + jnp.dot(p2[y * n_batch:(y + 1) * n_batch, :], wf1_ref[y, :, :],
                        preferred_element_type=f32)
    h = jnp.maximum(h + bf1_ref[...], 0.0)               # (n, 120)
    h = jnp.maximum(jnp.dot(h, wf2_ref[...], preferred_element_type=f32)
                    + bf2_ref[...], 0.0)                 # (n, 84)
    out_ref[...] = (jnp.dot(h, wf3_ref[...], preferred_element_type=f32)
                    + bf3_ref[...])                      # (n, 10)


def fused_forward(packed, x):
    """x: (N, 3, 32, 32) NCHW -> logits (N, 10). One pallas_call, no grid."""
    n = x.shape[0]
    # Only per-step XLA glue: repack the input to (N*32, 32*3), rows=(n,y), cols=(x,c).
    x2d = x.transpose(0, 2, 3, 1).reshape(n * 32, 32 * 3)
    kernel = functools.partial(_net_kernel, n_batch=n)
    return pl.pallas_call(
        kernel,
        out_shape=jax.ShapeDtypeStruct((n, 10), jnp.float32),
        in_specs=[_vmem_spec()] * 13,
        out_specs=_vmem_spec(),
    )(x2d, packed["w1b"], packed["b1t"], packed["sel1"],
      packed["w2b"], packed["b2t"], packed["sel2"],
      packed["wf1"], packed["bf1"], packed["wf2"], packed["bf2"],
      packed["wf3"], packed["bf3"])


# ------------------------- one-time weight packing -------------------------- #

def pack_params(params, n_batch=2):
    """Pack torch-layout params into kernel operands (done once, outside the hot path)."""
    w1 = np.asarray(params["conv1_w"], np.float32)   # (6, 3, 5, 5)  [co, c, i, j]
    b1 = np.asarray(params["conv1_b"], np.float32)
    w2 = np.asarray(params["conv2_w"], np.float32)   # (16, 6, 5, 5)
    b2 = np.asarray(params["conv2_b"], np.float32)
    fc1_w = np.asarray(params["fc1_w"], np.float32)  # (120, 400)
    fc1_b = np.asarray(params["fc1_b"], np.float32)
    fc2_w = np.asarray(params["fc2_w"], np.float32)  # (84, 120)
    fc2_b = np.asarray(params["fc2_b"], np.float32)
    fc3_w = np.asarray(params["fc3_w"], np.float32)  # (10, 84)
    fc3_b = np.asarray(params["fc3_b"], np.float32)

    # conv1 banded weights: w1b[i, xp*3+c, x*6+co] = w1[co, c, i, xp-x] (0 <= xp-x < 5)
    w1b = np.zeros((5, 96, 168), np.float32)
    for i in range(5):
        for j in range(5):
            wt = w1[:, :, i, j].T                    # (3, 6) [c, co]
            for x in range(28):
                xp = x + j
                w1b[i, xp * 3:xp * 3 + 3, x * 6:x * 6 + 6] = wt
    b1t = np.tile(b1, 28).reshape(1, 168)

    # pool1 H-direction row gather: picks row 32*k + 2*y of m1 into row 14*k + y.
    L1 = 32 * (n_batch - 1) + 28
    sel1 = np.zeros((14 * n_batch, L1 - 1), np.float32)
    for k in range(n_batch):
        for y in range(14):
            sel1[14 * k + y, 32 * k + 2 * y] = 1.0

    # conv2 banded weights over the pooled (·, 162) layout; valid input columns are
    # (2*x3)*6 + c (even x-groups), odd-x junk columns get zero weights.
    w2b = np.zeros((5, 162, 160), np.float32)
    for i in range(5):
        for j in range(5):
            wt = w2[:, :, i, j].T                    # (6, 16) [c, co]
            for xo in range(10):
                x3 = xo + j
                w2b[i, (2 * x3) * 6:(2 * x3) * 6 + 6, xo * 16:xo * 16 + 16] = wt
    b2t = np.tile(b2, 10).reshape(1, 160)

    # pool2 H-direction row gather: picks row 14*k + 2*y of m2 into row y*n + k
    # (exactly the banded layout fc1 consumes).
    L2 = 14 * (n_batch - 1) + 10
    sel2 = np.zeros((5 * n_batch, L2 - 1), np.float32)
    for y in range(5):
        for k in range(n_batch):
            sel2[y * n_batch + k, 14 * k + 2 * y] = 1.0

    # fc1 banded over pooled row y: wf1[y, (2*x)*16+c, :] = fc1_w[:, c*25 + y*5 + x]
    # (torch flatten order c*25+y*5+x; odd-x junk columns get zero weights).
    wf1 = np.zeros((5, 144, 120), np.float32)
    for y in range(5):
        for c in range(16):
            for x in range(5):
                wf1[y, (2 * x) * 16 + c, :] = fc1_w[:, c * 25 + y * 5 + x]

    to = lambda a: jnp.asarray(a, jnp.float32)
    return {
        "w1b": to(w1b), "b1t": to(b1t), "sel1": to(sel1),
        "w2b": to(w2b), "b2t": to(b2t), "sel2": to(sel2),
        "wf1": to(wf1), "bf1": to(fc1_b.reshape(1, 120)),
        "wf2": to(fc2_w.T), "bf2": to(fc2_b.reshape(1, 84)),
        "wf3": to(fc3_w.T), "bf3": to(fc3_b.reshape(1, 10)),
    }


# ------------------------- deterministic parameters ------------------------- #

def _uniform(key, shape, fan_in):
    bound = 1.0 / jnp.sqrt(jnp.float32(fan_in))
    return jax.random.uniform(key, shape, jnp.float32, -bound, bound)


def init_params(key):
    ks = jax.random.split(key, 10)
    return {
        "conv1_w": _uniform(ks[0], (6, 3, 5, 5), 3 * 5 * 5),
        "conv1_b": _uniform(ks[1], (6,), 3 * 5 * 5),
        "conv2_w": _uniform(ks[2], (16, 6, 5, 5), 6 * 5 * 5),
        "conv2_b": _uniform(ks[3], (16,), 6 * 5 * 5),
        "fc1_w": _uniform(ks[4], (120, 400), 400),
        "fc1_b": _uniform(ks[5], (120,), 400),
        "fc2_w": _uniform(ks[6], (84, 120), 120),
        "fc2_b": _uniform(ks[7], (84,), 120),
        "fc3_w": _uniform(ks[8], (10, 84), 84),
        "fc3_b": _uniform(ks[9], (10,), 84),
    }


# -------------------------------- reference --------------------------------- #

def _im2col(x, kh, kw):
    n, c, h, w = x.shape
    ho, wo = h - kh + 1, w - kw + 1
    cols = []
    for i in range(kh):
        for j in range(kw):
            cols.append(x[:, :, i:i + ho, j:j + wo])
    p = jnp.stack(cols, axis=2).reshape(n, c * kh * kw, ho, wo)
    p = p.transpose(0, 2, 3, 1)
    return p.reshape(n * ho * wo, c * kh * kw), ho, wo


def reference_forward(params, x):
    hp = jax.lax.Precision.HIGHEST

    def conv_ref(x, w, b):
        n = x.shape[0]
        cout = w.shape[0]
        patches, ho, wo = _im2col(x, 5, 5)
        y = jnp.dot(patches, w.reshape(cout, -1).T, precision=hp) + b
        y = jnp.maximum(y, 0.0)
        return y.reshape(n, ho, wo, cout).transpose(0, 3, 1, 2)

    def pool_ref(x):
        n, c, h, w = x.shape
        return x.reshape(n, c, h // 2, 2, w // 2, 2).max(axis=(3, 5))

    x = pool_ref(conv_ref(x, params["conv1_w"], params["conv1_b"]))
    x = pool_ref(conv_ref(x, params["conv2_w"], params["conv2_b"]))
    x = x.reshape(x.shape[0], 400)
    x = jnp.maximum(jnp.dot(x, params["fc1_w"].T, precision=hp) + params["fc1_b"], 0.0)
    x = jnp.maximum(jnp.dot(x, params["fc2_w"].T, precision=hp) + params["fc2_b"], 0.0)
    return jnp.dot(x, params["fc3_w"].T, precision=hp) + params["fc3_b"]


# ----------------------------------- main ------------------------------------ #

if __name__ == "__main__":
    key = jax.random.PRNGKey(0)
    kx, kp = jax.random.split(key)
    # Input spatial size is fixed at 32x32 by fc1 = Linear(16*5*5, 120); batch=2.
    x = jax.random.normal(kx, (2, 3, 32, 32), jnp.float32)
    params = init_params(kp)
    packed = pack_params(params, n_batch=2)   # one-time weight packing (outside jit)

    fwd = jax.jit(fused_forward)
    out = jax.block_until_ready(fwd(packed, x))

    ref = reference_forward(params, x)
    assert out.shape == (2, 10), out.shape
    assert bool(jnp.all(jnp.isfinite(out)))
    assert bool(jnp.allclose(out, ref, rtol=1e-3, atol=1e-3)), (
        float(jnp.max(jnp.abs(out - ref))))

    print("KERNEL_OK")
</pallas_src>

<mosaic_0001>
module attributes {stable_mosaic.version = 11 : i64} {
  func.func @_net_kernel(%arg0: memref<64x96xf32, #tpu.memory_space<vmem>>, %arg1: memref<5x96x168xf32, #tpu.memory_space<vmem>>, %arg2: memref<1x168xf32, #tpu.memory_space<vmem>>, %arg3: memref<28x59xf32, #tpu.memory_space<vmem>>, %arg4: memref<5x162x160xf32, #tpu.memory_space<vmem>>, %arg5: memref<1x160xf32, #tpu.memory_space<vmem>>, %arg6: memref<10x23xf32, #tpu.memory_space<vmem>>, %arg7: memref<5x144x120xf32, #tpu.memory_space<vmem>>, %arg8: memref<1x120xf32, #tpu.memory_space<vmem>>, %arg9: memref<120x84xf32, #tpu.memory_space<vmem>>, %arg10: memref<1x84xf32, #tpu.memory_space<vmem>>, %arg11: memref<84x10xf32, #tpu.memory_space<vmem>>, %arg12: memref<1x10xf32, #tpu.memory_space<vmem>>, %arg13: memref<2x10xf32, #tpu.memory_space<vmem>>) attributes {dimension_semantics = [], scalar_prefetch = 0 : i64, scratch_operands = 0 : i64, tpu.core_type = #tpu.core_type<tc>} {
    %c0 = arith.constant 0 : index
    %c0_0 = arith.constant 0 : index
    %0 = vector.load %arg0[%c0, %c0_0] : memref<64x96xf32, #tpu.memory_space<vmem>>, vector<60x96xf32>
    %c0_1 = arith.constant 0 : index
    %c0_2 = arith.constant 0 : index
    %c0_3 = arith.constant 0 : index
    %1 = vector.load %arg1[%c0_1, %c0_2, %c0_3] : memref<5x96x168xf32, #tpu.memory_space<vmem>>, vector<1x96x168xf32>
    %2 = vector.shape_cast %1 : vector<1x96x168xf32> to vector<96x168xf32>
    %cst = arith.constant dense<0.000000e+00> : vector<60x168xf32>
    %3 = tpu.matmul %0, %2, %cst {dimension_numbers = #tpu.dot_dimension_numbers<[1], [0], [0], [1], [0, 0, 1, 1], [], []>} : vector<60x96xf32>, vector<96x168xf32>, vector<60x168xf32> -> vector<60x168xf32>
    %c1 = arith.constant 1 : index
    %c0_4 = arith.constant 0 : index
    %4 = vector.load %arg0[%c1, %c0_4] : memref<64x96xf32, #tpu.memory_space<vmem>>, vector<60x96xf32>
    %c1_5 = arith.constant 1 : index
    %c0_6 = arith.constant 0 : index
    %c0_7 = arith.constant 0 : index
    %5 = vector.load %arg1[%c1_5, %c0_6, %c0_7] : memref<5x96x168xf32, #tpu.memory_space<vmem>>, vector<1x96x168xf32>
    %6 = vector.shape_cast %5 : vector<1x96x168xf32> to vector<96x168xf32>
    %cst_8 = arith.constant dense<0.000000e+00> : vector<60x168xf32>
    %7 = tpu.matmul %4, %6, %cst_8 {dimension_numbers = #tpu.dot_dimension_numbers<[1], [0], [0], [1], [0, 0, 1, 1], [], []>} : vector<60x96xf32>, vector<96x168xf32>, vector<60x168xf32> -> vector<60x168xf32>
    %8 = arith.addf %3, %7 : vector<60x168xf32>
    %c2 = arith.constant 2 : index
    %c0_9 = arith.constant 0 : index
    %9 = vector.load %arg0[%c2, %c0_9] : memref<64x96xf32, #tpu.memory_space<vmem>>, vector<60x96xf32>
    %c2_10 = arith.constant 2 : index
    %c0_11 = arith.constant 0 : index
    %c0_12 = arith.constant 0 : index
    %10 = vector.load %arg1[%c2_10, %c0_11, %c0_12] : memref<5x96x168xf32, #tpu.memory_space<vmem>>, vector<1x96x168xf32>
    %11 = vector.shape_cast %10 : vector<1x96x168xf32> to vector<96x168xf32>
    %cst_13 = arith.constant dense<0.000000e+00> : vector<60x168xf32>
    %12 = tpu.matmul %9, %11, %cst_13 {dimension_numbers = #tpu.dot_dimension_numbers<[1], [0], [0], [1], [0, 0, 1, 1], [], []>} : vector<60x96xf32>, vector<96x168xf32>, vector<60x168xf32> -> vector<60x168xf32>
    %13 = arith.addf %8, %12 : vector<60x168xf32>
    %c3 = arith.constant 3 : index
    %c0_14 = arith.constant 0 : index
    %14 = vector.load %arg0[%c3, %c0_14] : memref<64x96xf32, #tpu.memory_space<vmem>>, vector<60x96xf32>
    %c3_15 = arith.constant 3 : index
    %c0_16 = arith.constant 0 : index
    %c0_17 = arith.constant 0 : index
    %15 = vector.load %arg1[%c3_15, %c0_16, %c0_17] : memref<5x96x168xf32, #tpu.memory_space<vmem>>, vector<1x96x168xf32>
    %16 = vector.shape_cast %15 : vector<1x96x168xf32> to vector<96x168xf32>
    %cst_18 = arith.constant dense<0.000000e+00> : vector<60x168xf32>
    %17 = tpu.matmul %14, %16, %cst_18 {dimension_numbers = #tpu.dot_dimension_numbers<[1], [0], [0], [1], [0, 0, 1, 1], [], []>} : vector<60x96xf32>, vector<96x168xf32>, vector<60x168xf32> -> vector<60x168xf32>
    %18 = arith.addf %13, %17 : vector<60x168xf32>
    %c4 = arith.constant 4 : index
    %c0_19 = arith.constant 0 : index
    %19 = vector.load %arg0[%c4, %c0_19] : memref<64x96xf32, #tpu.memory_space<vmem>>, vector<60x96xf32>
    %c4_20 = arith.constant 4 : index
    %c0_21 = arith.constant 0 : index
    %c0_22 = arith.constant 0 : index
    %20 = vector.load %arg1[%c4_20, %c0_21, %c0_22] : memref<5x96x168xf32, #tpu.memory_space<vmem>>, vector<1x96x168xf32>
    %21 = vector.shape_cast %20 : vector<1x96x168xf32> to vector<96x168xf32>
    %cst_23 = arith.constant dense<0.000000e+00> : vector<60x168xf32>
    %22 = tpu.matmul %19, %21, %cst_23 {dimension_numbers = #tpu.dot_dimension_numbers<[1], [0], [0], [1], [0, 0, 1, 1], [], []>} : vector<60x96xf32>, vector<96x168xf32>, vector<60x168xf32> -> vector<60x168xf32>
    %23 = arith.addf %18, %22 : vector<60x168xf32>
    %c0_24 = arith.constant 0 : index
    %c0_25 = arith.constant 0 : index
    %24 = vector.load %arg2[%c0_24, %c0_25] : memref<1x168xf32, #tpu.memory_space<vmem>>, vector<1x168xf32>
    %25 = vector.broadcast %24 : vector<1x168xf32> to vector<60x168xf32>
    %26 = arith.addf %23, %25 : vector<60x168xf32>
    %cst_26 = arith.constant 0.000000e+00 : f32
    %27 = vector.broadcast %cst_26 : f32 to vector<60x168xf32>
    %28 = arith.maximumf %26, %27 : vector<60x168xf32>
    %29 = vector.extract_strided_slice %28 {offsets = [0, 0], sizes = [60, 162], strides = [1, 1]} : vector<60x168xf32> to vector<60x162xf32>
    %30 = vector.extract_strided_slice %28 {offsets = [0, 6], sizes = [60, 162], strides = [1, 1]} : vector<60x168xf32> to vector<60x162xf32>
    %31 = arith.maximumf %29, %30 : vector<60x162xf32>
    %32 = vector.extract_strided_slice %31 {offsets = [0, 0], sizes = [59, 162], strides = [1, 1]} : vector<60x162xf32> to vector<59x162xf32>
    %33 = vector.extract_strided_slice %31 {offsets = [1, 0], sizes = [59, 162], strides = [1, 1]} : vector<60x162xf32> to vector<59x162xf32>
    %34 = arith.maximumf %32, %33 : vector<59x162xf32>
    %c0_27 = arith.constant 0 : index
    %c0_28 = arith.constant 0 : index
    %35 = vector.load %arg3[%c0_27, %c0_28] : memref<28x59xf32, #tpu.memory_space<vmem>>, vector<28x59xf32>
    %cst_29 = arith.constant dense<0.000000e+00> : vector<28x162xf32>
    %36 = tpu.matmul %35, %34, %cst_29 {dimension_numbers = #tpu.dot_dimension_numbers<[1], [0], [0], [1], [0, 0, 1, 1], [], []>} : vector<28x59xf32>, vector<59x162xf32>, vector<28x162xf32> -> vector<28x162xf32>
    %37 = vector.extract_strided_slice %36 {offsets = [0, 0], sizes = [24, 162], strides = [1, 1]} : vector<28x162xf32> to vector<24x162xf32>
    %c0_30 = arith.constant 0 : index
    %c0_31 = arith.constant 0 : index
    %c0_32 = arith.constant 0 : index
    %38 = vector.load %arg4[%c0_30, %c0_31, %c0_32] : memref<5x162x160xf32, #tpu.memory_space<vmem>>, vector<1x162x160xf32>
    %39 = vector.shape_cast %38 : vector<1x162x160xf32> to vector<162x160xf32>
    %cst_33 = arith.constant dense<0.000000e+00> : vector<24x160xf32>
    %40 = tpu.matmul %37, %39, %cst_33 {dimension_numbers = #tpu.dot_dimension_numbers<[1], [0], [0], [1], [0, 0, 1, 1], [], []>} : vector<24x162xf32>, vector<162x160xf32>, vector<24x160xf32> -> vector<24x160xf32>
    %41 = vector.extract_strided_slice %36 {offsets = [1, 0], sizes = [24, 162], strides = [1, 1]} : vector<28x162xf32> to vector<24x162xf32>
    %c1_34 = arith.constant 1 : index
    %c0_35 = arith.constant 0 : index
    %c0_36 = arith.constant 0 : index
    %42 = vector.load %arg4[%c1_34, %c0_35, %c0_36] : memref<5x162x160xf32, #tpu.memory_space<vmem>>, vector<1x162x160xf32>
    %43 = vector.shape_cast %42 : vector<1x162x160xf32> to vector<162x160xf32>
    %cst_37 = arith.constant dense<0.000000e+00> : vector<24x160xf32>
    %44 = tpu.matmul %41, %43, %cst_37 {dimension_numbers = #tpu.dot_dimension_numbers<[1], [0], [0], [1], [0, 0, 1, 1], [], []>} : vector<24x162xf32>, vector<162x160xf32>, vector<24x160xf32> -> vector<24x160xf32>
    %45 = arith.addf %40, %44 : vector<24x160xf32>
    %46 = vector.extract_strided_slice %36 {offsets = [2, 0], sizes = [24, 162], strides = [1, 1]} : vector<28x162xf32> to vector<24x162xf32>
    %c2_38 = arith.constant 2 : index
    %c0_39 = arith.constant 0 : index
    %c0_40 = arith.constant 0 : index
    %47 = vector.load %arg4[%c2_38, %c0_39, %c0_40] : memref<5x162x160xf32, #tpu.memory_space<vmem>>, vector<1x162x160xf32>
    %48 = vector.shape_cast %47 : vector<1x162x160xf32> to vector<162x160xf32>
    %cst_41 = arith.constant dense<0.000000e+00> : vector<24x160xf32>
    %49 = tpu.matmul %46, %48, %cst_41 {dimension_numbers = #tpu.dot_dimension_numbers<[1], [0], [0], [1], [0, 0, 1, 1], [], []>} : vector<24x162xf32>, vector<162x160xf32>, vector<24x160xf32> -> vector<24x160xf32>
    %50 = arith.addf %45, %49 : vector<24x160xf32>
    %51 = vector.extract_strided_slice %36 {offsets = [3, 0], sizes = [24, 162], strides = [1, 1]} : vector<28x162xf32> to vector<24x162xf32>
    %c3_42 = arith.constant 3 : index
    %c0_43 = arith.constant 0 : index
    %c0_44 = arith.constant 0 : index
    %52 = vector.load %arg4[%c3_42, %c0_43, %c0_44] : memref<5x162x160xf32, #tpu.memory_space<vmem>>, vector<1x162x160xf32>
    %53 = vector.shape_cast %52 : vector<1x162x160xf32> to vector<162x160xf32>
    %cst_45 = arith.constant dense<0.000000e+00> : vector<24x160xf32>
    %54 = tpu.matmul %51, %53, %cst_45 {dimension_numbers = #tpu.dot_dimension_numbers<[1], [0], [0], [1], [0, 0, 1, 1], [], []>} : vector<24x162xf32>, vector<162x160xf32>, vector<24x160xf32> -> vector<24x160xf32>
    %55 = arith.addf %50, %54 : vector<24x160xf32>
    %56 = vector.extract_strided_slice %36 {offsets = [4, 0], sizes = [24, 162], strides = [1, 1]} : vector<28x162xf32> to vector<24x162xf32>
    %c4_46 = arith.constant 4 : index
    %c0_47 = arith.constant 0 : index
    %c0_48 = arith.constant 0 : index
    %57 = vector.load %arg4[%c4_46, %c0_47, %c0_48] : memref<5x162x160xf32, #tpu.memory_space<vmem>>, vector<1x162x160xf32>
    %58 = vector.shape_cast %57 : vector<1x162x160xf32> to vector<162x160xf32>
    %cst_49 = arith.constant dense<0.000000e+00> : vector<24x160xf32>
    %59 = tpu.matmul %56, %58, %cst_49 {dimension_numbers = #tpu.dot_dimension_numbers<[1], [0], [0], [1], [0, 0, 1, 1], [], []>} : vector<24x162xf32>, vector<162x160xf32>, vector<24x160xf32> -> vector<24x160xf32>
    %60 = arith.addf %55, %59 : vector<24x160xf32>
    %c0_50 = arith.constant 0 : index
    %c0_51 = arith.constant 0 : index
    %61 = vector.load %arg5[%c0_50, %c0_51] : memref<1x160xf32, #tpu.memory_space<vmem>>, vector<1x160xf32>
    %62 = vector.broadcast %61 : vector<1x160xf32> to vector<24x160xf32>
    %63 = arith.addf %60, %62 : vector<24x160xf32>
    %cst_52 = arith.constant 0.000000e+00 : f32
    %64 = vector.broadcast %cst_52 : f32 to vector<24x160xf32>
    %65 = arith.maximumf %63, %64 : vector<24x160xf32>
    %66 = vector.extract_strided_slice %65 {offsets = [0, 0], sizes = [24, 144], strides = [1, 1]} : vector<24x160xf32> to vector<24x144xf32>
    %67 = vector.extract_strided_slice %65 {offsets = [0, 16], sizes = [24, 144], strides = [1, 1]} : vector<24x160xf32> to vector<24x144xf32>
    %68 = arith.maximumf %66, %67 : vector<24x144xf32>
    %69 = vector.extract_strided_slice %68 {offsets = [0, 0], sizes = [23, 144], strides = [1, 1]} : vector<24x144xf32> to vector<23x144xf32>
    %70 = vector.extract_strided_slice %68 {offsets = [1, 0], sizes = [23, 144], strides = [1, 1]} : vector<24x144xf32> to vector<23x144xf32>
    %71 = arith.maximumf %69, %70 : vector<23x144xf32>
    %c0_53 = arith.constant 0 : index
    %c0_54 = arith.constant 0 : index
    %72 = vector.load %arg6[%c0_53, %c0_54] : memref<10x23xf32, #tpu.memory_space<vmem>>, vector<10x23xf32>
    %cst_55 = arith.constant dense<0.000000e+00> : vector<10x144xf32>
    %73 = tpu.matmul %72, %71, %cst_55 {dimension_numbers = #tpu.dot_dimension_numbers<[1], [0], [0], [1], [0, 0, 1, 1], [], []>} : vector<10x23xf32>, vector<23x144xf32>, vector<10x144xf32> -> vector<10x144xf32>
    %74 = vector.extract_strided_slice %73 {offsets = [0, 0], sizes = [2, 144], strides = [1, 1]} : vector<10x144xf32> to vector<2x144xf32>
    %c0_56 = arith.constant 0 : index
    %c0_57 = arith.constant 0 : index
    %c0_58 = arith.constant 0 : index
    %75 = vector.load %arg7[%c0_56, %c0_57, %c0_58] : memref<5x144x120xf32, #tpu.memory_space<vmem>>, vector<1x144x120xf32>
    %76 = vector.shape_cast %75 : vector<1x144x120xf32> to vector<144x120xf32>
    %cst_59 = arith.constant dense<0.000000e+00> : vector<2x120xf32>
    %77 = tpu.matmul %74, %76, %cst_59 {dimension_numbers = #tpu.dot_dimension_numbers<[1], [0], [0], [1], [0, 0, 1, 1], [], []>} : vector<2x144xf32>, vector<144x120xf32>, vector<2x120xf32> -> vector<2x120xf32>
    %78 = vector.extract_strided_slice %73 {offsets = [2, 0], sizes = [2, 144], strides = [1, 1]} : vector<10x144xf32> to vector<2x144xf32>
    %c1_60 = arith.constant 1 : index
    %c0_61 = arith.constant 0 : index
    %c0_62 = arith.constant 0 : index
    %79 = vector.load %arg7[%c1_60, %c0_61, %c0_62] : memref<5x144x120xf32, #tpu.memory_space<vmem>>, vector<1x144x120xf32>
    %80 = vector.shape_cast %79 : vector<1x144x120xf32> to vector<144x120xf32>
    %cst_63 = arith.constant dense<0.000000e+00> : vector<2x120xf32>
    %81 = tpu.matmul %78, %80, %cst_63 {dimension_numbers = #tpu.dot_dimension_numbers<[1], [0], [0], [1], [0, 0, 1, 1], [], []>} : vector<2x144xf32>, vector<144x120xf32>, vector<2x120xf32> -> vector<2x120xf32>
    %82 = arith.addf %77, %81 : vector<2x120xf32>
    %83 = vector.extract_strided_slice %73 {offsets = [4, 0], sizes = [2, 144], strides = [1, 1]} : vector<10x144xf32> to vector<2x144xf32>
    %c2_64 = arith.constant 2 : index
    %c0_65 = arith.constant 0 : index
    %c0_66 = arith.constant 0 : index
    %84 = vector.load %arg7[%c2_64, %c0_65, %c0_66] : memref<5x144x120xf32, #tpu.memory_space<vmem>>, vector<1x144x120xf32>
    %85 = vector.shape_cast %84 : vector<1x144x120xf32> to vector<144x120xf32>
    %cst_67 = arith.constant dense<0.000000e+00> : vector<2x120xf32>
    %86 = tpu.matmul %83, %85, %cst_67 {dimension_numbers = #tpu.dot_dimension_numbers<[1], [0], [0], [1], [0, 0, 1, 1], [], []>} : vector<2x144xf32>, vector<144x120xf32>, vector<2x120xf32> -> vector<2x120xf32>
    %87 = arith.addf %82, %86 : vector<2x120xf32>
    %88 = vector.extract_strided_slice %73 {offsets = [6, 0], sizes = [2, 144], strides = [1, 1]} : vector<10x144xf32> to vector<2x144xf32>
    %c3_68 = arith.constant 3 : index
    %c0_69 = arith.constant 0 : index
    %c0_70 = arith.constant 0 : index
    %89 = vector.load %arg7[%c3_68, %c0_69, %c0_70] : memref<5x144x120xf32, #tpu.memory_space<vmem>>, vector<1x144x120xf32>
    %90 = vector.shape_cast %89 : vector<1x144x120xf32> to vector<144x120xf32>
    %cst_71 = arith.constant dense<0.000000e+00> : vector<2x120xf32>
    %91 = tpu.matmul %88, %90, %cst_71 {dimension_numbers = #tpu.dot_dimension_numbers<[1], [0], [0], [1], [0, 0, 1, 1], [], []>} : vector<2x144xf32>, vector<144x120xf32>, vector<2x120xf32> -> vector<2x120xf32>
    %92 = arith.addf %87, %91 : vector<2x120xf32>
    %93 = vector.extract_strided_slice %73 {offsets = [8, 0], sizes = [2, 144], strides = [1, 1]} : vector<10x144xf32> to vector<2x144xf32>
    %c4_72 = arith.constant 4 : index
    %c0_73 = arith.constant 0 : index
    %c0_74 = arith.constant 0 : index
    %94 = vector.load %arg7[%c4_72, %c0_73, %c0_74] : memref<5x144x120xf32, #tpu.memory_space<vmem>>, vector<1x144x120xf32>
    %95 = vector.shape_cast %94 : vector<1x144x120xf32> to vector<144x120xf32>
    %cst_75 = arith.constant dense<0.000000e+00> : vector<2x120xf32>
    %96 = tpu.matmul %93, %95, %cst_75 {dimension_numbers = #tpu.dot_dimension_numbers<[1], [0], [0], [1], [0, 0, 1, 1], [], []>} : vector<2x144xf32>, vector<144x120xf32>, vector<2x120xf32> -> vector<2x120xf32>
    %97 = arith.addf %92, %96 : vector<2x120xf32>
    %c0_76 = arith.constant 0 : index
    %c0_77 = arith.constant 0 : index
    %98 = vector.load %arg8[%c0_76, %c0_77] : memref<1x120xf32, #tpu.memory_space<vmem>>, vector<1x120xf32>
    %99 = vector.broadcast %98 : vector<1x120xf32> to vector<2x120xf32>
    %100 = arith.addf %97, %99 : vector<2x120xf32>
    %cst_78 = arith.constant 0.000000e+00 : f32
    %101 = vector.broadcast %cst_78 : f32 to vector<2x120xf32>
    %102 = arith.maximumf %100, %101 : vector<2x120xf32>
    %c0_79 = arith.constant 0 : index
    %c0_80 = arith.constant 0 : index
    %103 = vector.load %arg9[%c0_79, %c0_80] : memref<120x84xf32, #tpu.memory_space<vmem>>, vector<120x84xf32>
    %cst_81 = arith.constant dense<0.000000e+00> : vector<2x84xf32>
    %104 = tpu.matmul %102, %103, %cst_81 {dimension_numbers = #tpu.dot_dimension_numbers<[1], [0], [0], [1], [0, 0, 1, 1], [], []>} : vector<2x120xf32>, vector<120x84xf32>, vector<2x84xf32> -> vector<2x84xf32>
    %c0_82 = arith.constant 0 : index
    %c0_83 = arith.constant 0 : index
    %105 = vector.load %arg10[%c0_82, %c0_83] : memref<1x84xf32, #tpu.memory_space<vmem>>, vector<1x84xf32>
    %106 = vector.broadcast %105 : vector<1x84xf32> to vector<2x84xf32>
    %107 = arith.addf %104, %106 : vector<2x84xf32>
    %cst_84 = arith.constant 0.000000e+00 : f32
    %108 = vector.broadcast %cst_84 : f32 to vector<2x84xf32>
    %109 = arith.maximumf %107, %108 : vector<2x84xf32>
    %c0_85 = arith.constant 0 : index
    %c0_86 = arith.constant 0 : index
    %110 = vector.load %arg11[%c0_85, %c0_86] : memref<84x10xf32, #tpu.memory_space<vmem>>, vector<84x10xf32>
    %cst_87 = arith.constant dense<0.000000e+00> : vector<2x10xf32>
    %111 = tpu.matmul %109, %110, %cst_87 {dimension_numbers = #tpu.dot_dimension_numbers<[1], [0], [0], [1], [0, 0, 1, 1], [], []>} : vector<2x84xf32>, vector<84x10xf32>, vector<2x10xf32> -> vector<2x10xf32>
    %c0_88 = arith.constant 0 : index
    %c0_89 = arith.constant 0 : index
    %112 = vector.load %arg12[%c0_88, %c0_89] : memref<1x10xf32, #tpu.memory_space<vmem>>, vector<1x10xf32>
    %113 = vector.broadcast %112 : vector<1x10xf32> to vector<2x10xf32>
    %114 = arith.addf %111, %113 : vector<2x10xf32>
    %c0_90 = arith.constant 0 : index
    %c0_91 = arith.constant 0 : index
    %115 = vector.load %arg13[%c0_90, %c0_91] : memref<2x10xf32, #tpu.memory_space<vmem>>, vector<2x10xf32>
    tpu.vector_store %arg13[%c0_90, %c0_91], %114 {strides = array<i32>} : memref<2x10xf32, #tpu.memory_space<vmem>>, vector<2x10xf32>,
    return
  }
}

</mosaic_0001>

<llo_original>
// kernel: fused_forward.1
$region0: #{fused_forward.1}
  #allocation0 [shape = 'u32[]', space=smem, size = 0x4, offset = 0x4, fixed_abs, tag = 'smem constant byte address 0x4 - core index']
  #allocation1 [shape = 'u32[144,128]{1,0:T(1,128)}', space=vmem, size = 0x12000, scoped, tag = 'internal scratch']
  %s0 = inlined_call_operand.vmem [shape: f32[64,96], index: 0, kind: input, shape index: {}]
  %s1 = inlined_call_operand.vmem [shape: f32[5,96,168], index: 1, kind: input, shape index: {}]
  %s2 = inlined_call_operand.vmem [shape: f32[1,168], index: 2, kind: input, shape index: {}]
  %s3 = inlined_call_operand.vmem [shape: f32[28,59], index: 3, kind: input, shape index: {}]
  %s4 = inlined_call_operand.vmem [shape: f32[5,162,160], index: 4, kind: input, shape index: {}]
  %s5 = inlined_call_operand.vmem [shape: f32[1,160], index: 5, kind: input, shape index: {}]
  %s6 = inlined_call_operand.vmem [shape: f32[10,23], index: 6, kind: input, shape index: {}]
  %s7 = inlined_call_operand.vmem [shape: f32[5,144,120], index: 7, kind: input, shape index: {}]
  %s8 = inlined_call_operand.vmem [shape: f32[1,120], index: 8, kind: input, shape index: {}]
  %s9 = inlined_call_operand.vmem [shape: f32[120,84], index: 9, kind: input, shape index: {}]
  %s10 = inlined_call_operand.vmem [shape: f32[1,84], index: 10, kind: input, shape index: {}]
  %s11 = inlined_call_operand.vmem [shape: f32[84,10], index: 11, kind: input, shape index: {}]
  %s12 = inlined_call_operand.vmem [shape: f32[1,10], index: 12, kind: input, shape index: {}]
  %s13 = inlined_call_operand.hbm [shape: f32[2,10], index: 13, kind: output, shape index: {}]
  %s14 = sld [smem:[#allocation0]]
  $region62: #{fused_forward.1} parent=0
    _
  %s16 = ssub.s32 1, %s14
  %s17 = scalar_select 0, %s16, %s14
  $region1: #{fused_forward.1} parent=0
    #allocation2 [shape = 'u8[1024]{0}', space=vmem, size = 0x400, scoped, tag = 'output window, operand 0, single buffered']
    #allocation3 [shape = 's32[1]{0}', space=sflag, size = 0x4, scoped, tag = 'scoped memory for fused_forward.1']
    %18 = vsyncpa [#allocation3], 0
    // Predicated region
    $region2: #{fused_forward.1} parent=1 // pred_check
      _
    $region3: #{fused_forward.1} parent=1 // pred_check_branch
      %20 = sbr.rel (0) target = $region5
    $region4: #{fused_forward.1} parent=1 // pred_region
      _
    $region5: #{fused_forward.1} parent=1 // pred_fallthru
      _
    // Predicated region
    $region6: #{fused_forward.1} parent=1 // pred_check
      _
    $region7: #{fused_forward.1} parent=1 // pred_check_branch
      %22 = sbr.rel (0) target = $region9
    $region8: #{fused_forward.1} parent=1 // pred_region
      _
    $region9: #{fused_forward.1} parent=1 // pred_fallthru
      _
    // Predicated region
    $region10: #{fused_forward.1} parent=1 // pred_check
      _
    $region11: #{fused_forward.1} parent=1 // pred_check_branch
      %24 = sbr.rel (0) target = $region13
    $region12: #{fused_forward.1} parent=1 // pred_region
      _
    $region13: #{fused_forward.1} parent=1 // pred_fallthru
      _
    // Predicated region
    $region14: #{fused_forward.1} parent=1 // pred_check
      _
    $region15: #{fused_forward.1} parent=1 // pred_check_branch
      %26 = sbr.rel (0) target = $region17
    $region16: #{fused_forward.1} parent=1 // pred_region
      _
    $region17: #{fused_forward.1} parent=1 // pred_fallthru
      _
    // Predicated region
    $region18: #{fused_forward.1} parent=1 // pred_check
      _
    $region19: #{fused_forward.1} parent=1 // pred_check_branch
      %28 = sbr.rel (0) target = $region21
    $region20: #{fused_forward.1} parent=1 // pred_region
      _
    $region21: #{fused_forward.1} parent=1 // pred_fallthru
      _
    // Predicated region
    $region22: #{fused_forward.1} parent=1 // pred_check
      _
    $region23: #{fused_forward.1} parent=1 // pred_check_branch
      %30 = sbr.rel (0) target = $region25
    $region24: #{fused_forward.1} parent=1 // pred_region
      _
    $region25: #{fused_forward.1} parent=1 // pred_fallthru
      _
    // Predicated region
    $region26: #{fused_forward.1} parent=1 // pred_check
      _
    $region27: #{fused_forward.1} parent=1 // pred_check_branch
      %32 = sbr.rel (0) target = $region29
    $region28: #{fused_forward.1} parent=1 // pred_region
      _
    $region29: #{fused_forward.1} parent=1 // pred_fallthru
      _
    // Predicated region
    $region30: #{fused_forward.1} parent=1 // pred_check
      _
    $region31: #{fused_forward.1} parent=1 // pred_check_branch
      %34 = sbr.rel (0) target = $region33
    $region32: #{fused_forward.1} parent=1 // pred_region
      _
    $region33: #{fused_forward.1} parent=1 // pred_fallthru
      _
    // Predicated region
    $region34: #{fused_forward.1} parent=1 // pred_check
      _
    $region35: #{fused_forward.1} parent=1 // pred_check_branch
      %36 = sbr.rel (0) target = $region37
    $region36: #{fused_forward.1} parent=1 // pred_region
      _
    $region37: #{fused_forward.1} parent=1 // pred_fallthru
      _
    // Predicated region
    $region38: #{fused_forward.1} parent=1 // pred_check
      _
    $region39: #{fused_forward.1} parent=1 // pred_check_branch
      %38 = sbr.rel (0) target = $region41
    $region40: #{fused_forward.1} parent=1 // pred_region
      _
    $region41: #{fused_forward.1} parent=1 // pred_fallthru
      _
    // Predicated region
    $region42: #{fused_forward.1} parent=1 // pred_check
      _
    $region43: #{fused_forward.1} parent=1 // pred_check_branch
      %40 = sbr.rel (0) target = $region45
    $region44: #{fused_forward.1} parent=1 // pred_region
      _
    $region45: #{fused_forward.1} parent=1 // pred_fallthru
      _
    // Predicated region
    $region46: #{fused_forward.1} parent=1 // pred_check
      _
    $region47: #{fused_forward.1} parent=1 // pred_check_branch
      %42 = sbr.rel (0) target = $region49
    $region48: #{fused_forward.1} parent=1 // pred_region
      _
    $region49: #{fused_forward.1} parent=1 // pred_fallthru
      _
    // Predicated region
    $region50: #{fused_forward.1} parent=1 // pred_check
      _
    $region51: #{fused_forward.1} parent=1 // pred_check_branch
      %44 = sbr.rel (0) target = $region53
    $region52: #{fused_forward.1} parent=1 // pred_region
      _
    $region53: #{fused_forward.1} parent=1 // pred_fallthru
      _
    %v45 = vld [vmem:[%s0] sm:$0xff]
    %v46 = vld [vmem:[%s0 + $0x8] sm:$0xff]
    %v47 = vld [vmem:[%s0 + $0x10] sm:$0xff]
    %v48 = vld [vmem:[%s0 + $0x18] sm:$0xff]
    %v49 = vld [vmem:[%s0 + $0x20] sm:$0xff]
    %v50 = vld [vmem:[%s0 + $0x28] sm:$0xff]
    %v51 = vld [vmem:[%s0 + $0x30] sm:$0xff]
    %v52 = vld [vmem:[%s0 + $0x38] sm:$0xf]
    %v53 = vld [vmem:[%s1] sm:$0xff]
    %v54 = vld [vmem:[%s1 + $0x8] sm:$0xff]
    %v55 = vld [vmem:[%s1 + $0x10] sm:$0xff]
    %v56 = vld [vmem:[%s1 + $0x18] sm:$0xff]
    %v57 = vld [vmem:[%s1 + $0x20] sm:$0xff]
    %v58 = vld [vmem:[%s1 + $0x28] sm:$0xff]
    %v59 = vld [vmem:[%s1 + $0x30] sm:$0xff]
    %v60 = vld [vmem:[%s1 + $0x38] sm:$0xff]
    %v61 = vld [vmem:[%s1 + $0x40] sm:$0xff]
    %v62 = vld [vmem:[%s1 + $0x48] sm:$0xff]
    %v63 = vld [vmem:[%s1 + $0x50] sm:$0xff]
    %v64 = vld [vmem:[%s1 + $0x58] sm:$0xff]
    %v65 = vld [vmem:[%s1 + $0x60] sm:$0xff]
    %v66 = vld [vmem:[%s1 + $0x68] sm:$0xff]
    %v67 = vld [vmem:[%s1 + $0x70] sm:$0xff]
    %v68 = vld [vmem:[%s1 + $0x78] sm:$0xff]
    %v69 = vld [vmem:[%s1 + $0x80] sm:$0xff]
    %v70 = vld [vmem:[%s1 + $0x88] sm:$0xff]
    %v71 = vld [vmem:[%s1 + $0x90] sm:$0xff]
    %v72 = vld [vmem:[%s1 + $0x98] sm:$0xff]
    %v73 = vld [vmem:[%s1 + $0xa0] sm:$0xff]
    %v74 = vld [vmem:[%s1 + $0xa8] sm:$0xff]
    %v75 = vld [vmem:[%s1 + $0xb0] sm:$0xff]
    %v76 = vld [vmem:[%s1 + $0xb8] sm:$0xff]
    %v77 = vld [vmem:[%s0 + $0x1] sm:$0xff]
    %v78 = vld [vmem:[%s0 + $0x9] sm:$0xff]
    %v79 = vld [vmem:[%s0 + $0x11] sm:$0xff]
    %v80 = vld [vmem:[%s0 + $0x19] sm:$0xff]
    %v81 = vld [vmem:[%s0 + $0x21] sm:$0xff]
    %v82 = vld [vmem:[%s0 + $0x29] sm:$0xff]
    %v83 = vld [vmem:[%s0 + $0x31] sm:$0xff]
    %v84 = vld [vmem:[%s0 + $0x39] sm:$0xf]
    %s85 = scalar_lea.vmem %s1, 192
    %v86 = vld [vmem:[%s85] sm:$0xff]
    %v87 = vld [vmem:[%s85 + $0x8] sm:$0xff]
    %v88 = vld [vmem:[%s85 + $0x10] sm:$0xff]
    %v89 = vld [vmem:[%s85 + $0x18] sm:$0xff]
    %v90 = vld [vmem:[%s85 + $0x20] sm:$0xff]
    %v91 = vld [vmem:[%s85 + $0x28] sm:$0xff]
    %v92 = vld [vmem:[%s85 + $0x30] sm:$0xff]
    %v93 = vld [vmem:[%s85 + $0x38] sm:$0xff]
    %v94 = vld [vmem:[%s85 + $0x40] sm:$0xff]
    %v95 = vld [vmem:[%s85 + $0x48] sm:$0xff]
    %v96 = vld [vmem:[%s85 + $0x50] sm:$0xff]
    %v97 = vld [vmem:[%s85 + $0x58] sm:$0xff]
    %v98 = vld [vmem:[%s85 + $0x60] sm:$0xff]
    %v99 = vld [vmem:[%s85 + $0x68] sm:$0xff]
    %v100 = vld [vmem:[%s85 + $0x70] sm:$0xff]
    %v101 = vld [vmem:[%s85 + $0x78] sm:$0xff]
    %v102 = vld [vmem:[%s85 + $0x80] sm:$0xff]
    %v103 = vld [vmem:[%s85 + $0x88] sm:$0xff]
    %v104 = vld [vmem:[%s85 + $0x90] sm:$0xff]
    %v105 = vld [vmem:[%s85 + $0x98] sm:$0xff]
    %v106 = vld [vmem:[%s85 + $0xa0] sm:$0xff]
    %v107 = vld [vmem:[%s85 + $0xa8] sm:$0xff]
    %v108 = vld [vmem:[%s85 + $0xb0] sm:$0xff]
    %v109 = vld [vmem:[%s85 + $0xb8] sm:$0xff]
    %vm110 = vcmask 785408
    %v112 = vsel %vm110, %v77, 0
    %v115 = vsel %vm110, %v78, 0
    %v118 = vsel %vm110, %v79, 0
    %v121 = vsel %vm110, %v80, 0
    %v124 = vsel %vm110, %v81, 0
    %v127 = vsel %vm110, %v82, 0
    %v130 = vsel %vm110, %v83, 0
    %v133 = vsel %vm110, %v84, 0
    %135 = vmatprep.subr.mxu0 %v87
    %136 = vmatpush1.msra.mxu0 %v86
    %137 = vmatprep.subr.mxu0 %v89
    %138 = vmatpush1.msra.mxu0 %v88
    %139 = vmatprep.subr.mxu0 %v91
    %140 = vmatpush1.msra.mxu0 %v90
    %141 = vmatprep.subr.mxu0 %v93
    %142 = vmatpush1.msra.mxu0 %v92
    %143 = vmatprep.subr.mxu0 %v95
    %144 = vmatpush1.msra.mxu0 %v94
    %145 = vmatprep.subr.mxu0 %v97
    %146 = vmatpush1.msra.mxu0 %v96
    %147 = vmatprep.subr.mxu0 %v99
    %148 = vmatpush1.msra.mxu0 %v98
    %149 = vmatprep.subr.mxu0 %v101
    %150 = vmatpush1.msra.mxu0 %v100
    %151 = vmatprep.subr.mxu0 %v103
    %152 = vmatpush1.msra.mxu0 %v102
    %153 = vmatprep.subr.mxu0 %v105
    %154 = vmatpush1.msra.mxu0 %v104
    %155 = vmatprep.subr.mxu0 %v107
    %156 = vmatpush1.msra.mxu0 %v106
    %157 = vmatprep.subr.mxu0 %v109
    %158 = vmatpush1.msra.mxu0 %v108
    %159 = vmatprep.subr.mxu0 0.0
    %160 = vmatpush1.msra.mxu0 0.0
    %161 = vmatprep.subr.mxu0 0.0
    %162 = vmatpush1.msra.mxu0 0.0
    %163 = vmatprep.subr.mxu0 0.0
    %164 = vmatpush1.msra.mxu0 0.0
    %165 = vmatprep.subr.mxu0 0.0
    %166 = vmatpush1.msra.mxu0 0.0
    %167 = vmatprep.subr.mxu0 0.0
    %168 = vmatpush1.msra.mxu0 0.0
    %169 = vmatprep.subr.mxu0 0.0
    %170 = vmatpush1.msra.mxu0 0.0
    %171 = vmatprep.subr.mxu0 0.0
    %172 = vmatpush1.msra.mxu0 0.0
    %173 = vmatprep.subr.mxu0 0.0
    %174 = vmatpush1.msra.mxu0 0.0
    %175 = vmatprep.subr.mxu0 0.0
    %176 = vmatpush1.msra.mxu0 0.0
    %177 = vmatprep.subr.mxu0 0.0
    %178 = vmatpush1.msra.mxu0 0.0
    %179 = vmatprep.subr.mxu0 0.0
    %180 = vmatpush1.msra.mxu0 0.0
    %181 = vmatprep.subr.mxu0 0.0
    %182 = vmatpush1.msra.mxu0 0.0
    %183 = vmatprep.subr.mxu0 0.0
    %184 = vmatpush1.msra.mxu0 0.0
    %185 = vmatprep.subr.mxu0 0.0
    %186 = vmatpush1.msra.mxu0 0.0
    %187 = vmatprep.subr.mxu0 0.0
    %188 = vmatpush1.msra.mxu0 0.0
    %189 = vmatprep.subr.mxu0 0.0
    %190 = vmatpush1.msra.mxu0 0.0
    %191 = vmatprep.subr.mxu0 0.0
    %192 = vmatpush1.msra.mxu0 0.0
    %193 = vmatprep.subr.mxu0 0.0
    %194 = vmatpush1.msra.mxu0 0.0
    %195 = vmatprep.subr.mxu0 0.0
    %196 = vmatpush1.msra.mxu0 0.0
    %197 = vmatprep.subr.mxu0 0.0
    %198 = vmatpush1.msra.mxu0 0.0
    %199 = vmatprep.mubr.f32.mxu0 0.0
    %200 = vmatmul.mubr.f32.gmra.mrb[0].mxu0 %v112
    %v201 = vpop.f32.mrb[0].mxu0
    %v202 = vadd.f32 0.0, %v201
    %v203 = vpop.f32.mrb[0].mxu0
    %v204 = vadd.f32 0.0, %v203
    %205 = vmatprep.mubr.f32.mxu0 0.0
    %206 = vmatmul.mubr.f32.gmra.mrb[0].mxu0 %v115
    %v207 = vpop.f32.mrb[0].mxu0
    %v208 = vadd.f32 0.0, %v207
    %v209 = vpop.f32.mrb[0].mxu0
    %v210 = vadd.f32 0.0, %v209
    %211 = vmatprep.mubr.f32.mxu0 0.0
    %212 = vmatmul.mubr.f32.gmra.mrb[0].mxu0 %v118
    %v213 = vpop.f32.mrb[0].mxu0
    %v214 = vadd.f32 0.0, %v213
    %v215 = vpop.f32.mrb[0].mxu0
    %v216 = vadd.f32 0.0, %v215
    %217 = vmatprep.mubr.f32.mxu0 0.0
    %218 = vmatmul.mubr.f32.gmra.mrb[0].mxu0 %v121
    %v219 = vpop.f32.mrb[0].mxu0
    %v220 = vadd.f32 0.0, %v219
    %v221 = vpop.f32.mrb[0].mxu0
    %v222 = vadd.f32 0.0, %v221
    %223 = vmatprep.mubr.f32.mxu0 0.0
    %224 = vmatmul.mubr.f32.gmra.mrb[0].mxu0 %v124
    %v225 = vpop.f32.mrb[0].mxu0
    %v226 = vadd.f32 0.0, %v225
    %v227 = vpop.f32.mrb[0].mxu0
    %v228 = vadd.f32 0.0, %v227
    %229 = vmatprep.mubr.f32.mxu0 0.0
    %230 = vmatmul.mubr.f32.gmra.mrb[0].mxu0 %v127
    %v231 = vpop.f32.mrb[0].mxu0
    %v232 = vadd.f32 0.0, %v231
    %v233 = vpop.f32.mrb[0].mxu0
    %v234 = vadd.f32 0.0, %v233
    %235 = vmatprep.mubr.f32.mxu0 0.0
    %236 = vmatmul.mubr.f32.gmra.mrb[0].mxu0 %v130
    %v237 = vpop.f32.mrb[0].mxu0
    %v238 = vadd.f32 0.0, %v237
    %v239 = vpop.f32.mrb[0].mxu0
    %v240 = vadd.f32 0.0, %v239
    %241 = vmatprep.mubr.f32.mxu0 0.0
    %242 = vmatmul.mubr.f32.gmra.mrb[0].mxu0 %v133
    %v243 = vpop.f32.mrb[0].mxu0
    %v244 = vadd.f32 0.0, %v243
    %v245 = vpop.f32.mrb[0].mxu0
    %v246 = vadd.f32 0.0, %v245
    %247 = vdwg.mxu0
    %v249 = vsel %vm110, %v45, 0
    %v252 = vsel %vm110, %v46, 0
    %v255 = vsel %vm110, %v47, 0
    %v258 = vsel %vm110, %v48, 0
    %v261 = vsel %vm110, %v49, 0
    %v264 = vsel %vm110, %v50, 0
    %v267 = vsel %vm110, %v51, 0
    %v270 = vsel %vm110, %v52, 0
    %272 = vmatprep.subr.mxu0 %v54
    %273 = vmatpush1.msra.mxu0 %v53
    %274 = vmatprep.subr.mxu0 %v56
    %275 = vmatpush1.msra.mxu0 %v55
    %276 = vmatprep.subr.mxu0 %v58
    %277 = vmatpush1.msra.mxu0 %v57
    %278 = vmatprep.subr.mxu0 %v60
    %279 = vmatpush1.msra.mxu0 %v59
    %280 = vmatprep.subr.mxu0 %v62
    %281 = vmatpush1.msra.mxu0 %v61
    %282 = vmatprep.subr.mxu0 %v64
    %283 = vmatpush1.msra.mxu0 %v63
    %284 = vmatprep.subr.mxu0 %v66
    %285 = vmatpush1.msra.mxu0 %v65
    %286 = vmatprep.subr.mxu0 %v68
    %287 = vmatpush1.msra.mxu0 %v67
    %288 = vmatprep.subr.mxu0 %v70
    %289 = vmatpush1.msra.mxu0 %v69
    %290 = vmatprep.subr.mxu0 %v72
    %291 = vmatpush1.msra.mxu0 %v71
    %292 = vmatprep.subr.mxu0 %v74
    %293 = vmatpush1.msra.mxu0 %v73
    %294 = vmatprep.subr.mxu0 %v76
    %295 = vmatpush1.msra.mxu0 %v75
    %296 = vmatprep.subr.mxu0 0.0
    %297 = vmatpush1.msra.mxu0 0.0
    %298 = vmatprep.subr.mxu0 0.0
    %299 = vmatpush1.msra.mxu0 0.0
    %300 = vmatprep.subr.mxu0 0.0
    %301 = vmatpush1.msra.mxu0 0.0
    %302 = vmatprep.subr.mxu0 0.0
    %303 = vmatpush1.msra.mxu0 0.0
    %304 = vmatprep.subr.mxu0 0.0
    %305 = vmatpush1.msra.mxu0 0.0
    %306 = vmatprep.subr.mxu0 0.0
    %307 = vmatpush1.msra.mxu0 0.0
    %308 = vmatprep.subr.mxu0 0.0
    %309 = vmatpush1.msra.mxu0 0.0
    %310 = vmatprep.subr.mxu0 0.0
    %311 = vmatpush1.msra.mxu0 0.0
    %312 = vmatprep.subr.mxu0 0.0
    %313 = vmatpush1.msra.mxu0 0.0
    %314 = vmatprep.subr.mxu0 0.0
    %315 = vmatpush1.msra.mxu0 0.0
    %316 = vmatprep.subr.mxu0 0.0
    %317 = vmatpush1.msra.mxu0 0.0
    %318 = vmatprep.subr.mxu0 0.0
    %319 = vmatpush1.msra.mxu0 0.0
    %320 = vmatprep.subr.mxu0 0.0
    %321 = vmatpush1.msra.mxu0 0.0
    %322 = vmatprep.subr.mxu0 0.0
    %323 = vmatpush1.msra.mxu0 0.0
    %324 = vmatprep.subr.mxu0 0.0
    %325 = vmatpush1.msra.mxu0 0.0
    %326 = vmatprep.subr.mxu0 0.0
    %327 = vmatpush1.msra.mxu0 0.0
    %328 = vmatprep.subr.mxu0 0.0
    %329 = vmatpush1.msra.mxu0 0.0
    %330 = vmatprep.subr.mxu0 0.0
    %331 = vmatpush1.msra.mxu0 0.0
    %332 = vmatprep.subr.mxu0 0.0
    %333 = vmatpush1.msra.mxu0 0.0
    %334 = vmatprep.subr.mxu0 0.0
    %335 = vmatpush1.msra.mxu0 0.0
    %336 = vmatprep.mubr.f32.mxu0 0.0
    %337 = vmatmul.mubr.f32.gmra.mrb[0].mxu0 %v249
    %v338 = vpop.f32.mrb[0].mxu0
    %v339 = vadd.f32 %v202, %v338
    %v340 = vpop.f32.mrb[0].mxu0
    %v341 = vadd.f32 %v204, %v340
    %342 = vmatprep.mubr.f32.mxu0 0.0
    %343 = vmatmul.mubr.f32.gmra.mrb[0].mxu0 %v252
    %v344 = vpop.f32.mrb[0].mxu0
    %v345 = vadd.f32 %v208, %v344
    %v346 = vpop.f32.mrb[0].mxu0
    %v347 = vadd.f32 %v210, %v346
    %348 = vmatprep.mubr.f32.mxu0 0.0
    %349 = vmatmul.mubr.f32.gmra.mrb[0].mxu0 %v255
    %v350 = vpop.f32.mrb[0].mxu0
    %v351 = vadd.f32 %v214, %v350
    %v352 = vpop.f32.mrb[0].mxu0
    %v353 = vadd.f32 %v216, %v352
    %354 = vmatprep.mubr.f32.mxu0 0.0
    %355 = vmatmul.mubr.f32.gmra.mrb[0].mxu0 %v258
    %v356 = vpop.f32.mrb[0].mxu0
    %v357 = vadd.f32 %v220, %v356
    %v358 = vpop.f32.mrb[0].mxu0
    %v359 = vadd.f32 %v222, %v358
    %360 = vmatprep.mubr.f32.mxu0 0.0
    %361 = vmatmul.mubr.f32.gmra.mrb[0].mxu0 %v261
    %v362 = vpop.f32.mrb[0].mxu0
    %v363 = vadd.f32 %v226, %v362
    %v364 = vpop.f32.mrb[0].mxu0
    %v365 = vadd.f32 %v228, %v364
    %366 = vmatprep.mubr.f32.mxu0 0.0
    %367 = vmatmul.mubr.f32.gmra.mrb[0].mxu0 %v264
    %v368 = vpop.f32.mrb[0].mxu0
    %v369 = vadd.f32 %v232, %v368
    %v370 = vpop.f32.mrb[0].mxu0
    %v371 = vadd.f32 %v234, %v370
    %372 = vmatprep.mubr.f32.mxu0 0.0
    %373 = vmatmul.mubr.f32.gmra.mrb[0].mxu0 %v267
    %v374 = vpop.f32.mrb[0].mxu0
    %v375 = vadd.f32 %v238, %v374
    %v376 = vpop.f32.mrb[0].mxu0
    %v377 = vadd.f32 %v240, %v376
    %378 = vmatprep.mubr.f32.mxu0 0.0
    %379 = vmatmul.mubr.f32.gmra.mrb[0].mxu0 %v270
    %v380 = vpop.f32.mrb[0].mxu0
    %v381 = vadd.f32 %v244, %v380
    %v382 = vpop.f32.mrb[0].mxu0
    %v383 = vadd.f32 %v246, %v382
    %384 = vdwg.mxu0
    %v385 = vld [vmem:[%s0 + $0x2] sm:$0xff]
    %v386 = vld [vmem:[%s0 + $0xa] sm:$0xff]
    %v387 = vld [vmem:[%s0 + $0x12] sm:$0xff]
    %v388 = vld [vmem:[%s0 + $0x1a] sm:$0xff]
    %v389 = vld [vmem:[%s0 + $0x22] sm:$0xff]
    %v390 = vld [vmem:[%s0 + $0x2a] sm:$0xff]
    %v391 = vld [vmem:[%s0 + $0x32] sm:$0xff]
    %v392 = vld [vmem:[%s0 + $0x3a] sm:$0xf]
    %s393 = scalar_lea.vmem %s1, 384
    %v394 = vld [vmem:[%s393] sm:$0xff]
    %v395 = vld [vmem:[%s393 + $0x8] sm:$0xff]
    %v396 = vld [vmem:[%s393 + $0x10] sm:$0xff]
    %v397 = vld [vmem:[%s393 + $0x18] sm:$0xff]
    %v398 = vld [vmem:[%s393 + $0x20] sm:$0xff]
    %v399 = vld [vmem:[%s393 + $0x28] sm:$0xff]
    %v400 = vld [vmem:[%s393 + $0x30] sm:$0xff]
    %v401 = vld [vmem:[%s393 + $0x38] sm:$0xff]
    %v402 = vld [vmem:[%s393 + $0x40] sm:$0xff]
    %v403 = vld [vmem:[%s393 + $0x48] sm:$0xff]
    %v404 = vld [vmem:[%s393 + $0x50] sm:$0xff]
    %v405 = vld [vmem:[%s393 + $0x58] sm:$0xff]
    %v406 = vld [vmem:[%s393 + $0x60] sm:$0xff]
    %v407 = vld [vmem:[%s393 + $0x68] sm:$0xff]
    %v408 = vld [vmem:[%s393 + $0x70] sm:$0xff]
    %v409 = vld [vmem:[%s393 + $0x78] sm:$0xff]
    %v410 = vld [vmem:[%s393 + $0x80] sm:$0xff]
    %v411 = vld [vmem:[%s393 + $0x88] sm:$0xff]
    %v412 = vld [vmem:[%s393 + $0x90] sm:$0xff]
    %v413 = vld [vmem:[%s393 + $0x98] sm:$0xff]
    %v414 = vld [vmem:[%s393 + $0xa0] sm:$0xff]
    %v415 = vld [vmem:[%s393 + $0xa8] sm:$0xff]
    %v416 = vld [vmem:[%s393 + $0xb0] sm:$0xff]
    %v417 = vld [vmem:[%s393 + $0xb8] sm:$0xff]
    %v419 = vsel %vm110, %v385, 0
    %v422 = vsel %vm110, %v386, 0
    %v425 = vsel %vm110, %v387, 0
    %v428 = vsel %vm110, %v388, 0
    %v431 = vsel %vm110, %v389, 0
    %v434 = vsel %vm110, %v390, 0
    %v437 = vsel %vm110, %v391, 0
    %v440 = vsel %vm110, %v392, 0
    %442 = vmatprep.subr.mxu0 %v395
    %443 = vmatpush1.msra.mxu0 %v394
    %444 = vmatprep.subr.mxu0 %v397
    %445 = vmatpush1.msra.mxu0 %v396
    %446 = vmatprep.subr.mxu0 %v399
    %447 = vmatpush1.msra.mxu0 %v398
    %448 = vmatprep.subr.mxu0 %v401
    %449 = vmatpush1.msra.mxu0 %v400
    %450 = vmatprep.subr.mxu0 %v403
    %451 = vmatpush1.msra.mxu0 %v402
    %452 = vmatprep.subr.mxu0 %v405
    %453 = vmatpush1.msra.mxu0 %v404
    %454 = vmatprep.subr.mxu0 %v407
    %455 = vmatpush1.msra.mxu0 %v406
    %456 = vmatprep.subr.mxu0 %v409
    %457 = vmatpush1.msra.mxu0 %v408
    %458 = vmatprep.subr.mxu0 %v411
    %459 = vmatpush1.msra.mxu0 %v410
    %460 = vmatprep.subr.mxu0 %v413
    %461 = vmatpush1.msra.mxu0 %v412
    %462 = vmatprep.subr.mxu0 %v415
    %463 = vmatpush1.msra.mxu0 %v414
    %464 = vmatprep.subr.mxu0 %v417
    %465 = vmatpush1.msra.mxu0 %v416
    %466 = vmatprep.subr.mxu0 0.0
    %467 = vmatpush1.msra.mxu0 0.0
    %468 = vmatprep.subr.mxu0 0.0
    %469 = vmatpush1.msra.mxu0 0.0
    %470 = vmatprep.subr.mxu0 0.0
    %471 = vmatpush1.msra.mxu0 0.0
    %472 = vmatprep.subr.mxu0 0.0
    %473 = vmatpush1.msra.mxu0 0.0
    %474 = vmatprep.subr.mxu0 0.0
    %475 = vmatpush1.msra.mxu0 0.0
    %476 = vmatprep.subr.mxu0 0.0
    %477 = vmatpush1.msra.mxu0 0.0
    %478 = vmatprep.subr.mxu0 0.0
    %479 = vmatpush1.msra.mxu0 0.0
    %480 = vmatprep.subr.mxu0 0.0
    %481 = vmatpush1.msra.mxu0 0.0
    %482 = vmatprep.subr.mxu0 0.0
    %483 = vmatpush1.msra.mxu0 0.0
    %484 = vmatprep.subr.mxu0 0.0
    %485 = vmatpush1.msra.mxu0 0.0
    %486 = vmatprep.subr.mxu0 0.0
    %487 = vmatpush1.msra.mxu0 0.0
    %488 = vmatprep.subr.mxu0 0.0
    %489 = vmatpush1.msra.mxu0 0.0
    %490 = vmatprep.subr.mxu0 0.0
    %491 = vmatpush1.msra.mxu0 0.0
    %492 = vmatprep.subr.mxu0 0.0
    %493 = vmatpush1.msra.mxu0 0.0
    %494 = vmatprep.subr.mxu0 0.0
    %495 = vmatpush1.msra.mxu0 0.0
    %496 = vmatprep.subr.mxu0 0.0
    %497 = vmatpush1.msra.mxu0 0.0
    %498 = vmatprep.subr.mxu0 0.0
    %499 = vmatpush1.msra.mxu0 0.0
    %500 = vmatprep.subr.mxu0 0.0
    %501 = vmatpush1.msra.mxu0 0.0
    %502 = vmatprep.subr.mxu0 0.0
    %503 = vmatpush1.msra.mxu0 0.0
    %504 = vmatprep.subr.mxu0 0.0
    %505 = vmatpush1.msra.mxu0 0.0
    %506 = vmatprep.mubr.f32.mxu0 0.0
    %507 = vmatmul.mubr.f32.gmra.mrb[0].mxu0 %v419
    %v508 = vpop.f32.mrb[0].mxu0
    %v509 = vadd.f32 0.0, %v508
    %v510 = vpop.f32.mrb[0].mxu0
    %v511 = vadd.f32 0.0, %v510
    %512 = vmatprep.mubr.f32.mxu0 0.0
    %513 = vmatmul.mubr.f32.gmra.mrb[0].mxu0 %v422
    %v514 = vpop.f32.mrb[0].mxu0
    %v515 = vadd.f32 0.0, %v514
    %v516 = vpop.f32.mrb[0].mxu0
    %v517 = vadd.f32 0.0, %v516
    %518 = vmatprep.mubr.f32.mxu0 0.0
    %519 = vmatmul.mubr.f32.gmra.mrb[0].mxu0 %v425
    %v520 = vpop.f32.mrb[0].mxu0
    %v521 = vadd.f32 0.0, %v520
    %v522 = vpop.f32.mrb[0].mxu0
    %v523 = vadd.f32 0.0, %v522
    %524 = vmatprep.mubr.f32.mxu0 0.0
    %525 = vmatmul.mubr.f32.gmra.mrb[0].mxu0 %v428
    %v526 = vpop.f32.mrb[0].mxu0
    %v527 = vadd.f32 0.0, %v526
    %v528 = vpop.f32.mrb[0].mxu0
    %v529 = vadd.f32 0.0, %v528
    %530 = vmatprep.mubr.f32.mxu0 0.0
    %531 = vmatmul.mubr.f32.gmra.mrb[0].mxu0 %v431
    %v532 = vpop.f32.mrb[0].mxu0
    %v533 = vadd.f32 0.0, %v532
    %v534 = vpop.f32.mrb[0].mxu0
    %v535 = vadd.f32 0.0, %v534
    %536 = vmatprep.mubr.f32.mxu0 0.0
    %537 = vmatmul.mubr.f32.gmra.mrb[0].mxu0 %v434
    %v538 = vpop.f32.mrb[0].mxu0
    %v539 = vadd.f32 0.0, %v538
    %v540 = vpop.f32.mrb[0].mxu0
    %v541 = vadd.f32 0.0, %v540
    %542 = vmatprep.mubr.f32.mxu0 0.0
    %543 = vmatmul.mubr.f32.gmra.mrb[0].mxu0 %v437
    %v544 = vpop.f32.mrb[0].mxu0
    %v545 = vadd.f32 0.0, %v544
    %v546 = vpop.f32.mrb[0].mxu0
    %v547 = vadd.f32 0.0, %v546
    %548 = vmatprep.mubr.f32.mxu0 0.0
    %549 = vmatmul.mubr.f32.gmra.mrb[0].mxu0 %v440
    %v550 = vpop.f32.mrb[0].mxu0
    %v551 = vadd.f32 0.0, %v550
    %v552 = vpop.f32.mrb[0].mxu0
    %v553 = vadd.f32 0.0, %v552
    %554 = vdwg.mxu0
    %v555 = vadd.f32 %v339, %v509
    %v556 = vadd.f32 %v341, %v511
    %v557 = vadd.f32 %v345, %v515
    %v558 = vadd.f32 %v347, %v517
    %v559 = vadd.f32 %v351, %v521
    %v560 = vadd.f32 %v353, %v523
    %v561 = vadd.f32 %v357, %v527
    %v562 = vadd.f32 %v359, %v529
    %v563 = vadd.f32 %v363, %v533
    %v564 = vadd.f32 %v365, %v535
    %v565 = vadd.f32 %v369, %v539
    %v566 = vadd.f32 %v371, %v541
    %v567 = vadd.f32 %v375, %v545
    %v568 = vadd.f32 %v377, %v547
    %v569 = vadd.f32 %v381, %v551
    %v570 = vadd.f32 %v383, %v553
    %v571 = vld [vmem:[%s0 + $0x3] sm:$0xff]
    %v572 = vld [vmem:[%s0 + $0xb] sm:$0xff]
    %v573 = vld [vmem:[%s0 + $0x13] sm:$0xff]
    %v574 = vld [vmem:[%s0 + $0x1b] sm:$0xff]
    %v575 = vld [vmem:[%s0 + $0x23] sm:$0xff]
    %v576 = vld [vmem:[%s0 + $0x2b] sm:$0xff]
    %v577 = vld [vmem:[%s0 + $0x33] sm:$0xff]
    %v578 = vld [vmem:[%s0 + $0x3b] sm:$0xf]
    %s579 = scalar_lea.vmem %s1, 576
    %v580 = vld [vmem:[%s579] sm:$0xff]
    %v581 = vld [vmem:[%s579 + $0x8] sm:$0xff]
    %v582 = vld [vmem:[%s579 + $0x10] sm:$0xff]
    %v583 = vld [vmem:[%s579 + $0x18] sm:$0xff]
    %v584 = vld [vmem:[%s579 + $0x20] sm:$0xff]
    %v585 = vld [vmem:[%s579 + $0x28] sm:$0xff]
    %v586 = vld [vmem:[%s579 + $0x30] sm:$0xff]
    %v587 = vld [vmem:[%s579 + $0x38] sm:$0xff]
    %v588 = vld [vmem:[%s579 + $0x40] sm:$0xff]
    %v589 = vld [vmem:[%s579 + $0x48] sm:$0xff]
    %v590 = vld [vmem:[%s579 + $0x50] sm:$0xff]
    %v591 = vld [vmem:[%s579 + $0x58] sm:$0xff]
    %v592 = vld [vmem:[%s579 + $0x60] sm:$0xff]
    %v593 = vld [vmem:[%s579 + $0x68] sm:$0xff]
    %v594 = vld [vmem:[%s579 + $0x70] sm:$0xff]
    %v595 = vld [vmem:[%s579 + $0x78] sm:$0xff]
    %v596 = vld [vmem:[%s579 + $0x80] sm:$0xff]
    %v597 = vld [vmem:[%s579 + $0x88] sm:$0xff]
    %v598 = vld [vmem:[%s579 + $0x90] sm:$0xff]
    %v599 = vld [vmem:[%s579 + $0x98] sm:$0xff]
    %v600 = vld [vmem:[%s579 + $0xa0] sm:$0xff]
    %v601 = vld [vmem:[%s579 + $0xa8] sm:$0xff]
    %v602 = vld [vmem:[%s579 + $0xb0] sm:$0xff]
    %v603 = vld [vmem:[%s579 + $0xb8] sm:$0xff]
    %v605 = vsel %vm110, %v571, 0
    %v608 = vsel %vm110, %v572, 0
    %v611 = vsel %vm110, %v573, 0
    %v614 = vsel %vm110, %v574, 0
    %v617 = vsel %vm110, %v575, 0
    %v620 = vsel %vm110, %v576, 0
    %v623 = vsel %vm110, %v577, 0
    %v626 = vsel %vm110, %v578, 0
    %628 = vmatprep.subr.mxu0 %v581
    %629 = vmatpush1.msra.mxu0 %v580
    %630 = vmatprep.subr.mxu0 %v583
    %631 = vmatpush1.msra.mxu0 %v582
    %632 = vmatprep.subr.mxu0 %v585
    %633 = vmatpush1.msra.mxu0 %v584
    %634 = vmatprep.subr.mxu0 %v587
    %635 = vmatpush1.msra.mxu0 %v586
    %636 = vmatprep.subr.mxu0 %v589
    %637 = vmatpush1.msra.mxu0 %v588
    %638 = vmatprep.subr.mxu0 %v591
    %639 = vmatpush1.msra.mxu0 %v590
    %640 = vmatprep.subr.mxu0 %v593
    %641 = vmatpush1.msra.mxu0 %v592
    %642 = vmatprep.subr.mxu0 %v595
    %643 = vmatpush1.msra.mxu0 %v594
    %644 = vmatprep.subr.mxu0 %v597
    %645 = vmatpush1.msra.mxu0 %v596
    %646 = vmatprep.subr.mxu0 %v599
    %647 = vmatpush1.msra.mxu0 %v598
    %648 = vmatprep.subr.mxu0 %v601
    %649 = vmatpush1.msra.mxu0 %v600
    %650 = vmatprep.subr.mxu0 %v603
    %651 = vmatpush1.msra.mxu0 %v602
    %652 = vmatprep.subr.mxu0 0.0
    %653 = vmatpush1.msra.mxu0 0.0
    %654 = vmatprep.subr.mxu0 0.0
    %655 = vmatpush1.msra.mxu0 0.0
    %656 = vmatprep.subr.mxu0 0.0
    %657 = vmatpush1.msra.mxu0 0.0
    %658 = vmatprep.subr.mxu0 0.0
    %659 = vmatpush1.msra.mxu0 0.0
    %660 = vmatprep.subr.mxu0 0.0
    %661 = vmatpush1.msra.mxu0 0.0
    %662 = vmatprep.subr.mxu0 0.0
    %663 = vmatpush1.msra.mxu0 0.0
    %664 = vmatprep.subr.mxu0 0.0
    %665 = vmatpush1.msra.mxu0 0.0
    %666 = vmatprep.subr.mxu0 0.0
    %667 = vmatpush1.msra.mxu0 0.0
    %668 = vmatprep.subr.mxu0 0.0
    %669 = vmatpush1.msra.mxu0 0.0
    %670 = vmatprep.subr.mxu0 0.0
    %671 = vmatpush1.msra.mxu0 0.0
    %672 = vmatprep.subr.mxu0 0.0
    %673 = vmatpush1.msra.mxu0 0.0
    %674 = vmatprep.subr.mxu0 0.0
    %675 = vmatpush1.msra.mxu0 0.0
    %676 = vmatprep.subr.mxu0 0.0
    %677 = vmatpush1.msra.mxu0 0.0
    %678 = vmatprep.subr.mxu0 0.0
    %679 = vmatpush1.msra.mxu0 0.0
    %680 = vmatprep.subr.mxu0 0.0
    %681 = vmatpush1.msra.mxu0 0.0
    %682 = vmatprep.subr.mxu0 0.0
    %683 = vmatpush1.msra.mxu0 0.0
    %684 = vmatprep.subr.mxu0 0.0
    %685 = vmatpush1.msra.mxu0 0.0
    %686 = vmatprep.subr.mxu0 0.0
    %687 = vmatpush1.msra.mxu0 0.0
    %688 = vmatprep.subr.mxu0 0.0
    %689 = vmatpush1.msra.mxu0 0.0
    %690 = vmatprep.subr.mxu0 0.0
    %691 = vmatpush1.msra.mxu0 0.0
    %692 = vmatprep.mubr.f32.mxu0 0.0
    %693 = vmatmul.mubr.f32.gmra.mrb[0].mxu0 %v605
    %v694 = vpop.f32.mrb[0].mxu0
    %v695 = vadd.f32 0.0, %v694
    %v696 = vpop.f32.mrb[0].mxu0
    %v697 = vadd.f32 0.0, %v696
    %698 = vmatprep.mubr.f32.mxu0 0.0
    %699 = vmatmul.mubr.f32.gmra.mrb[0].mxu0 %v608
    %v700 = vpop.f32.mrb[0].mxu0
    %v701 = vadd.f32 0.0, %v700
    %v702 = vpop.f32.mrb[0].mxu0
    %v703 = vadd.f32 0.0, %v702
    %704 = vmatprep.mubr.f32.mxu0 0.0
    %705 = vmatmul.mubr.f32.gmra.mrb[0].mxu0 %v611
    %v706 = vpop.f32.mrb[0].mxu0
    %v707 = vadd.f32 0.0, %v706
    %v708 = vpop.f32.mrb[0].mxu0
    %v709 = vadd.f32 0.0, %v708
    %710 = vmatprep.mubr.f32.mxu0 0.0
    %711 = vmatmul.mubr.f32.gmra.mrb[0].mxu0 %v614
    %v712 = vpop.f32.mrb[0].mxu0
    %v713 = vadd.f32 0.0, %v712
    %v714 = vpop.f32.mrb[0].mxu0
    %v715 = vadd.f32 0.0, %v714
    %716 = vmatprep.mubr.f32.mxu0 0.0
    %717 = vmatmul.mubr.f32.gmra.mrb[0].mxu0 %v617
    %v718 = vpop.f32.mrb[0].mxu0
    %v719 = vadd.f32 0.0, %v718
    %v720 = vpop.f32.mrb[0].mxu0
    %v721 = vadd.f32 0.0, %v720
    %722 = vmatprep.mubr.f32.mxu0 0.0
    %723 = vmatmul.mubr.f32.gmra.mrb[0].mxu0 %v620
    %v724 = vpop.f32.mrb[0].mxu0
    %v725 = vadd.f32 0.0, %v724
    %v726 = vpop.f32.mrb[0].mxu0
    %v727 = vadd.f32 0.0, %v726
    %728 = vmatprep.mubr.f32.mxu0 0.0
    %729 = vmatmul.mubr.f32.gmra.mrb[0].mxu0 %v623
    %v730 = vpop.f32.mrb[0].mxu0
    %v731 = vadd.f32 0.0, %v730
    %v732 = vpop.f32.mrb[0].mxu0
    %v733 = vadd.f32 0.0, %v732
    %734 = vmatprep.mubr.f32.mxu0 0.0
    %735 = vmatmul.mubr.f32.gmra.mrb[0].mxu0 %v626
    %v736 = vpop.f32.mrb[0].mxu0
    %v737 = vadd.f32 0.0, %v736
    %v738 = vpop.f32.mrb[0].mxu0
    %v739 = vadd.f32 0.0, %v738
    %740 = vdwg.mxu0
    %v741 = vadd.f32 %v555, %v695
    %v742 = vadd.f32 %v556, %v697
    %v743 = vadd.f32 %v557, %v701
    %v744 = vadd.f32 %v558, %v703
    %v745 = vadd.f32 %v559, %v707
    %v746 = vadd.f32 %v560, %v709
    %v747 = vadd.f32 %v561, %v713
    %v748 = vadd.f32 %v562, %v715
    %v749 = vadd.f32 %v563, %v719
    %v750 = vadd.f32 %v564, %v721
    %v751 = vadd.f32 %v565, %v725
    %v752 = vadd.f32 %v566, %v727
    %v753 = vadd.f32 %v567, %v731
    %v754 = vadd.f32 %v568, %v733
    %v755 = vadd.f32 %v569, %v737
    %v756 = vadd.f32 %v570, %v739
    %v757 = vld [vmem:[%s0 + $0x4] sm:$0xff]
    %v758 = vld [vmem:[%s0 + $0xc] sm:$0xff]
    %v759 = vld [vmem:[%s0 + $0x14] sm:$0xff]
    %v760 = vld [vmem:[%s0 + $0x1c] sm:$0xff]
    %v761 = vld [vmem:[%s0 + $0x24] sm:$0xff]
    %v762 = vld [vmem:[%s0 + $0x2c] sm:$0xff]
    %v763 = vld [vmem:[%s0 + $0x34] sm:$0xff]
    %v764 = vld [vmem:[%s0 + $0x3c] sm:$0xf]
    %s765 = scalar_lea.vmem %s1, 768
    %v766 = vld [vmem:[%s765] sm:$0xff]
    %v767 = vld [vmem:[%s765 + $0x8] sm:$0xff]
    %v768 = vld [vmem:[%s765 + $0x10] sm:$0xff]
    %v769 = vld [vmem:[%s765 + $0x18] sm:$0xff]
    %v770 = vld [vmem:[%s765 + $0x20] sm:$0xff]
    %v771 = vld [vmem:[%s765 + $0x28] sm:$0xff]
    %v772 = vld [vmem:[%s765 + $0x30] sm:$0xff]
    %v773 = vld [vmem:[%s765 + $0x38] sm:$0xff]
    %v774 = vld [vmem:[%s765 + $0x40] sm:$0xff]
    %v775 = vld [vmem:[%s765 + $0x48] sm:$0xff]
    %v776 = vld [vmem:[%s765 + $0x50] sm:$0xff]
    %v777 = vld [vmem:[%s765 + $0x58] sm:$0xff]
    %v778 = vld [vmem:[%s765 + $0x60] sm:$0xff]
    %v779 = vld [vmem:[%s765 + $0x68] sm:$0xff]
    %v780 = vld [vmem:[%s765 + $0x70] sm:$0xff]
    %v781 = vld [vmem:[%s765 + $0x78] sm:$0xff]
    %v782 = vld [vmem:[%s765 + $0x80] sm:$0xff]
    %v783 = vld [vmem:[%s765 + $0x88] sm:$0xff]
    %v784 = vld [vmem:[%s765 + $0x90] sm:$0xff]
    %v785 = vld [vmem:[%s765 + $0x98] sm:$0xff]
    %v786 = vld [vmem:[%s765 + $0xa0] sm:$0xff]
    %v787 = vld [vmem:[%s765 + $0xa8] sm:$0xff]
    %v788 = vld [vmem:[%s765 + $0xb0] sm:$0xff]
    %v789 = vld [vmem:[%s765 + $0xb8] sm:$0xff]
    %v791 = vsel %vm110, %v757, 0
    %v794 = vsel %vm110, %v758, 0
    %v797 = vsel %vm110, %v759, 0
    %v800 = vsel %vm110, %v760, 0
    %v803 = vsel %vm110, %v761, 0
    %v806 = vsel %vm110, %v762, 0
    %v809 = vsel %vm110, %v763, 0
    %v812 = vsel %vm110, %v764, 0
    %814 = vmatprep.subr.mxu0 %v767
    %815 = vmatpush1.msra.mxu0 %v766
    %816 = vmatprep.subr.mxu0 %v769
    %817 = vmatpush1.msra.mxu0 %v768
    %818 = vmatprep.subr.mxu0 %v771
    %819 = vmatpush1.msra.mxu0 %v770
    %820 = vmatprep.subr.mxu0 %v773
    %821 = vmatpush1.msra.mxu0 %v772
    %822 = vmatprep.subr.mxu0 %v775
    %823 = vmatpush1.msra.mxu0 %v774
    %824 = vmatprep.subr.mxu0 %v777
    %825 = vmatpush1.msra.mxu0 %v776
    %826 = vmatprep.subr.mxu0 %v779
    %827 = vmatpush1.msra.mxu0 %v778
    %828 = vmatprep.subr.mxu0 %v781
    %829 = vmatpush1.msra.mxu0 %v780
    %830 = vmatprep.subr.mxu0 %v783
    %831 = vmatpush1.msra.mxu0 %v782
    %832 = vmatprep.subr.mxu0 %v785
    %833 = vmatpush1.msra.mxu0 %v784
    %834 = vmatprep.subr.mxu0 %v787
    %835 = vmatpush1.msra.mxu0 %v786
    %836 = vmatprep.subr.mxu0 %v789
    %837 = vmatpush1.msra.mxu0 %v788
    %838 = vmatprep.subr.mxu0 0.0
    %839 = vmatpush1.msra.mxu0 0.0
    %840 = vmatprep.subr.mxu0 0.0
    %841 = vmatpush1.msra.mxu0 0.0
    %842 = vmatprep.subr.mxu0 0.0
    %843 = vmatpush1.msra.mxu0 0.0
    %844 = vmatprep.subr.mxu0 0.0
    %845 = vmatpush1.msra.mxu0 0.0
    %846 = vmatprep.subr.mxu0 0.0
    %847 = vmatpush1.msra.mxu0 0.0
    %848 = vmatprep.subr.mxu0 0.0
    %849 = vmatpush1.msra.mxu0 0.0
    %850 = vmatprep.subr.mxu0 0.0
    %851 = vmatpush1.msra.mxu0 0.0
    %852 = vmatprep.subr.mxu0 0.0
    %853 = vmatpush1.msra.mxu0 0.0
    %854 = vmatprep.subr.mxu0 0.0
    %855 = vmatpush1.msra.mxu0 0.0
    %856 = vmatprep.subr.mxu0 0.0
    %857 = vmatpush1.msra.mxu0 0.0
    %858 = vmatprep.subr.mxu0 0.0
    %859 = vmatpush1.msra.mxu0 0.0
    %860 = vmatprep.subr.mxu0 0.0
    %861 = vmatpush1.msra.mxu0 0.0
    %862 = vmatprep.subr.mxu0 0.0
    %863 = vmatpush1.msra.mxu0 0.0
    %864 = vmatprep.subr.mxu0 0.0
    %865 = vmatpush1.msra.mxu0 0.0
    %866 = vmatprep.subr.mxu0 0.0
    %867 = vmatpush1.msra.mxu0 0.0
    %868 = vmatprep.subr.mxu0 0.0
    %869 = vmatpush1.msra.mxu0 0.0
    %870 = vmatprep.subr.mxu0 0.0
    %871 = vmatpush1.msra.mxu0 0.0
    %872 = vmatprep.subr.mxu0 0.0
    %873 = vmatpush1.msra.mxu0 0.0
    %874 = vmatprep.subr.mxu0 0.0
    %875 = vmatpush1.msra.mxu0 0.0
    %876 = vmatprep.subr.mxu0 0.0
    %877 = vmatpush1.msra.mxu0 0.0
    %878 = vmatprep.mubr.f32.mxu0 0.0
    %879 = vmatmul.mubr.f32.gmra.mrb[0].mxu0 %v791
    %v880 = vpop.f32.mrb[0].mxu0
    %v881 = vadd.f32 0.0, %v880
    %v882 = vpop.f32.mrb[0].mxu0
    %v883 = vadd.f32 0.0, %v882
    %884 = vmatprep.mubr.f32.mxu0 0.0
    %885 = vmatmul.mubr.f32.gmra.mrb[0].mxu0 %v794
    %v886 = vpop.f32.mrb[0].mxu0
    %v887 = vadd.f32 0.0, %v886
    %v888 = vpop.f32.mrb[0].mxu0
    %v889 = vadd.f32 0.0, %v888
    %890 = vmatprep.mubr.f32.mxu0 0.0
    %891 = vmatmul.mubr.f32.gmra.mrb[0].mxu0 %v797
    %v892 = vpop.f32.mrb[0].mxu0
    %v893 = vadd.f32 0.0, %v892
    %v894 = vpop.f32.mrb[0].mxu0
    %v895 = vadd.f32 0.0, %v894
    %896 = vmatprep.mubr.f32.mxu0 0.0
    %897 = vmatmul.mubr.f32.gmra.mrb[0].mxu0 %v800
    %v898 = vpop.f32.mrb[0].mxu0
    %v899 = vadd.f32 0.0, %v898
    %v900 = vpop.f32.mrb[0].mxu0
    %v901 = vadd.f32 0.0, %v900
    %902 = vmatprep.mubr.f32.mxu0 0.0
    %903 = vmatmul.mubr.f32.gmra.mrb[0].mxu0 %v803
    %v904 = vpop.f32.mrb[0].mxu0
    %v905 = vadd.f32 0.0, %v904
    %v906 = vpop.f32.mrb[0].mxu0
    %v907 = vadd.f32 0.0, %v906
    %908 = vmatprep.mubr.f32.mxu0 0.0
    %909 = vmatmul.mubr.f32.gmra.mrb[0].mxu0 %v806
    %v910 = vpop.f32.mrb[0].mxu0
    %v911 = vadd.f32 0.0, %v910
    %v912 = vpop.f32.mrb[0].mxu0
    %v913 = vadd.f32 0.0, %v912
    %914 = vmatprep.mubr.f32.mxu0 0.0
    %915 = vmatmul.mubr.f32.gmra.mrb[0].mxu0 %v809
    %v916 = vpop.f32.mrb[0].mxu0
    %v917 = vadd.f32 0.0, %v916
    %v918 = vpop.f32.mrb[0].mxu0
    %v919 = vadd.f32 0.0, %v918
    %920 = vmatprep.mubr.f32.mxu0 0.0
    %921 = vmatmul.mubr.f32.gmra.mrb[0].mxu0 %v812
    %v922 = vpop.f32.mrb[0].mxu0
    %v923 = vadd.f32 0.0, %v922
    %v924 = vpop.f32.mrb[0].mxu0
    %v925 = vadd.f32 0.0, %v924
    %926 = vdwg.mxu0
    %v927 = vadd.f32 %v741, %v881
    %v928 = vadd.f32 %v742, %v883
    %v929 = vadd.f32 %v743, %v887
    %v930 = vadd.f32 %v744, %v889
    %v931 = vadd.f32 %v745, %v893
    %v932 = vadd.f32 %v746, %v895
    %v933 = vadd.f32 %v747, %v899
    %v934 = vadd.f32 %v748, %v901
    %v935 = vadd.f32 %v749, %v905
    %v936 = vadd.f32 %v750, %v907
    %v937 = vadd.f32 %v751, %v911
    %v938 = vadd.f32 %v752, %v913
    %v939 = vadd.f32 %v753, %v917
    %v940 = vadd.f32 %v754, %v919
    %v941 = vadd.f32 %v755, %v923
    %v942 = vadd.f32 %v756, %v925
    %v943 = vld [vmem:[%s2] sm:$0x3]
    %v945 = vlaneseq
    %v946 = vshrl.u32 %v945, 7
    %v947 = vsub.s32 0, %v946
    %v948 = vrot.slane %v943, %v947
    %v949 = vlaneseq
    %v950 = vshrl.u32 %v949, 7
    %v951 = vsub.s32 1, %v950
    %v952 = vrot.slane %v943, %v951
    %v955 = vadd.f32 %v927, %v948
    %v956 = vadd.f32 %v928, %v952
    %v957 = vadd.f32 %v929, %v948
    %v958 = vadd.f32 %v930, %v952
    %v959 = vadd.f32 %v931, %v948
    %v960 = vadd.f32 %v932, %v952
    %v961 = vadd.f32 %v933, %v948
    %v962 = vadd.f32 %v934, %v952
    %v963 = vadd.f32 %v935, %v948
    %v964 = vadd.f32 %v936, %v952
    %v965 = vadd.f32 %v937, %v948
    %v966 = vadd.f32 %v938, %v952
    %v967 = vadd.f32 %v939, %v948
    %v968 = vadd.f32 %v940, %v952
    %v969 = vadd.f32 %v941, %v948
    %v970 = vadd.f32 %v942, %v952
    %v971 = vmax.f32 %v955, 0.0
    %v972 = vmax.f32 %v956, 0.0
    %v973 = vmax.f32 %v957, 0.0
    %v974 = vmax.f32 %v958, 0.0
    %v975 = vmax.f32 %v959, 0.0
    %v976 = vmax.f32 %v960, 0.0
    %v977 = vmax.f32 %v961, 0.0
    %v978 = vmax.f32 %v962, 0.0
    %v979 = vmax.f32 %v963, 0.0
    %v980 = vmax.f32 %v964, 0.0
    %v981 = vmax.f32 %v965, 0.0
    %v982 = vmax.f32 %v966, 0.0
    %v983 = vmax.f32 %v967, 0.0
    %v984 = vmax.f32 %v968, 0.0
    %v985 = vmax.f32 %v969, 0.0
    %v986 = vmax.f32 %v970, 0.0
    %1003 = vrot.lane.b32.xlu0 %v971, 122
    %v1004 = vpop.permute.xlu0 %1003
    %1005 = vrot.lane.b32.xlu0 %v972, 122
    %v1006 = vpop.permute.xlu0 %1005
    %1007 = vrot.lane.b32.xlu0 %v973, 122
    %v1008 = vpop.permute.xlu0 %1007
    %1009 = vrot.lane.b32.xlu0 %v974, 122
    %v1010 = vpop.permute.xlu0 %1009
    %1011 = vrot.lane.b32.xlu0 %v975, 122
    %v1012 = vpop.permute.xlu0 %1011
    %1013 = vrot.lane.b32.xlu0 %v976, 122
    %v1014 = vpop.permute.xlu0 %1013
    %1015 = vrot.lane.b32.xlu0 %v977, 122
    %v1016 = vpop.permute.xlu0 %1015
    %1017 = vrot.lane.b32.xlu0 %v978, 122
    %v1018 = vpop.permute.xlu0 %1017
    %1019 = vrot.lane.b32.xlu0 %v979, 122
    %v1020 = vpop.permute.xlu0 %1019
    %1021 = vrot.lane.b32.xlu0 %v980, 122
    %v1022 = vpop.permute.xlu0 %1021
    %1023 = vrot.lane.b32.xlu0 %v981, 122
    %v1024 = vpop.permute.xlu0 %1023
    %1025 = vrot.lane.b32.xlu0 %v982, 122
    %v1026 = vpop.permute.xlu0 %1025
    %1027 = vrot.lane.b32.xlu0 %v983, 122
    %v1028 = vpop.permute.xlu0 %1027
    %1029 = vrot.lane.b32.xlu0 %v984, 122
    %v1030 = vpop.permute.xlu0 %1029
    %1031 = vrot.lane.b32.xlu0 %v985, 122
    %v1032 = vpop.permute.xlu0 %1031
    %1033 = vrot.lane.b32.xlu0 %v986, 122
    %v1034 = vpop.permute.xlu0 %1033
    %vm1035 = vcmask 998400
    %v1036 = vsel %vm1035, %v1004, %v1006
    %v1037 = vsel %vm1035, %v1008, %v1010
    %v1038 = vsel %vm1035, %v1012, %v1014
    %v1039 = vsel %vm1035, %v1016, %v1018
    %v1040 = vsel %vm1035, %v1020, %v1022
    %v1041 = vsel %vm1035, %v1024, %v1026
    %v1042 = vsel %vm1035, %v1028, %v1030
    %v1043 = vsel %vm1035, %v1032, %v1034
    %v1060 = vmax.f32 %v971, %v1036
    %v1061 = vmax.f32 %v972, %v1006
    %v1062 = vmax.f32 %v973, %v1037
    %v1063 = vmax.f32 %v974, %v1010
    %v1064 = vmax.f32 %v975, %v1038
    %v1065 = vmax.f32 %v976, %v1014
    %v1066 = vmax.f32 %v977, %v1039
    %v1067 = vmax.f32 %v978, %v1018
    %v1068 = vmax.f32 %v979, %v1040
    %v1069 = vmax.f32 %v980, %v1022
    %v1070 = vmax.f32 %v981, %v1041
    %v1071 = vmax.f32 %v982, %v1026
    %v1072 = vmax.f32 %v983, %v1042
    %v1073 = vmax.f32 %v984, %v1030
    %v1074 = vmax.f32 %v985, %v1043
    %v1075 = vmax.f32 %v986, %v1034
    %vm1092 = vcmask 1046528
    %v1093 = vrot.slane %v1060, 1
    %v1094 = vrot.slane %v1062, 1
    %v1095 = vsel %vm1092, %v1093, %v1094
    %v1096 = vrot.slane %v1061, 1
    %v1097 = vrot.slane %v1063, 1
    %v1098 = vsel %vm1092, %v1096, %v1097
    %v1099 = vrot.slane %v1064, 1
    %v1100 = vsel %vm1092, %v1094, %v1099
    %v1101 = vrot.slane %v1065, 1
    %v1102 = vsel %vm1092, %v1097, %v1101
    %v1103 = vrot.slane %v1066, 1
    %v1104 = vsel %vm1092, %v1099, %v1103
    %v1105 = vrot.slane %v1067, 1
    %v1106 = vsel %vm1092, %v1101, %v1105
    %v1107 = vrot.slane %v1068, 1
    %v1108 = vsel %vm1092, %v1103, %v1107
    %v1109 = vrot.slane %v1069, 1
    %v1110 = vsel %vm1092, %v1105, %v1109
    %v1111 = vrot.slane %v1070, 1
    %v1112 = vsel %vm1092, %v1107, %v1111
    %v1113 = vrot.slane %v1071, 1
    %v1114 = vsel %vm1092, %v1109, %v1113
    %v1115 = vrot.slane %v1072, 1
    %v1116 = vsel %vm1092, %v1111, %v1115
    %v1117 = vrot.slane %v1073, 1
    %v1118 = vsel %vm1092, %v1113, %v1117
    %v1119 = vrot.slane %v1074, 1
    %v1120 = vsel %vm1092, %v1115, %v1119
    %v1121 = vrot.slane %v1075, 1
    %v1122 = vsel %vm1092, %v1117, %v1121
    %v1139 = vmax.f32 %v1060, %v1095
    %v1140 = vmax.f32 %v1061, %v1098
    %v1141 = vmax.f32 %v1062, %v1100
    %v1142 = vmax.f32 %v1063, %v1102
    %v1143 = vmax.f32 %v1064, %v1104
    %v1144 = vmax.f32 %v1065, %v1106
    %v1145 = vmax.f32 %v1066, %v1108
    %v1146 = vmax.f32 %v1067, %v1110
    %v1147 = vmax.f32 %v1068, %v1112
    %v1148 = vmax.f32 %v1069, %v1114
    %v1149 = vmax.f32 %v1070, %v1116
    %v1150 = vmax.f32 %v1071, %v1118
    %v1151 = vmax.f32 %v1072, %v1120
    %v1152 = vmax.f32 %v1073, %v1122
    %v1153 = vmax.f32 %v1074, %v1119
    %v1154 = vmax.f32 %v1075, %v1121
    %v1155 = vld [vmem:[%s3] sm:$0xff]
    %v1156 = vld [vmem:[%s3 + $0x8] sm:$0xff]
    %v1157 = vld [vmem:[%s3 + $0x10] sm:$0xff]
    %v1158 = vld [vmem:[%s3 + $0x18] sm:$0xf]
    %vm1159 = vcmask 482304
    %v1161 = vsel %vm1159, %v1155, 0
    %v1164 = vsel %vm1159, %v1156, 0
    %v1167 = vsel %vm1159, %v1157, 0
    %v1170 = vsel %vm1159, %v1158, 0
    %vm1172 = vcmask 1042432
    %v1174 = vsel %vm1172, %v1153, 0
    %v1177 = vsel %vm1172, %v1154, 0
    %1179 = vmatprep.subr.mxu0 %v1140
    %1180 = vmatpush1.msra.mxu0 %v1139
    %1181 = vmatprep.subr.mxu0 %v1142
    %1182 = vmatpush1.msra.mxu0 %v1141
    %1183 = vmatprep.subr.mxu0 %v1144
    %1184 = vmatpush1.msra.mxu0 %v1143
    %1185 = vmatprep.subr.mxu0 %v1146
    %1186 = vmatpush1.msra.mxu0 %v1145
    %1187 = vmatprep.subr.mxu0 %v1148
    %1188 = vmatpush1.msra.mxu0 %v1147
    %1189 = vmatprep.subr.mxu0 %v1150
    %1190 = vmatpush1.msra.mxu0 %v1149
    %1191 = vmatprep.subr.mxu0 %v1152
    %1192 = vmatpush1.msra.mxu0 %v1151
    %1193 = vmatprep.subr.mxu0 %v1177
    %1194 = vmatpush1.msra.mxu0 %v1174
    %1195 = vmatprep.subr.mxu0 0.0
    %1196 = vmatpush1.msra.mxu0 0.0
    %1197 = vmatprep.subr.mxu0 0.0
    %1198 = vmatpush1.msra.mxu0 0.0
    %1199 = vmatprep.subr.mxu0 0.0
    %1200 = vmatpush1.msra.mxu0 0.0
    %1201 = vmatprep.subr.mxu0 0.0
    %1202 = vmatpush1.msra.mxu0 0.0
    %1203 = vmatprep.subr.mxu0 0.0
    %1204 = vmatpush1.msra.mxu0 0.0
    %1205 = vmatprep.subr.mxu0 0.0
    %1206 = vmatpush1.msra.mxu0 0.0
    %1207 = vmatprep.subr.mxu0 0.0
    %1208 = vmatpush1.msra.mxu0 0.0
    %1209 = vmatprep.subr.mxu0 0.0
    %1210 = vmatpush1.msra.mxu0 0.0
    %1211 = vmatprep.subr.mxu0 0.0
    %1212 = vmatpush1.msra.mxu0 0.0
    %1213 = vmatprep.subr.mxu0 0.0
    %1214 = vmatpush1.msra.mxu0 0.0
    %1215 = vmatprep.subr.mxu0 0.0
    %1216 = vmatpush1.msra.mxu0 0.0
    %1217 = vmatprep.subr.mxu0 0.0
    %1218 = vmatpush1.msra.mxu0 0.0
    %1219 = vmatprep.subr.mxu0 0.0
    %1220 = vmatpush1.msra.mxu0 0.0
    %1221 = vmatprep.subr.mxu0 0.0
    %1222 = vmatpush1.msra.mxu0 0.0
    %1223 = vmatprep.subr.mxu0 0.0
    %1224 = vmatpush1.msra.mxu0 0.0
    %1225 = vmatprep.subr.mxu0 0.0
    %1226 = vmatpush1.msra.mxu0 0.0
    %1227 = vmatprep.subr.mxu0 0.0
    %1228 = vmatpush1.msra.mxu0 0.0
    %1229 = vmatprep.subr.mxu0 0.0
    %1230 = vmatpush1.msra.mxu0 0.0
    %1231 = vmatprep.subr.mxu0 0.0
    %1232 = vmatpush1.msra.mxu0 0.0
    %1233 = vmatprep.subr.mxu0 0.0
    %1234 = vmatpush1.msra.mxu0 0.0
    %1235 = vmatprep.subr.mxu0 0.0
    %1236 = vmatpush1.msra.mxu0 0.0
    %1237 = vmatprep.subr.mxu0 0.0
    %1238 = vmatpush1.msra.mxu0 0.0
    %1239 = vmatprep.subr.mxu0 0.0
    %1240 = vmatpush1.msra.mxu0 0.0
    %1241 = vmatprep.subr.mxu0 0.0
    %1242 = vmatpush1.msra.mxu0 0.0
    %1243 = vmatprep.mubr.f32.mxu0 0.0
    %1244 = vmatmul.mubr.f32.gmra.mrb[0].mxu0 %v1161
    %v1245 = vpop.f32.mrb[0].mxu0
    %v1246 = vadd.f32 0.0, %v1245
    %v1247 = vpop.f32.mrb[0].mxu0
    %v1248 = vadd.f32 0.0, %v1247
    %1249 = vmatprep.mubr.f32.mxu0 0.0
    %1250 = vmatmul.mubr.f32.gmra.mrb[0].mxu0 %v1164
    %v1251 = vpop.f32.mrb[0].mxu0
    %v1252 = vadd.f32 0.0, %v1251
    %v1253 = vpop.f32.mrb[0].mxu0
    %v1254 = vadd.f32 0.0, %v1253
    %1255 = vmatprep.mubr.f32.mxu0 0.0
    %1256 = vmatmul.mubr.f32.gmra.mrb[0].mxu0 %v1167
    %v1257 = vpop.f32.mrb[0].mxu0
    %v1258 = vadd.f32 0.0, %v1257
    %v1259 = vpop.f32.mrb[0].mxu0
    %v1260 = vadd.f32 0.0, %v1259
    %1261 = vmatprep.mubr.f32.mxu0 0.0
    %1262 = vmatmul.mubr.f32.gmra.mrb[0].mxu0 %v1170
    %v1263 = vpop.f32.mrb[0].mxu0
    %v1264 = vadd.f32 0.0, %v1263
    %v1265 = vpop.f32.mrb[0].mxu0
    %v1266 = vadd.f32 0.0, %v1265
    %1267 = vdwg.mxu0
    %v1268 = vld [vmem:[%s4] sm:$0xff]
    %v1269 = vld [vmem:[%s4 + $0x8] sm:$0xff]
    %v1270 = vld [vmem:[%s4 + $0x10] sm:$0xff]
    %v1271 = vld [vmem:[%s4 + $0x18] sm:$0xff]
    %v1272 = vld [vmem:[%s4 + $0x20] sm:$0xff]
    %v1273 = vld [vmem:[%s4 + $0x28] sm:$0xff]
    %v1274 = vld [vmem:[%s4 + $0x30] sm:$0xff]
    %v1275 = vld [vmem:[%s4 + $0x38] sm:$0xff]
    %v1276 = vld [vmem:[%s4 + $0x40] sm:$0xff]
    %v1277 = vld [vmem:[%s4 + $0x48] sm:$0xff]
    %v1278 = vld [vmem:[%s4 + $0x50] sm:$0xff]
    %v1279 = vld [vmem:[%s4 + $0x58] sm:$0xff]
    %v1280 = vld [vmem:[%s4 + $0x60] sm:$0xff]
    %v1281 = vld [vmem:[%s4 + $0x68] sm:$0xff]
    %v1282 = vld [vmem:[%s4 + $0x70] sm:$0xff]
    %v1283 = vld [vmem:[%s4 + $0x78] sm:$0xff]
    %v1284 = vld [vmem:[%s4 + $0x80] sm:$0xff]
    %v1285 = vld [vmem:[%s4 + $0x88] sm:$0xff]
    %v1286 = vld [vmem:[%s4 + $0x90] sm:$0xff]
    %v1287 = vld [vmem:[%s4 + $0x98] sm:$0xff]
    %v1288 = vld [vmem:[%s4 + $0xa0] sm:$0xff]
    %v1289 = vld [vmem:[%s4 + $0xa8] sm:$0xff]
    %v1290 = vld [vmem:[%s4 + $0xb0] sm:$0xff]
    %v1291 = vld [vmem:[%s4 + $0xb8] sm:$0xff]
    %v1292 = vld [vmem:[%s4 + $0xc0] sm:$0xff]
    %v1293 = vld [vmem:[%s4 + $0xc8] sm:$0xff]
    %v1294 = vld [vmem:[%s4 + $0xd0] sm:$0xff]
    %v1295 = vld [vmem:[%s4 + $0xd8] sm:$0xff]
    %v1296 = vld [vmem:[%s4 + $0xe0] sm:$0xff]
    %v1297 = vld [vmem:[%s4 + $0xe8] sm:$0xff]
    %v1298 = vld [vmem:[%s4 + $0xf0] sm:$0xff]
    %v1299 = vld [vmem:[%s4 + $0xf8] sm:$0xff]
    %v1300 = vld [vmem:[%s4 + $0x100] sm:$0xff]
    %v1301 = vld [vmem:[%s4 + $0x108] sm:$0xff]
    %v1302 = vld [vmem:[%s4 + $0x110] sm:$0xff]
    %v1303 = vld [vmem:[%s4 + $0x118] sm:$0xff]
    %v1304 = vld [vmem:[%s4 + $0x120] sm:$0xff]
    %v1305 = vld [vmem:[%s4 + $0x128] sm:$0xff]
    %v1306 = vld [vmem:[%s4 + $0x130] sm:$0xff]
    %v1307 = vld [vmem:[%s4 + $0x138] sm:$0xff]
    %v1308 = vld [vmem:[%s4 + $0x140] sm:$0x3]
    %v1309 = vld [vmem:[%s4 + $0x148] sm:$0x3]
    %s1310 = scalar_lea.vmem %s4, 336
    %v1311 = vld [vmem:[%s1310] sm:$0xff]
    %v1312 = vld [vmem:[%s1310 + $0x8] sm:$0xff]
    %v1313 = vld [vmem:[%s1310 + $0x10] sm:$0xff]
    %v1314 = vld [vmem:[%s1310 + $0x18] sm:$0xff]
    %v1315 = vld [vmem:[%s1310 + $0x20] sm:$0xff]
    %v1316 = vld [vmem:[%s1310 + $0x28] sm:$0xff]
    %v1317 = vld [vmem:[%s1310 + $0x30] sm:$0xff]
    %v1318 = vld [vmem:[%s1310 + $0x38] sm:$0xff]
    %v1319 = vld [vmem:[%s1310 + $0x40] sm:$0xff]
    %v1320 = vld [vmem:[%s1310 + $0x48] sm:$0xff]
    %v1321 = vld [vmem:[%s1310 + $0x50] sm:$0xff]
    %v1322 = vld [vmem:[%s1310 + $0x58] sm:$0xff]
    %v1323 = vld [vmem:[%s1310 + $0x60] sm:$0xff]
    %v1324 = vld [vmem:[%s1310 + $0x68] sm:$0xff]
    %v1325 = vld [vmem:[%s1310 + $0x70] sm:$0xff]
    %v1326 = vld [vmem:[%s1310 + $0x78] sm:$0xff]
    %v1327 = vld [vmem:[%s1310 + $0x80] sm:$0xff]
    %v1328 = vld [vmem:[%s1310 + $0x88] sm:$0xff]
    %v1329 = vld [vmem:[%s1310 + $0x90] sm:$0xff]
    %v1330 = vld [vmem:[%s1310 + $0x98] sm:$0xff]
    %v1331 = vld [vmem:[%s1310 + $0xa0] sm:$0xff]
    %v1332 = vld [vmem:[%s1310 + $0xa8] sm:$0xff]
    %v1333 = vld [vmem:[%s1310 + $0xb0] sm:$0xff]
    %v1334 = vld [vmem:[%s1310 + $0xb8] sm:$0xff]
    %v1335 = vld [vmem:[%s1310 + $0xc0] sm:$0xff]
    %v1336 = vld [vmem:[%s1310 + $0xc8] sm:$0xff]
    %v1337 = vld [vmem:[%s1310 + $0xd0] sm:$0xff]
    %v1338 = vld [vmem:[%s1310 + $0xd8] sm:$0xff]
    %v1339 = vld [vmem:[%s1310 + $0xe0] sm:$0xff]
    %v1340 = vld [vmem:[%s1310 + $0xe8] sm:$0xff]
    %v1341 = vld [vmem:[%s1310 + $0xf0] sm:$0xff]
    %v1342 = vld [vmem:[%s1310 + $0xf8] sm:$0xff]
    %v1343 = vld [vmem:[%s1310 + $0x100] sm:$0xff]
    %v1344 = vld [vmem:[%s1310 + $0x108] sm:$0xff]
    %v1345 = vld [vmem:[%s1310 + $0x110] sm:$0xff]
    %v1346 = vld [vmem:[%s1310 + $0x118] sm:$0xff]
    %v1347 = vld [vmem:[%s1310 + $0x120] sm:$0xff]
    %v1348 = vld [vmem:[%s1310 + $0x128] sm:$0xff]
    %v1349 = vld [vmem:[%s1310 + $0x130] sm:$0xff]
    %v1350 = vld [vmem:[%s1310 + $0x138] sm:$0xff]
    %v1351 = vld [vmem:[%s1310 + $0x140] sm:$0x3]
    %v1352 = vld [vmem:[%s1310 + $0x148] sm:$0x3]
    %v1361 = vrot.slane %v1246, 1
    %v1362 = vrot.slane %v1252, 1
    %v1363 = vsel %vm1092, %v1361, %v1362
    %v1364 = vrot.slane %v1248, 1
    %v1365 = vrot.slane %v1254, 1
    %v1366 = vsel %vm1092, %v1364, %v1365
    %v1367 = vrot.slane %v1258, 1
    %v1368 = vsel %vm1092, %v1362, %v1367
    %v1369 = vrot.slane %v1260, 1
    %v1370 = vsel %vm1092, %v1365, %v1369
    %v1371 = vrot.slane %v1264, 1
    %v1372 = vsel %vm1092, %v1367, %v1371
    %v1373 = vrot.slane %v1266, 1
    %v1374 = vsel %vm1092, %v1369, %v1373
    %vm1378 = vcmask 277504
    %v1379 = vsel %vm1378, %v1366, 0
    %v1381 = vsel %vm1378, %v1370, 0
    %v1383 = vsel %vm1378, %v1374, 0
    %vm1385 = vcmask 1041408
    %v1387 = vsel %vm1385, %v1351, 0
    %v1390 = vsel %vm1385, %v1352, 0
    %1392 = vmatprep.subr.mxu0 %v1312
    %1393 = vmatpush1.msra.mxu0 %v1311
    %1394 = vmatprep.subr.mxu0 %v1314
    %1395 = vmatpush1.msra.mxu0 %v1313
    %1396 = vmatprep.subr.mxu0 %v1316
    %1397 = vmatpush1.msra.mxu0 %v1315
    %1398 = vmatprep.subr.mxu0 %v1318
    %1399 = vmatpush1.msra.mxu0 %v1317
    %1400 = vmatprep.subr.mxu0 %v1320
    %1401 = vmatpush1.msra.mxu0 %v1319
    %1402 = vmatprep.subr.mxu0 %v1322
    %1403 = vmatpush1.msra.mxu0 %v1321
    %1404 = vmatprep.subr.mxu0 %v1324
    %1405 = vmatpush1.msra.mxu0 %v1323
    %1406 = vmatprep.subr.mxu0 %v1326
    %1407 = vmatpush1.msra.mxu0 %v1325
    %1408 = vmatprep.subr.mxu0 %v1328
    %1409 = vmatpush1.msra.mxu0 %v1327
    %1410 = vmatprep.subr.mxu0 %v1330
    %1411 = vmatpush1.msra.mxu0 %v1329
    %1412 = vmatprep.subr.mxu0 %v1332
    %1413 = vmatpush1.msra.mxu0 %v1331
    %1414 = vmatprep.subr.mxu0 %v1334
    %1415 = vmatpush1.msra.mxu0 %v1333
    %1416 = vmatprep.subr.mxu0 %v1336
    %1417 = vmatpush1.msra.mxu0 %v1335
    %1418 = vmatprep.subr.mxu0 %v1338
    %1419 = vmatpush1.msra.mxu0 %v1337
    %1420 = vmatprep.subr.mxu0 %v1340
    %1421 = vmatpush1.msra.mxu0 %v1339
    %1422 = vmatprep.subr.mxu0 %v1342
    %1423 = vmatpush1.msra.mxu0 %v1341
    %1424 = vmatprep.subr.mxu0 %v1344
    %1425 = vmatpush1.msra.mxu0 %v1343
    %1426 = vmatprep.subr.mxu0 %v1346
    %1427 = vmatpush1.msra.mxu0 %v1345
    %1428 = vmatprep.subr.mxu0 %v1348
    %1429 = vmatpush1.msra.mxu0 %v1347
    %1430 = vmatprep.subr.mxu0 %v1350
    %1431 = vmatpush1.msra.mxu0 %v1349
    %1432 = vmatprep.subr.mxu0 %v1390
    %1433 = vmatpush1.msra.mxu0 %v1387
    %1434 = vmatprep.subr.mxu0 0.0
    %1435 = vmatpush1.msra.mxu0 0.0
    %1436 = vmatprep.subr.mxu0 0.0
    %1437 = vmatpush1.msra.mxu0 0.0
    %1438 = vmatprep.subr.mxu0 0.0
    %1439 = vmatpush1.msra.mxu0 0.0
    %1440 = vmatprep.subr.mxu0 0.0
    %1441 = vmatpush1.msra.mxu0 0.0
    %1442 = vmatprep.subr.mxu0 0.0
    %1443 = vmatpush1.msra.mxu0 0.0
    %1444 = vmatprep.subr.mxu0 0.0
    %1445 = vmatpush1.msra.mxu0 0.0
    %1446 = vmatprep.subr.mxu0 0.0
    %1447 = vmatpush1.msra.mxu0 0.0
    %1448 = vmatprep.subr.mxu0 0.0
    %1449 = vmatpush1.msra.mxu0 0.0
    %1450 = vmatprep.subr.mxu0 0.0
    %1451 = vmatpush1.msra.mxu0 0.0
    %1452 = vmatprep.subr.mxu0 0.0
    %1453 = vmatpush1.msra.mxu0 0.0
    %1454 = vmatprep.subr.mxu0 0.0
    %1455 = vmatpush1.msra.mxu0 0.0
    %1456 = vmatprep.mubr.f32.mxu0 %v1379
    %1457 = vmatmul.mubr.f32.gmra.mrb[0].mxu0 %v1363
    %v1458 = vpop.f32.mrb[0].mxu0
    %v1459 = vadd.f32 0.0, %v1458
    %v1460 = vpop.f32.mrb[0].mxu0
    %v1461 = vadd.f32 0.0, %v1460
    %1462 = vmatprep.mubr.f32.mxu0 %v1381
    %1463 = vmatmul.mubr.f32.gmra.mrb[0].mxu0 %v1368
    %v1464 = vpop.f32.mrb[0].mxu0
    %v1465 = vadd.f32 0.0, %v1464
    %v1466 = vpop.f32.mrb[0].mxu0
    %v1467 = vadd.f32 0.0, %v1466
    %1468 = vmatprep.mubr.f32.mxu0 %v1383
    %1469 = vmatmul.mubr.f32.gmra.mrb[0].mxu0 %v1372
    %v1470 = vpop.f32.mrb[0].mxu0
    %v1471 = vadd.f32 0.0, %v1470
    %v1472 = vpop.f32.mrb[0].mxu0
    %v1473 = vadd.f32 0.0, %v1472
    %1474 = vdwg.mxu0
    %v1475 = vsel %vm1378, %v1248, 0
    %v1477 = vsel %vm1378, %v1254, 0
    %v1479 = vsel %vm1378, %v1260, 0
    %v1482 = vsel %vm1385, %v1308, 0
    %v1485 = vsel %vm1385, %v1309, 0
    %1487 = vmatprep.subr.mxu0 %v1269
    %1488 = vmatpush1.msra.mxu0 %v1268
    %1489 = vmatprep.subr.mxu0 %v1271
    %1490 = vmatpush1.msra.mxu0 %v1270
    %1491 = vmatprep.subr.mxu0 %v1273
    %1492 = vmatpush1.msra.mxu0 %v1272
    %1493 = vmatprep.subr.mxu0 %v1275
    %1494 = vmatpush1.msra.mxu0 %v1274
    %1495 = vmatprep.subr.mxu0 %v1277
    %1496 = vmatpush1.msra.mxu0 %v1276
    %1497 = vmatprep.subr.mxu0 %v1279
    %1498 = vmatpush1.msra.mxu0 %v1278
    %1499 = vmatprep.subr.mxu0 %v1281
    %1500 = vmatpush1.msra.mxu0 %v1280
    %1501 = vmatprep.subr.mxu0 %v1283
    %1502 = vmatpush1.msra.mxu0 %v1282
    %1503 = vmatprep.subr.mxu0 %v1285
    %1504 = vmatpush1.msra.mxu0 %v1284
    %1505 = vmatprep.subr.mxu0 %v1287
    %1506 = vmatpush1.msra.mxu0 %v1286
    %1507 = vmatprep.subr.mxu0 %v1289
    %1508 = vmatpush1.msra.mxu0 %v1288
    %1509 = vmatprep.subr.mxu0 %v1291
    %1510 = vmatpush1.msra.mxu0 %v1290
    %1511 = vmatprep.subr.mxu0 %v1293
    %1512 = vmatpush1.msra.mxu0 %v1292
    %1513 = vmatprep.subr.mxu0 %v1295
    %1514 = vmatpush1.msra.mxu0 %v1294
    %1515 = vmatprep.subr.mxu0 %v1297
    %1516 = vmatpush1.msra.mxu0 %v1296
    %1517 = vmatprep.subr.mxu0 %v1299
    %1518 = vmatpush1.msra.mxu0 %v1298
    %1519 = vmatprep.subr.mxu0 %v1301
    %1520 = vmatpush1.msra.mxu0 %v1300
    %1521 = vmatprep.subr.mxu0 %v1303
    %1522 = vmatpush1.msra.mxu0 %v1302
    %1523 = vmatprep.subr.mxu0 %v1305
    %1524 = vmatpush1.msra.mxu0 %v1304
    %1525 = vmatprep.subr.mxu0 %v1307
    %1526 = vmatpush1.msra.mxu0 %v1306
    %1527 = vmatprep.subr.mxu0 %v1485
    %1528 = vmatpush1.msra.mxu0 %v1482
    %1529 = vmatprep.subr.mxu0 0.0
    %1530 = vmatpush1.msra.mxu0 0.0
    %1531 = vmatprep.subr.mxu0 0.0
    %1532 = vmatpush1.msra.mxu0 0.0
    %1533 = vmatprep.subr.mxu0 0.0
    %1534 = vmatpush1.msra.mxu0 0.0
    %1535 = vmatprep.subr.mxu0 0.0
    %1536 = vmatpush1.msra.mxu0 0.0
    %1537 = vmatprep.subr.mxu0 0.0
    %1538 = vmatpush1.msra.mxu0 0.0
    %1539 = vmatprep.subr.mxu0 0.0
    %1540 = vmatpush1.msra.mxu0 0.0
    %1541 = vmatprep.subr.mxu0 0.0
    %1542 = vmatpush1.msra.mxu0 0.0
    %1543 = vmatprep.subr.mxu0 0.0
    %1544 = vmatpush1.msra.mxu0 0.0
    %1545 = vmatprep.subr.mxu0 0.0
    %1546 = vmatpush1.msra.mxu0 0.0
    %1547 = vmatprep.subr.mxu0 0.0
    %1548 = vmatpush1.msra.mxu0 0.0
    %1549 = vmatprep.subr.mxu0 0.0
    %1550 = vmatpush1.msra.mxu0 0.0
    %1551 = vmatprep.mubr.f32.mxu0 %v1475
    %1552 = vmatmul.mubr.f32.gmra.mrb[0].mxu0 %v1246
    %v1553 = vpop.f32.mrb[0].mxu0
    %v1554 = vadd.f32 %v1459, %v1553
    %v1555 = vpop.f32.mrb[0].mxu0
    %v1556 = vadd.f32 %v1461, %v1555
    %1557 = vmatprep.mubr.f32.mxu0 %v1477
    %1558 = vmatmul.mubr.f32.gmra.mrb[0].mxu0 %v1252
    %v1559 = vpop.f32.mrb[0].mxu0
    %v1560 = vadd.f32 %v1465, %v1559
    %v1561 = vpop.f32.mrb[0].mxu0
    %v1562 = vadd.f32 %v1467, %v1561
    %1563 = vmatprep.mubr.f32.mxu0 %v1479
    %1564 = vmatmul.mubr.f32.gmra.mrb[0].mxu0 %v1258
    %v1565 = vpop.f32.mrb[0].mxu0
    %v1566 = vadd.f32 %v1471, %v1565
    %v1567 = vpop.f32.mrb[0].mxu0
    %v1568 = vadd.f32 %v1473, %v1567
    %1569 = vdwg.mxu0
    %s1570 = scalar_lea.vmem %s4, 672
    %v1571 = vld [vmem:[%s1570] sm:$0xff]
    %v1572 = vld [vmem:[%s1570 + $0x8] sm:$0xff]
    %v1573 = vld [vmem:[%s1570 + $0x10] sm:$0xff]
    %v1574 = vld [vmem:[%s1570 + $0x18] sm:$0xff]
    %v1575 = vld [vmem:[%s1570 + $0x20] sm:$0xff]
    %v1576 = vld [vmem:[%s1570 + $0x28] sm:$0xff]
    %v1577 = vld [vmem:[%s1570 + $0x30] sm:$0xff]
    %v1578 = vld [vmem:[%s1570 + $0x38] sm:$0xff]
    %v1579 = vld [vmem:[%s1570 + $0x40] sm:$0xff]
    %v1580 = vld [vmem:[%s1570 + $0x48] sm:$0xff]
    %v1581 = vld [vmem:[%s1570 + $0x50] sm:$0xff]
    %v1582 = vld [vmem:[%s1570 + $0x58] sm:$0xff]
    %v1583 = vld [vmem:[%s1570 + $0x60] sm:$0xff]
    %v1584 = vld [vmem:[%s1570 + $0x68] sm:$0xff]
    %v1585 = vld [vmem:[%s1570 + $0x70] sm:$0xff]
    %v1586 = vld [vmem:[%s1570 + $0x78] sm:$0xff]
    %v1587 = vld [vmem:[%s1570 + $0x80] sm:$0xff]
    %v1588 = vld [vmem:[%s1570 + $0x88] sm:$0xff]
    %v1589 = vld [vmem:[%s1570 + $0x90] sm:$0xff]
    %v1590 = vld [vmem:[%s1570 + $0x98] sm:$0xff]
    %v1591 = vld [vmem:[%s1570 + $0xa0] sm:$0xff]
    %v1592 = vld [vmem:[%s1570 + $0xa8] sm:$0xff]
    %v1593 = vld [vmem:[%s1570 + $0xb0] sm:$0xff]
    %v1594 = vld [vmem:[%s1570 + $0xb8] sm:$0xff]
    %v1595 = vld [vmem:[%s1570 + $0xc0] sm:$0xff]
    %v1596 = vld [vmem:[%s1570 + $0xc8] sm:$0xff]
    %v1597 = vld [vmem:[%s1570 + $0xd0] sm:$0xff]
    %v1598 = vld [vmem:[%s1570 + $0xd8] sm:$0xff]
    %v1599 = vld [vmem:[%s1570 + $0xe0] sm:$0xff]
    %v1600 = vld [vmem:[%s1570 + $0xe8] sm:$0xff]
    %v1601 = vld [vmem:[%s1570 + $0xf0] sm:$0xff]
    %v1602 = vld [vmem:[%s1570 + $0xf8] sm:$0xff]
    %v1603 = vld [vmem:[%s1570 + $0x100] sm:$0xff]
    %v1604 = vld [vmem:[%s1570 + $0x108] sm:$0xff]
    %v1605 = vld [vmem:[%s1570 + $0x110] sm:$0xff]
    %v1606 = vld [vmem:[%s1570 + $0x118] sm:$0xff]
    %v1607 = vld [vmem:[%s1570 + $0x120] sm:$0xff]
    %v1608 = vld [vmem:[%s1570 + $0x128] sm:$0xff]
    %v1609 = vld [vmem:[%s1570 + $0x130] sm:$0xff]
    %v1610 = vld [vmem:[%s1570 + $0x138] sm:$0xff]
    %v1611 = vld [vmem:[%s1570 + $0x140] sm:$0x3]
    %v1612 = vld [vmem:[%s1570 + $0x148] sm:$0x3]
    %vm1613 = vcmask 1045504
    %v1614 = vrot.slane %v1246, 2
    %v1615 = vrot.slane %v1252, 2
    %v1616 = vsel %vm1613, %v1614, %v1615
    %v1617 = vrot.slane %v1248, 2
    %v1618 = vrot.slane %v1254, 2
    %v1619 = vsel %vm1613, %v1617, %v1618
    %v1620 = vrot.slane %v1258, 2
    %v1621 = vsel %vm1613, %v1615, %v1620
    %v1622 = vrot.slane %v1260, 2
    %v1623 = vsel %vm1613, %v1618, %v1622
    %v1624 = vrot.slane %v1264, 2
    %v1625 = vsel %vm1613, %v1620, %v1624
    %v1626 = vrot.slane %v1266, 2
    %v1627 = vsel %vm1613, %v1622, %v1626
    %v1631 = vsel %vm1378, %v1619, 0
    %v1633 = vsel %vm1378, %v1623, 0
    %v1635 = vsel %vm1378, %v1627, 0
    %v1638 = vsel %vm1385, %v1611, 0
    %v1641 = vsel %vm1385, %v1612, 0
    %1643 = vmatprep.subr.mxu0 %v1572
    %1644 = vmatpush1.msra.mxu0 %v1571
    %1645 = vmatprep.subr.mxu0 %v1574
    %1646 = vmatpush1.msra.mxu0 %v1573
    %1647 = vmatprep.subr.mxu0 %v1576
    %1648 = vmatpush1.msra.mxu0 %v1575
    %1649 = vmatprep.subr.mxu0 %v1578
    %1650 = vmatpush1.msra.mxu0 %v1577
    %1651 = vmatprep.subr.mxu0 %v1580
    %1652 = vmatpush1.msra.mxu0 %v1579
    %1653 = vmatprep.subr.mxu0 %v1582
    %1654 = vmatpush1.msra.mxu0 %v1581
    %1655 = vmatprep.subr.mxu0 %v1584
    %1656 = vmatpush1.msra.mxu0 %v1583
    %1657 = vmatprep.subr.mxu0 %v1586
    %1658 = vmatpush1.msra.mxu0 %v1585
    %1659 = vmatprep.subr.mxu0 %v1588
    %1660 = vmatpush1.msra.mxu0 %v1587
    %1661 = vmatprep.subr.mxu0 %v1590
    %1662 = vmatpush1.msra.mxu0 %v1589
    %1663 = vmatprep.subr.mxu0 %v1592
    %1664 = vmatpush1.msra.mxu0 %v1591
    %1665 = vmatprep.subr.mxu0 %v1594
    %1666 = vmatpush1.msra.mxu0 %v1593
    %1667 = vmatprep.subr.mxu0 %v1596
    %1668 = vmatpush1.msra.mxu0 %v1595
    %1669 = vmatprep.subr.mxu0 %v1598
    %1670 = vmatpush1.msra.mxu0 %v1597
    %1671 = vmatprep.subr.mxu0 %v1600
    %1672 = vmatpush1.msra.mxu0 %v1599
    %1673 = vmatprep.subr.mxu0 %v1602
    %1674 = vmatpush1.msra.mxu0 %v1601
    %1675 = vmatprep.subr.mxu0 %v1604
    %1676 = vmatpush1.msra.mxu0 %v1603
    %1677 = vmatprep.subr.mxu0 %v1606
    %1678 = vmatpush1.msra.mxu0 %v1605
    %1679 = vmatprep.subr.mxu0 %v1608
    %1680 = vmatpush1.msra.mxu0 %v1607
    %1681 = vmatprep.subr.mxu0 %v1610
    %1682 = vmatpush1.msra.mxu0 %v1609
    %1683 = vmatprep.subr.mxu0 %v1641
    %1684 = vmatpush1.msra.mxu0 %v1638
    %1685 = vmatprep.subr.mxu0 0.0
    %1686 = vmatpush1.msra.mxu0 0.0
    %1687 = vmatprep.subr.mxu0 0.0
    %1688 = vmatpush1.msra.mxu0 0.0
    %1689 = vmatprep.subr.mxu0 0.0
    %1690 = vmatpush1.msra.mxu0 0.0
    %1691 = vmatprep.subr.mxu0 0.0
    %1692 = vmatpush1.msra.mxu0 0.0
    %1693 = vmatprep.subr.mxu0 0.0
    %1694 = vmatpush1.msra.mxu0 0.0
    %1695 = vmatprep.subr.mxu0 0.0
    %1696 = vmatpush1.msra.mxu0 0.0
    %1697 = vmatprep.subr.mxu0 0.0
    %1698 = vmatpush1.msra.mxu0 0.0
    %1699 = vmatprep.subr.mxu0 0.0
    %1700 = vmatpush1.msra.mxu0 0.0
    %1701 = vmatprep.subr.mxu0 0.0
    %1702 = vmatpush1.msra.mxu0 0.0
    %1703 = vmatprep.subr.mxu0 0.0
    %1704 = vmatpush1.msra.mxu0 0.0
    %1705 = vmatprep.subr.mxu0 0.0
    %1706 = vmatpush1.msra.mxu0 0.0
    %1707 = vmatprep.mubr.f32.mxu0 %v1631
    %1708 = vmatmul.mubr.f32.gmra.mrb[0].mxu0 %v1616
    %v1709 = vpop.f32.mrb[0].mxu0
    %v1710 = vadd.f32 0.0, %v1709
    %v1711 = vpop.f32.mrb[0].mxu0
    %v1712 = vadd.f32 0.0, %v1711
    %1713 = vmatprep.mubr.f32.mxu0 %v1633
    %1714 = vmatmul.mubr.f32.gmra.mrb[0].mxu0 %v1621
    %v1715 = vpop.f32.mrb[0].mxu0
    %v1716 = vadd.f32 0.0, %v1715
    %v1717 = vpop.f32.mrb[0].mxu0
    %v1718 = vadd.f32 0.0, %v1717
    %1719 = vmatprep.mubr.f32.mxu0 %v1635
    %1720 = vmatmul.mubr.f32.gmra.mrb[0].mxu0 %v1625
    %v1721 = vpop.f32.mrb[0].mxu0
    %v1722 = vadd.f32 0.0, %v1721
    %v1723 = vpop.f32.mrb[0].mxu0
    %v1724 = vadd.f32 0.0, %v1723
    %1725 = vdwg.mxu0
    %v1726 = vadd.f32 %v1554, %v1710
    %v1727 = vadd.f32 %v1556, %v1712
    %v1728 = vadd.f32 %v1560, %v1716
    %v1729 = vadd.f32 %v1562, %v1718
    %v1730 = vadd.f32 %v1566, %v1722
    %v1731 = vadd.f32 %v1568, %v1724
    %s1732 = scalar_lea.vmem %s4, 1008
    %v1733 = vld [vmem:[%s1732] sm:$0xff]
    %v1734 = vld [vmem:[%s1732 + $0x8] sm:$0xff]
    %v1735 = vld [vmem:[%s1732 + $0x10] sm:$0xff]
    %v1736 = vld [vmem:[%s1732 + $0x18] sm:$0xff]
    %v1737 = vld [vmem:[%s1732 + $0x20] sm:$0xff]
    %v1738 = vld [vmem:[%s1732 + $0x28] sm:$0xff]
    %v1739 = vld [vmem:[%s1732 + $0x30] sm:$0xff]
    %v1740 = vld [vmem:[%s1732 + $0x38] sm:$0xff]
    %v1741 = vld [vmem:[%s1732 + $0x40] sm:$0xff]
    %v1742 = vld [vmem:[%s1732 + $0x48] sm:$0xff]
    %v1743 = vld [vmem:[%s1732 + $0x50] sm:$0xff]
    %v1744 = vld [vmem:[%s1732 + $0x58] sm:$0xff]
    %v1745 = vld [vmem:[%s1732 + $0x60] sm:$0xff]
    %v1746 = vld [vmem:[%s1732 + $0x68] sm:$0xff]
    %v1747 = vld [vmem:[%s1732 + $0x70] sm:$0xff]
    %v1748 = vld [vmem:[%s1732 + $0x78] sm:$0xff]
    %v1749 = vld [vmem:[%s1732 + $0x80] sm:$0xff]
    %v1750 = vld [vmem:[%s1732 + $0x88] sm:$0xff]
    %v1751 = vld [vmem:[%s1732 + $0x90] sm:$0xff]
    %v1752 = vld [vmem:[%s1732 + $0x98] sm:$0xff]
    %v1753 = vld [vmem:[%s1732 + $0xa0] sm:$0xff]
    %v1754 = vld [vmem:[%s1732 + $0xa8] sm:$0xff]
    %v1755 = vld [vmem:[%s1732 + $0xb0] sm:$0xff]
    %v1756 = vld [vmem:[%s1732 + $0xb8] sm:$0xff]
    %v1757 = vld [vmem:[%s1732 + $0xc0] sm:$0xff]
    %v1758 = vld [vmem:[%s1732 + $0xc8] sm:$0xff]
    %v1759 = vld [vmem:[%s1732 + $0xd0] sm:$0xff]
    %v1760 = vld [vmem:[%s1732 + $0xd8] sm:$0xff]
    %v1761 = vld [vmem:[%s1732 + $0xe0] sm:$0xff]
    %v1762 = vld [vmem:[%s1732 + $0xe8] sm:$0xff]
    %v1763 = vld [vmem:[%s1732 + $0xf0] sm:$0xff]
    %v1764 = vld [vmem:[%s1732 + $0xf8] sm:$0xff]
    %v1765 = vld [vmem:[%s1732 + $0x100] sm:$0xff]
    %v1766 = vld [vmem:[%s1732 + $0x108] sm:$0xff]
    %v1767 = vld [vmem:[%s1732 + $0x110] sm:$0xff]
    %v1768 = vld [vmem:[%s1732 + $0x118] sm:$0xff]
    %v1769 = vld [vmem:[%s1732 + $0x120] sm:$0xff]
    %v1770 = vld [vmem:[%s1732 + $0x128] sm:$0xff]
    %v1771 = vld [vmem:[%s1732 + $0x130] sm:$0xff]
    %v1772 = vld [vmem:[%s1732 + $0x138] sm:$0xff]
    %v1773 = vld [vmem:[%s1732 + $0x140] sm:$0x3]
    %v1774 = vld [vmem:[%s1732 + $0x148] sm:$0x3]
    %vm1775 = vcmask 1044480
    %v1776 = vrot.slane %v1246, 3
    %v1777 = vrot.slane %v1252, 3
    %v1778 = vsel %vm1775, %v1776, %v1777
    %v1779 = vrot.slane %v1248, 3
    %v1780 = vrot.slane %v1254, 3
    %v1781 = vsel %vm1775, %v1779, %v1780
    %v1782 = vrot.slane %v1258, 3
    %v1783 = vsel %vm1775, %v1777, %v1782
    %v1784 = vrot.slane %v1260, 3
    %v1785 = vsel %vm1775, %v1780, %v1784
    %v1786 = vrot.slane %v1264, 3
    %v1787 = vsel %vm1775, %v1782, %v1786
    %v1788 = vrot.slane %v1266, 3
    %v1789 = vsel %vm1775, %v1784, %v1788
    %v1793 = vsel %vm1378, %v1781, 0
    %v1795 = vsel %vm1378, %v1785, 0
    %v1797 = vsel %vm1378, %v1789, 0
    %v1800 = vsel %vm1385, %v1773, 0
    %v1803 = vsel %vm1385, %v1774, 0
    %1805 = vmatprep.subr.mxu0 %v1734
    %1806 = vmatpush1.msra.mxu0 %v1733
    %1807 = vmatprep.subr.mxu0 %v1736
    %1808 = vmatpush1.msra.mxu0 %v1735
    %1809 = vmatprep.subr.mxu0 %v1738
    %1810 = vmatpush1.msra.mxu0 %v1737
    %1811 = vmatprep.subr.mxu0 %v1740
    %1812 = vmatpush1.msra.mxu0 %v1739
    %1813 = vmatprep.subr.mxu0 %v1742
    %1814 = vmatpush1.msra.mxu0 %v1741
    %1815 = vmatprep.subr.mxu0 %v1744
    %1816 = vmatpush1.msra.mxu0 %v1743
    %1817 = vmatprep.subr.mxu0 %v1746
    %1818 = vmatpush1.msra.mxu0 %v1745
    %1819 = vmatprep.subr.mxu0 %v1748
    %1820 = vmatpush1.msra.mxu0 %v1747
    %1821 = vmatprep.subr.mxu0 %v1750
    %1822 = vmatpush1.msra.mxu0 %v1749
    %1823 = vmatprep.subr.mxu0 %v1752
    %1824 = vmatpush1.msra.mxu0 %v1751
    %1825 = vmatprep.subr.mxu0 %v1754
    %1826 = vmatpush1.msra.mxu0 %v1753
    %1827 = vmatprep.subr.mxu0 %v1756
    %1828 = vmatpush1.msra.mxu0 %v1755
    %1829 = vmatprep.subr.mxu0 %v1758
    %1830 = vmatpush1.msra.mxu0 %v1757
    %1831 = vmatprep.subr.mxu0 %v1760
    %1832 = vmatpush1.msra.mxu0 %v1759
    %1833 = vmatprep.subr.mxu0 %v1762
    %1834 = vmatpush1.msra.mxu0 %v1761
    %1835 = vmatprep.subr.mxu0 %v1764
    %1836 = vmatpush1.msra.mxu0 %v1763
    %1837 = vmatprep.subr.mxu0 %v1766
    %1838 = vmatpush1.msra.mxu0 %v1765
    %1839 = vmatprep.subr.mxu0 %v1768
    %1840 = vmatpush1.msra.mxu0 %v1767
    %1841 = vmatprep.subr.mxu0 %v1770
    %1842 = vmatpush1.msra.mxu0 %v1769
    %1843 = vmatprep.subr.mxu0 %v1772
    %1844 = vmatpush1.msra.mxu0 %v1771
    %1845 = vmatprep.subr.mxu0 %v1803
    %1846 = vmatpush1.msra.mxu0 %v1800
    %1847 = vmatprep.subr.mxu0 0.0
    %1848 = vmatpush1.msra.mxu0 0.0
    %1849 = vmatprep.subr.mxu0 0.0
    %1850 = vmatpush1.msra.mxu0 0.0
    %1851 = vmatprep.subr.mxu0 0.0
    %1852 = vmatpush1.msra.mxu0 0.0
    %1853 = vmatprep.subr.mxu0 0.0
    %1854 = vmatpush1.msra.mxu0 0.0
    %1855 = vmatprep.subr.mxu0 0.0
    %1856 = vmatpush1.msra.mxu0 0.0
    %1857 = vmatprep.subr.mxu0 0.0
    %1858 = vmatpush1.msra.mxu0 0.0
    %1859 = vmatprep.subr.mxu0 0.0
    %1860 = vmatpush1.msra.mxu0 0.0
    %1861 = vmatprep.subr.mxu0 0.0
    %1862 = vmatpush1.msra.mxu0 0.0
    %1863 = vmatprep.subr.mxu0 0.0
    %1864 = vmatpush1.msra.mxu0 0.0
    %1865 = vmatprep.subr.mxu0 0.0
    %1866 = vmatpush1.msra.mxu0 0.0
    %1867 = vmatprep.subr.mxu0 0.0
    %1868 = vmatpush1.msra.mxu0 0.0
    %1869 = vmatprep.mubr.f32.mxu0 %v1793
    %1870 = vmatmul.mubr.f32.gmra.mrb[0].mxu0 %v1778
    %v1871 = vpop.f32.mrb[0].mxu0
    %v1872 = vadd.f32 0.0, %v1871
    %v1873 = vpop.f32.mrb[0].mxu0
    %v1874 = vadd.f32 0.0, %v1873
    %1875 = vmatprep.mubr.f32.mxu0 %v1795
    %1876 = vmatmul.mubr.f32.gmra.mrb[0].mxu0 %v1783
    %v1877 = vpop.f32.mrb[0].mxu0
    %v1878 = vadd.f32 0.0, %v1877
    %v1879 = vpop.f32.mrb[0].mxu0
    %v1880 = vadd.f32 0.0, %v1879
    %1881 = vmatprep.mubr.f32.mxu0 %v1797
    %1882 = vmatmul.mubr.f32.gmra.mrb[0].mxu0 %v1787
    %v1883 = vpop.f32.mrb[0].mxu0
    %v1884 = vadd.f32 0.0, %v1883
    %v1885 = vpop.f32.mrb[0].mxu0
    %v1886 = vadd.f32 0.0, %v1885
    %1887 = vdwg.mxu0
    %v1888 = vadd.f32 %v1726, %v1872
    %v1889 = vadd.f32 %v1727, %v1874
    %v1890 = vadd.f32 %v1728, %v1878
    %v1891 = vadd.f32 %v1729, %v1880
    %v1892 = vadd.f32 %v1730, %v1884
    %v1893 = vadd.f32 %v1731, %v1886
    %s1894 = scalar_lea.vmem %s4, 1344
    %v1895 = vld [vmem:[%s1894] sm:$0xff]
    %v1896 = vld [vmem:[%s1894 + $0x8] sm:$0xff]
    %v1897 = vld [vmem:[%s1894 + $0x10] sm:$0xff]
    %v1898 = vld [vmem:[%s1894 + $0x18] sm:$0xff]
    %v1899 = vld [vmem:[%s1894 + $0x20] sm:$0xff]
    %v1900 = vld [vmem:[%s1894 + $0x28] sm:$0xff]
    %v1901 = vld [vmem:[%s1894 + $0x30] sm:$0xff]
    %v1902 = vld [vmem:[%s1894 + $0x38] sm:$0xff]
    %v1903 = vld [vmem:[%s1894 + $0x40] sm:$0xff]
    %v1904 = vld [vmem:[%s1894 + $0x48] sm:$0xff]
    %v1905 = vld [vmem:[%s1894 + $0x50] sm:$0xff]
    %v1906 = vld [vmem:[%s1894 + $0x58] sm:$0xff]
    %v1907 = vld [vmem:[%s1894 + $0x60] sm:$0xff]
    %v1908 = vld [vmem:[%s1894 + $0x68] sm:$0xff]
    %v1909 = vld [vmem:[%s1894 + $0x70] sm:$0xff]
    %v1910 = vld [vmem:[%s1894 + $0x78] sm:$0xff]
    %v1911 = vld [vmem:[%s1894 + $0x80] sm:$0xff]
    %v1912 = vld [vmem:[%s1894 + $0x88] sm:$0xff]
    %v1913 = vld [vmem:[%s1894 + $0x90] sm:$0xff]
    %v1914 = vld [vmem:[%s1894 + $0x98] sm:$0xff]
    %v1915 = vld [vmem:[%s1894 + $0xa0] sm:$0xff]
    %v1916 = vld [vmem:[%s1894 + $0xa8] sm:$0xff]
    %v1917 = vld [vmem:[%s1894 + $0xb0] sm:$0xff]
    %v1918 = vld [vmem:[%s1894 + $0xb8] sm:$0xff]
    %v1919 = vld [vmem:[%s1894 + $0xc0] sm:$0xff]
    %v1920 = vld [vmem:[%s1894 + $0xc8] sm:$0xff]
    %v1921 = vld [vmem:[%s1894 + $0xd0] sm:$0xff]
    %v1922 = vld [vmem:[%s1894 + $0xd8] sm:$0xff]
    %v1923 = vld [vmem:[%s1894 + $0xe0] sm:$0xff]
    %v1924 = vld [vmem:[%s1894 + $0xe8] sm:$0xff]
    %v1925 = vld [vmem:[%s1894 + $0xf0] sm:$0xff]
    %v1926 = vld [vmem:[%s1894 + $0xf8] sm:$0xff]
    %v1927 = vld [vmem:[%s1894 + $0x100] sm:$0xff]
    %v1928 = vld [vmem:[%s1894 + $0x108] sm:$0xff]
    %v1929 = vld [vmem:[%s1894 + $0x110] sm:$0xff]
    %v1930 = vld [vmem:[%s1894 + $0x118] sm:$0xff]
    %v1931 = vld [vmem:[%s1894 + $0x120] sm:$0xff]
    %v1932 = vld [vmem:[%s1894 + $0x128] sm:$0xff]
    %v1933 = vld [vmem:[%s1894 + $0x130] sm:$0xff]
    %v1934 = vld [vmem:[%s1894 + $0x138] sm:$0xff]
    %v1935 = vld [vmem:[%s1894 + $0x140] sm:$0x3]
    %v1936 = vld [vmem:[%s1894 + $0x148] sm:$0x3]
    %vm1937 = vcmask 1043456
    %v1938 = vrot.slane %v1246, 4
    %v1939 = vrot.slane %v1252, 4
    %v1940 = vsel %vm1937, %v1938, %v1939
    %v1941 = vrot.slane %v1248, 4
    %v1942 = vrot.slane %v1254, 4
    %v1943 = vsel %vm1937, %v1941, %v1942
    %v1944 = vrot.slane %v1258, 4
    %v1945 = vsel %vm1937, %v1939, %v1944
    %v1946 = vrot.slane %v1260, 4
    %v1947 = vsel %vm1937, %v1942, %v1946
    %v1948 = vrot.slane %v1264, 4
    %v1949 = vsel %vm1937, %v1944, %v1948
    %v1950 = vrot.slane %v1266, 4
    %v1951 = vsel %vm1937, %v1946, %v1950
    %v1955 = vsel %vm1378, %v1943, 0
    %v1957 = vsel %vm1378, %v1947, 0
    %v1959 = vsel %vm1378, %v1951, 0
    %v1962 = vsel %vm1385, %v1935, 0
    %v1965 = vsel %vm1385, %v1936, 0
    %1967 = vmatprep.subr.mxu0 %v1896
    %1968 = vmatpush1.msra.mxu0 %v1895
    %1969 = vmatprep.subr.mxu0 %v1898
    %1970 = vmatpush1.msra.mxu0 %v1897
    %1971 = vmatprep.subr.mxu0 %v1900
    %1972 = vmatpush1.msra.mxu0 %v1899
    %1973 = vmatprep.subr.mxu0 %v1902
    %1974 = vmatpush1.msra.mxu0 %v1901
    %1975 = vmatprep.subr.mxu0 %v1904
    %1976 = vmatpush1.msra.mxu0 %v1903
    %1977 = vmatprep.subr.mxu0 %v1906
    %1978 = vmatpush1.msra.mxu0 %v1905
    %1979 = vmatprep.subr.mxu0 %v1908
    %1980 = vmatpush1.msra.mxu0 %v1907
    %1981 = vmatprep.subr.mxu0 %v1910
    %1982 = vmatpush1.msra.mxu0 %v1909
    %1983 = vmatprep.subr.mxu0 %v1912
    %1984 = vmatpush1.msra.mxu0 %v1911
    %1985 = vmatprep.subr.mxu0 %v1914
    %1986 = vmatpush1.msra.mxu0 %v1913
    %1987 = vmatprep.subr.mxu0 %v1916
    %1988 = vmatpush1.msra.mxu0 %v1915
    %1989 = vmatprep.subr.mxu0 %v1918
    %1990 = vmatpush1.msra.mxu0 %v1917
    %1991 = vmatprep.subr.mxu0 %v1920
    %1992 = vmatpush1.msra.mxu0 %v1919
    %1993 = vmatprep.subr.mxu0 %v1922
    %1994 = vmatpush1.msra.mxu0 %v1921
    %1995 = vmatprep.subr.mxu0 %v1924
    %1996 = vmatpush1.msra.mxu0 %v1923
    %1997 = vmatprep.subr.mxu0 %v1926
    %1998 = vmatpush1.msra.mxu0 %v1925
    %1999 = vmatprep.subr.mxu0 %v1928
    %2000 = vmatpush1.msra.mxu0 %v1927
    %2001 = vmatprep.subr.mxu0 %v1930
    %2002 = vmatpush1.msra.mxu0 %v1929
    %2003 = vmatprep.subr.mxu0 %v1932
    %2004 = vmatpush1.msra.mxu0 %v1931
    %2005 = vmatprep.subr.mxu0 %v1934
    %2006 = vmatpush1.msra.mxu0 %v1933
    %2007 = vmatprep.subr.mxu0 %v1965
    %2008 = vmatpush1.msra.mxu0 %v1962
    %2009 = vmatprep.subr.mxu0 0.0
    %2010 = vmatpush1.msra.mxu0 0.0
    %2011 = vmatprep.subr.mxu0 0.0
    %2012 = vmatpush1.msra.mxu0 0.0
    %2013 = vmatprep.subr.mxu0 0.0
    %2014 = vmatpush1.msra.mxu0 0.0
    %2015 = vmatprep.subr.mxu0 0.0
    %2016 = vmatpush1.msra.mxu0 0.0
    %2017 = vmatprep.subr.mxu0 0.0
    %2018 = vmatpush1.msra.mxu0 0.0
    %2019 = vmatprep.subr.mxu0 0.0
    %2020 = vmatpush1.msra.mxu0 0.0
    %2021 = vmatprep.subr.mxu0 0.0
    %2022 = vmatpush1.msra.mxu0 0.0
    %2023 = vmatprep.subr.mxu0 0.0
    %2024 = vmatpush1.msra.mxu0 0.0
    %2025 = vmatprep.subr.mxu0 0.0
    %2026 = vmatpush1.msra.mxu0 0.0
    %2027 = vmatprep.subr.mxu0 0.0
    %2028 = vmatpush1.msra.mxu0 0.0
    %2029 = vmatprep.subr.mxu0 0.0
    %2030 = vmatpush1.msra.mxu0 0.0
    %2031 = vmatprep.mubr.f32.mxu0 %v1955
    %2032 = vmatmul.mubr.f32.gmra.mrb[0].mxu0 %v1940
    %v2033 = vpop.f32.mrb[0].mxu0
    %v2034 = vadd.f32 0.0, %v2033
    %v2035 = vpop.f32.mrb[0].mxu0
    %v2036 = vadd.f32 0.0, %v2035
    %2037 = vmatprep.mubr.f32.mxu0 %v1957
    %2038 = vmatmul.mubr.f32.gmra.mrb[0].mxu0 %v1945
    %v2039 = vpop.f32.mrb[0].mxu0
    %v2040 = vadd.f32 0.0, %v2039
    %v2041 = vpop.f32.mrb[0].mxu0
    %v2042 = vadd.f32 0.0, %v2041
    %2043 = vmatprep.mubr.f32.mxu0 %v1959
    %2044 = vmatmul.mubr.f32.gmra.mrb[0].mxu0 %v1949
    %v2045 = vpop.f32.mrb[0].mxu0
    %v2046 = vadd.f32 0.0, %v2045
    %v2047 = vpop.f32.mrb[0].mxu0
    %v2048 = vadd.f32 0.0, %v2047
    %2049 = vdwg.mxu0
    %v2050 = vadd.f32 %v1888, %v2034
    %v2051 = vadd.f32 %v1889, %v2036
    %v2052 = vadd.f32 %v1890, %v2040
    %v2053 = vadd.f32 %v1891, %v2042
    %v2054 = vadd.f32 %v1892, %v2046
    %v2055 = vadd.f32 %v1893, %v2048
    %v2056 = vld [vmem:[%s5] sm:$0x3]
    %v2058 = vlaneseq
    %v2059 = vshrl.u32 %v2058, 7
    %v2060 = vsub.s32 0, %v2059
    %v2061 = vrot.slane %v2056, %v2060
    %v2062 = vlaneseq
    %v2063 = vshrl.u32 %v2062, 7
    %v2064 = vsub.s32 1, %v2063
    %v2065 = vrot.slane %v2056, %v2064
    %v2068 = vadd.f32 %v2050, %v2061
    %v2069 = vadd.f32 %v2051, %v2065
    %v2070 = vadd.f32 %v2052, %v2061
    %v2071 = vadd.f32 %v2053, %v2065
    %v2072 = vadd.f32 %v2054, %v2061
    %v2073 = vadd.f32 %v2055, %v2065
    %v2074 = vmax.f32 %v2068, 0.0
    %v2075 = vmax.f32 %v2069, 0.0
    %v2076 = vmax.f32 %v2070, 0.0
    %v2077 = vmax.f32 %v2071, 0.0
    %v2078 = vmax.f32 %v2072, 0.0
    %v2079 = vmax.f32 %v2073, 0.0
    %2086 = vrot.lane.b32.xlu0 %v2074, 112
    %v2087 = vpop.permute.xlu0 %2086
    %2088 = vrot.lane.b32.xlu0 %v2075, 112
    %v2089 = vpop.permute.xlu0 %2088
    %2090 = vrot.lane.b32.xlu0 %v2076, 112
    %v2091 = vpop.permute.xlu0 %2090
    %2092 = vrot.lane.b32.xlu0 %v2077, 112
    %v2093 = vpop.permute.xlu0 %2092
    %2094 = vrot.lane.b32.xlu0 %v2078, 112
    %v2095 = vpop.permute.xlu0 %2094
    %2096 = vrot.lane.b32.xlu0 %v2079, 112
    %v2097 = vpop.permute.xlu0 %2096
    %vm2098 = vcmask 916480
    %v2099 = vsel %vm2098, %v2087, %v2089
    %v2100 = vsel %vm2098, %v2091, %v2093
    %v2101 = vsel %vm2098, %v2095, %v2097
    %v2108 = vmax.f32 %v2074, %v2099
    %v2109 = vmax.f32 %v2075, %v2089
    %v2110 = vmax.f32 %v2076, %v2100
    %v2111 = vmax.f32 %v2077, %v2093
    %v2112 = vmax.f32 %v2078, %v2101
    %v2113 = vmax.f32 %v2079, %v2097
    %v2120 = vrot.slane %v2108, 1
    %v2121 = vrot.slane %v2110, 1
    %v2122 = vsel %vm1092, %v2120, %v2121
    %v2123 = vrot.slane %v2109, 1
    %v2124 = vrot.slane %v2111, 1
    %v2125 = vsel %vm1092, %v2123, %v2124
    %v2126 = vrot.slane %v2112, 1
    %v2127 = vsel %vm1092, %v2121, %v2126
    %v2128 = vrot.slane %v2113, 1
    %v2129 = vsel %vm1092, %v2124, %v2128
    %v2136 = vmax.f32 %v2108, %v2122
    %v2137 = vmax.f32 %v2109, %v2125
    %v2138 = vmax.f32 %v2110, %v2127
    %v2139 = vmax.f32 %v2111, %v2129
    %v2140 = vmax.f32 %v2112, %v2126
    %v2141 = vmax.f32 %v2113, %v2128
    %v2142 = vld [vmem:[%s6] sm:$0xff]
    %v2143 = vld [vmem:[%s6 + $0x8] sm:$0x3]
    %vm2144 = vcmask 187392
    %v2146 = vsel %vm2144, %v2142, 0
    %v2149 = vsel %vm2144, %v2143, 0
    %v2152 = vsel %vm1092, %v2140, 0
    %v2155 = vsel %vm1092, %v2141, 0
    %2157 = vmatprep.subr.mxu0 %v2137
    %2158 = vmatpush1.msra.mxu0 %v2136
    %2159 = vmatprep.subr.mxu0 %v2139
    %2160 = vmatpush1.msra.mxu0 %v2138
    %2161 = vmatprep.subr.mxu0 %v2155
    %2162 = vmatpush1.msra.mxu0 %v2152
    %2163 = vmatprep.subr.mxu0 0.0
    %2164 = vmatpush1.msra.mxu0 0.0
    %2165 = vmatprep.subr.mxu0 0.0
    %2166 = vmatpush1.msra.mxu0 0.0
    %2167 = vmatprep.subr.mxu0 0.0
    %2168 = vmatpush1.msra.mxu0 0.0
    %2169 = vmatprep.subr.mxu0 0.0
    %2170 = vmatpush1.msra.mxu0 0.0
    %2171 = vmatprep.subr.mxu0 0.0
    %2172 = vmatpush1.msra.mxu0 0.0
    %2173 = vmatprep.subr.mxu0 0.0
    %2174 = vmatpush1.msra.mxu0 0.0
    %2175 = vmatprep.subr.mxu0 0.0
    %2176 = vmatpush1.msra.mxu0 0.0
    %2177 = vmatprep.subr.mxu0 0.0
    %2178 = vmatpush1.msra.mxu0 0.0
    %2179 = vmatprep.subr.mxu0 0.0
    %2180 = vmatpush1.msra.mxu0 0.0
    %2181 = vmatprep.subr.mxu0 0.0
    %2182 = vmatpush1.msra.mxu0 0.0
    %2183 = vmatprep.subr.mxu0 0.0
    %2184 = vmatpush1.msra.mxu0 0.0
    %2185 = vmatprep.subr.mxu0 0.0
    %2186 = vmatpush1.msra.mxu0 0.0
    %2187 = vmatprep.subr.mxu0 0.0
    %2188 = vmatpush1.msra.mxu0 0.0
    %2189 = vmatprep.subr.mxu0 0.0
    %2190 = vmatpush1.msra.mxu0 0.0
    %2191 = vmatprep.subr.mxu0 0.0
    %2192 = vmatpush1.msra.mxu0 0.0
    %2193 = vmatprep.subr.mxu0 0.0
    %2194 = vmatpush1.msra.mxu0 0.0
    %2195 = vmatprep.subr.mxu0 0.0
    %2196 = vmatpush1.msra.mxu0 0.0
    %2197 = vmatprep.subr.mxu0 0.0
    %2198 = vmatpush1.msra.mxu0 0.0
    %2199 = vmatprep.subr.mxu0 0.0
    %2200 = vmatpush1.msra.mxu0 0.0
    %2201 = vmatprep.subr.mxu0 0.0
    %2202 = vmatpush1.msra.mxu0 0.0
    %2203 = vmatprep.subr.mxu0 0.0
    %2204 = vmatpush1.msra.mxu0 0.0
    %2205 = vmatprep.subr.mxu0 0.0
    %2206 = vmatpush1.msra.mxu0 0.0
    %2207 = vmatprep.subr.mxu0 0.0
    %2208 = vmatpush1.msra.mxu0 0.0
    %2209 = vmatprep.subr.mxu0 0.0
    %2210 = vmatpush1.msra.mxu0 0.0
    %2211 = vmatprep.subr.mxu0 0.0
    %2212 = vmatpush1.msra.mxu0 0.0
    %2213 = vmatprep.subr.mxu0 0.0
    %2214 = vmatpush1.msra.mxu0 0.0
    %2215 = vmatprep.subr.mxu0 0.0
    %2216 = vmatpush1.msra.mxu0 0.0
    %2217 = vmatprep.subr.mxu0 0.0
    %2218 = vmatpush1.msra.mxu0 0.0
    %2219 = vmatprep.subr.mxu0 0.0
    %2220 = vmatpush1.msra.mxu0 0.0
    %2221 = vmatprep.mubr.f32.mxu0 0.0
    %2222 = vmatmul.mubr.f32.gmra.mrb[0].mxu0 %v2146
    %v2223 = vpop.f32.mrb[0].mxu0
    %v2224 = vadd.f32 0.0, %v2223
    %v2225 = vpop.f32.mrb[0].mxu0
    %v2226 = vadd.f32 0.0, %v2225
    %2227 = vmatprep.mubr.f32.mxu0 0.0
    %2228 = vmatmul.mubr.f32.gmra.mrb[0].mxu0 %v2149
    %v2229 = vpop.f32.mrb[0].mxu0
    %v2230 = vadd.f32 0.0, %v2229
    %v2231 = vpop.f32.mrb[0].mxu0
    %v2232 = vadd.f32 0.0, %v2231
    %2233 = vdwg.mxu0
    %v2234 = vld [vmem:[%s7] sm:$0xff]
    %v2235 = vld [vmem:[%s7 + $0x8] sm:$0xff]
    %v2236 = vld [vmem:[%s7 + $0x10] sm:$0xff]
    %v2237 = vld [vmem:[%s7 + $0x18] sm:$0xff]
    %v2238 = vld [vmem:[%s7 + $0x20] sm:$0xff]
    %v2239 = vld [vmem:[%s7 + $0x28] sm:$0xff]
    %v2240 = vld [vmem:[%s7 + $0x30] sm:$0xff]
    %v2241 = vld [vmem:[%s7 + $0x38] sm:$0xff]
    %v2242 = vld [vmem:[%s7 + $0x40] sm:$0xff]
    %v2243 = vld [vmem:[%s7 + $0x48] sm:$0xff]
    %v2244 = vld [vmem:[%s7 + $0x50] sm:$0xff]
    %v2245 = vld [vmem:[%s7 + $0x58] sm:$0xff]
    %v2246 = vld [vmem:[%s7 + $0x60] sm:$0xff]
    %v2247 = vld [vmem:[%s7 + $0x68] sm:$0xff]
    %v2248 = vld [vmem:[%s7 + $0x70] sm:$0xff]
    %v2249 = vld [vmem:[%s7 + $0x78] sm:$0xff]
    %v2250 = vld [vmem:[%s7 + $0x80] sm:$0xff]
    %v2251 = vld [vmem:[%s7 + $0x88] sm:$0xff]
    %s2252 = scalar_lea.vmem %s7, 144
    %v2253 = vld [vmem:[%s2252] sm:$0xff]
    %v2254 = vld [vmem:[%s2252 + $0x8] sm:$0xff]
    %v2255 = vld [vmem:[%s2252 + $0x10] sm:$0xff]
    %v2256 = vld [vmem:[%s2252 + $0x18] sm:$0xff]
    %v2257 = vld [vmem:[%s2252 + $0x20] sm:$0xff]
    %v2258 = vld [vmem:[%s2252 + $0x28] sm:$0xff]
    %v2259 = vld [vmem:[%s2252 + $0x30] sm:$0xff]
    %v2260 = vld [vmem:[%s2252 + $0x38] sm:$0xff]
    %v2261 = vld [vmem:[%s2252 + $0x40] sm:$0xff]
    %v2262 = vld [vmem:[%s2252 + $0x48] sm:$0xff]
    %v2263 = vld [vmem:[%s2252 + $0x50] sm:$0xff]
    %v2264 = vld [vmem:[%s2252 + $0x58] sm:$0xff]
    %v2265 = vld [vmem:[%s2252 + $0x60] sm:$0xff]
    %v2266 = vld [vmem:[%s2252 + $0x68] sm:$0xff]
    %v2267 = vld [vmem:[%s2252 + $0x70] sm:$0xff]
    %v2268 = vld [vmem:[%s2252 + $0x78] sm:$0xff]
    %v2269 = vld [vmem:[%s2252 + $0x80] sm:$0xff]
    %v2270 = vld [vmem:[%s2252 + $0x88] sm:$0xff]
    %v2273 = vrot.slane %v2224, 2
    %v2274 = vrot.slane %v2226, 2
    %vm2276 = vcmask 130048
    %v2277 = vsel %vm2276, %v2274, 0
    %2279 = vmatprep.subr.mxu0 0.0
    %2280 = vmatpush1.msra.mxu0 %v2253
    %2281 = vmatprep.subr.mxu0 0.0
    %2282 = vmatpush1.msra.mxu0 %v2254
    %2283 = vmatprep.subr.mxu0 0.0
    %2284 = vmatpush1.msra.mxu0 %v2255
    %2285 = vmatprep.subr.mxu0 0.0
    %2286 = vmatpush1.msra.mxu0 %v2256
    %2287 = vmatprep.subr.mxu0 0.0
    %2288 = vmatpush1.msra.mxu0 %v2257
    %2289 = vmatprep.subr.mxu0 0.0
    %2290 = vmatpush1.msra.mxu0 %v2258
    %2291 = vmatprep.subr.mxu0 0.0
    %2292 = vmatpush1.msra.mxu0 %v2259
    %2293 = vmatprep.subr.mxu0 0.0
    %2294 = vmatpush1.msra.mxu0 %v2260
    %2295 = vmatprep.subr.mxu0 0.0
    %2296 = vmatpush1.msra.mxu0 %v2261
    %2297 = vmatprep.subr.mxu0 0.0
    %2298 = vmatpush1.msra.mxu0 %v2262
    %2299 = vmatprep.subr.mxu0 0.0
    %2300 = vmatpush1.msra.mxu0 %v2263
    %2301 = vmatprep.subr.mxu0 0.0
    %2302 = vmatpush1.msra.mxu0 %v2264
    %2303 = vmatprep.subr.mxu0 0.0
    %2304 = vmatpush1.msra.mxu0 %v2265
    %2305 = vmatprep.subr.mxu0 0.0
    %2306 = vmatpush1.msra.mxu0 %v2266
    %2307 = vmatprep.subr.mxu0 0.0
    %2308 = vmatpush1.msra.mxu0 %v2267
    %2309 = vmatprep.subr.mxu0 0.0
    %2310 = vmatpush1.msra.mxu0 %v2268
    %2311 = vmatprep.subr.mxu0 0.0
    %2312 = vmatpush1.msra.mxu0 %v2269
    %2313 = vmatprep.subr.mxu0 0.0
    %2314 = vmatpush1.msra.mxu0 %v2270
    %2315 = vmatprep.subr.mxu0 0.0
    %2316 = vmatpush1.msra.mxu0 0.0
    %2317 = vmatprep.subr.mxu0 0.0
    %2318 = vmatpush1.msra.mxu0 0.0
    %2319 = vmatprep.subr.mxu0 0.0
    %2320 = vmatpush1.msra.mxu0 0.0
    %2321 = vmatprep.subr.mxu0 0.0
    %2322 = vmatpush1.msra.mxu0 0.0
    %2323 = vmatprep.subr.mxu0 0.0
    %2324 = vmatpush1.msra.mxu0 0.0
    %2325 = vmatprep.subr.mxu0 0.0
    %2326 = vmatpush1.msra.mxu0 0.0
    %2327 = vmatprep.subr.mxu0 0.0
    %2328 = vmatpush1.msra.mxu0 0.0
    %2329 = vmatprep.subr.mxu0 0.0
    %2330 = vmatpush1.msra.mxu0 0.0
    %2331 = vmatprep.subr.mxu0 0.0
    %2332 = vmatpush1.msra.mxu0 0.0
    %2333 = vmatprep.subr.mxu0 0.0
    %2334 = vmatpush1.msra.mxu0 0.0
    %2335 = vmatprep.subr.mxu0 0.0
    %2336 = vmatpush1.msra.mxu0 0.0
    %2337 = vmatprep.subr.mxu0 0.0
    %2338 = vmatpush1.msra.mxu0 0.0
    %2339 = vmatprep.subr.mxu0 0.0
    %2340 = vmatpush1.msra.mxu0 0.0
    %2341 = vmatprep.subr.mxu0 0.0
    %2342 = vmatpush1.msra.mxu0 0.0
    %2343 = vmatprep.mubr.f32.mxu0 %v2277
    %2344 = vmatmul.mubr.f32.gmra.mrb[0].mxu0 %v2273
    %v2345 = vpop.f32.mrb[0].mxu0
    %v2346 = vadd.f32 0.0, %v2345
    %v2347 = vpop.f32.mrb[0].mxu0
    %2348 = vdwg.mxu0
    %v2349 = vsel %vm2276, %v2226, 0
    %2351 = vmatprep.subr.mxu0 0.0
    %2352 = vmatpush1.msra.mxu0 %v2234
    %2353 = vmatprep.subr.mxu0 0.0
    %2354 = vmatpush1.msra.mxu0 %v2235
    %2355 = vmatprep.subr.mxu0 0.0
    %2356 = vmatpush1.msra.mxu0 %v2236
    %2357 = vmatprep.subr.mxu0 0.0
    %2358 = vmatpush1.msra.mxu0 %v2237
    %2359 = vmatprep.subr.mxu0 0.0
    %2360 = vmatpush1.msra.mxu0 %v2238
    %2361 = vmatprep.subr.mxu0 0.0
    %2362 = vmatpush1.msra.mxu0 %v2239
    %2363 = vmatprep.subr.mxu0 0.0
    %2364 = vmatpush1.msra.mxu0 %v2240
    %2365 = vmatprep.subr.mxu0 0.0
    %2366 = vmatpush1.msra.mxu0 %v2241
    %2367 = vmatprep.subr.mxu0 0.0
    %2368 = vmatpush1.msra.mxu0 %v2242
    %2369 = vmatprep.subr.mxu0 0.0
    %2370 = vmatpush1.msra.mxu0 %v2243
    %2371 = vmatprep.subr.mxu0 0.0
    %2372 = vmatpush1.msra.mxu0 %v2244
    %2373 = vmatprep.subr.mxu0 0.0
    %2374 = vmatpush1.msra.mxu0 %v2245
    %2375 = vmatprep.subr.mxu0 0.0
    %2376 = vmatpush1.msra.mxu0 %v2246
    %2377 = vmatprep.subr.mxu0 0.0
    %2378 = vmatpush1.msra.mxu0 %v2247
    %2379 = vmatprep.subr.mxu0 0.0
    %2380 = vmatpush1.msra.mxu0 %v2248
    %2381 = vmatprep.subr.mxu0 0.0
    %2382 = vmatpush1.msra.mxu0 %v2249
    %2383 = vmatprep.subr.mxu0 0.0
    %2384 = vmatpush1.msra.mxu0 %v2250
    %2385 = vmatprep.subr.mxu0 0.0
    %2386 = vmatpush1.msra.mxu0 %v2251
    %2387 = vmatprep.subr.mxu0 0.0
    %2388 = vmatpush1.msra.mxu0 0.0
    %2389 = vmatprep.subr.mxu0 0.0
    %2390 = vmatpush1.msra.mxu0 0.0
    %2391 = vmatprep.subr.mxu0 0.0
    %2392 = vmatpush1.msra.mxu0 0.0
    %2393 = vmatprep.subr.mxu0 0.0
    %2394 = vmatpush1.msra.mxu0 0.0
    %2395 = vmatprep.subr.mxu0 0.0
    %2396 = vmatpush1.msra.mxu0 0.0
    %2397 = vmatprep.subr.mxu0 0.0
    %2398 = vmatpush1.msra.mxu0 0.0
    %2399 = vmatprep.subr.mxu0 0.0
    %2400 = vmatpush1.msra.mxu0 0.0
    %2401 = vmatprep.subr.mxu0 0.0
    %2402 = vmatpush1.msra.mxu0 0.0
    %2403 = vmatprep.subr.mxu0 0.0
    %2404 = vmatpush1.msra.mxu0 0.0
    %2405 = vmatprep.subr.mxu0 0.0
    %2406 = vmatpush1.msra.mxu0 0.0
    %2407 = vmatprep.subr.mxu0 0.0
    %2408 = vmatpush1.msra.mxu0 0.0
    %2409 = vmatprep.subr.mxu0 0.0
    %2410 = vmatpush1.msra.mxu0 0.0
    %2411 = vmatprep.subr.mxu0 0.0
    %2412 = vmatpush1.msra.mxu0 0.0
    %2413 = vmatprep.subr.mxu0 0.0
    %2414 = vmatpush1.msra.mxu0 0.0
    %2415 = vmatprep.mubr.f32.mxu0 %v2349
    %2416 = vmatmul.mubr.f32.gmra.mrb[0].mxu0 %v2224
    %v2417 = vpop.f32.mrb[0].mxu0
    %v2418 = vadd.f32 %v2346, %v2417
    %v2419 = vpop.f32.mrb[0].mxu0
    %2420 = vdwg.mxu0
    %s2421 = scalar_lea.vmem %s7, 288
    %v2422 = vld [vmem:[%s2421] sm:$0xff]
    %v2423 = vld [vmem:[%s2421 + $0x8] sm:$0xff]
    %v2424 = vld [vmem:[%s2421 + $0x10] sm:$0xff]
    %v2425 = vld [vmem:[%s2421 + $0x18] sm:$0xff]
    %v2426 = vld [vmem:[%s2421 + $0x20] sm:$0xff]
    %v2427 = vld [vmem:[%s2421 + $0x28] sm:$0xff]
    %v2428 = vld [vmem:[%s2421 + $0x30] sm:$0xff]
    %v2429 = vld [vmem:[%s2421 + $0x38] sm:$0xff]
    %v2430 = vld [vmem:[%s2421 + $0x40] sm:$0xff]
    %v2431 = vld [vmem:[%s2421 + $0x48] sm:$0xff]
    %v2432 = vld [vmem:[%s2421 + $0x50] sm:$0xff]
    %v2433 = vld [vmem:[%s2421 + $0x58] sm:$0xff]
    %v2434 = vld [vmem:[%s2421 + $0x60] sm:$0xff]
    %v2435 = vld [vmem:[%s2421 + $0x68] sm:$0xff]
    %v2436 = vld [vmem:[%s2421 + $0x70] sm:$0xff]
    %v2437 = vld [vmem:[%s2421 + $0x78] sm:$0xff]
    %v2438 = vld [vmem:[%s2421 + $0x80] sm:$0xff]
    %v2439 = vld [vmem:[%s2421 + $0x88] sm:$0xff]
    %v2440 = vrot.slane %v2224, 4
    %v2441 = vrot.slane %v2226, 4
    %v2443 = vsel %vm2276, %v2441, 0
    %2445 = vmatprep.subr.mxu0 0.0
    %2446 = vmatpush1.msra.mxu0 %v2422
    %2447 = vmatprep.subr.mxu0 0.0
    %2448 = vmatpush1.msra.mxu0 %v2423
    %2449 = vmatprep.subr.mxu0 0.0
    %2450 = vmatpush1.msra.mxu0 %v2424
    %2451 = vmatprep.subr.mxu0 0.0
    %2452 = vmatpush1.msra.mxu0 %v2425
    %2453 = vmatprep.subr.mxu0 0.0
    %2454 = vmatpush1.msra.mxu0 %v2426
    %2455 = vmatprep.subr.mxu0 0.0
    %2456 = vmatpush1.msra.mxu0 %v2427
    %2457 = vmatprep.subr.mxu0 0.0
    %2458 = vmatpush1.msra.mxu0 %v2428
    %2459 = vmatprep.subr.mxu0 0.0
    %2460 = vmatpush1.msra.mxu0 %v2429
    %2461 = vmatprep.subr.mxu0 0.0
    %2462 = vmatpush1.msra.mxu0 %v2430
    %2463 = vmatprep.subr.mxu0 0.0
    %2464 = vmatpush1.msra.mxu0 %v2431
    %2465 = vmatprep.subr.mxu0 0.0
    %2466 = vmatpush1.msra.mxu0 %v2432
    %2467 = vmatprep.subr.mxu0 0.0
    %2468 = vmatpush1.msra.mxu0 %v2433
    %2469 = vmatprep.subr.mxu0 0.0
    %2470 = vmatpush1.msra.mxu0 %v2434
    %2471 = vmatprep.subr.mxu0 0.0
    %2472 = vmatpush1.msra.mxu0 %v2435
    %2473 = vmatprep.subr.mxu0 0.0
    %2474 = vmatpush1.msra.mxu0 %v2436
    %2475 = vmatprep.subr.mxu0 0.0
    %2476 = vmatpush1.msra.mxu0 %v2437
    %2477 = vmatprep.subr.mxu0 0.0
    %2478 = vmatpush1.msra.mxu0 %v2438
    %2479 = vmatprep.subr.mxu0 0.0
    %2480 = vmatpush1.msra.mxu0 %v2439
    %2481 = vmatprep.subr.mxu0 0.0
    %2482 = vmatpush1.msra.mxu0 0.0
    %2483 = vmatprep.subr.mxu0 0.0
    %2484 = vmatpush1.msra.mxu0 0.0
    %2485 = vmatprep.subr.mxu0 0.0
    %2486 = vmatpush1.msra.mxu0 0.0
    %2487 = vmatprep.subr.mxu0 0.0
    %2488 = vmatpush1.msra.mxu0 0.0
    %2489 = vmatprep.subr.mxu0 0.0
    %2490 = vmatpush1.msra.mxu0 0.0
    %2491 = vmatprep.subr.mxu0 0.0
    %2492 = vmatpush1.msra.mxu0 0.0
    %2493 = vmatprep.subr.mxu0 0.0
    %2494 = vmatpush1.msra.mxu0 0.0
    %2495 = vmatprep.subr.mxu0 0.0
    %2496 = vmatpush1.msra.mxu0 0.0
    %2497 = vmatprep.subr.mxu0 0.0
    %2498 = vmatpush1.msra.mxu0 0.0
    %2499 = vmatprep.subr.mxu0 0.0
    %2500 = vmatpush1.msra.mxu0 0.0
    %2501 = vmatprep.subr.mxu0 0.0
    %2502 = vmatpush1.msra.mxu0 0.0
    %2503 = vmatprep.subr.mxu0 0.0
    %2504 = vmatpush1.msra.mxu0 0.0
    %2505 = vmatprep.subr.mxu0 0.0
    %2506 = vmatpush1.msra.mxu0 0.0
    %2507 = vmatprep.subr.mxu0 0.0
    %2508 = vmatpush1.msra.mxu0 0.0
    %2509 = vmatprep.mubr.f32.mxu0 %v2443
    %2510 = vmatmul.mubr.f32.gmra.mrb[0].mxu0 %v2440
    %v2511 = vpop.f32.mrb[0].mxu0
    %v2512 = vadd.f32 0.0, %v2511
    %v2513 = vpop.f32.mrb[0].mxu0
    %2514 = vdwg.mxu0
    %v2515 = vadd.f32 %v2418, %v2512
    %s2516 = scalar_lea.vmem %s7, 432
    %v2517 = vld [vmem:[%s2516] sm:$0xff]
    %v2518 = vld [vmem:[%s2516 + $0x8] sm:$0xff]
    %v2519 = vld [vmem:[%s2516 + $0x10] sm:$0xff]
    %v2520 = vld [vmem:[%s2516 + $0x18] sm:$0xff]
    %v2521 = vld [vmem:[%s2516 + $0x20] sm:$0xff]
    %v2522 = vld [vmem:[%s2516 + $0x28] sm:$0xff]
    %v2523 = vld [vmem:[%s2516 + $0x30] sm:$0xff]
    %v2524 = vld [vmem:[%s2516 + $0x38] sm:$0xff]
    %v2525 = vld [vmem:[%s2516 + $0x40] sm:$0xff]
    %v2526 = vld [vmem:[%s2516 + $0x48] sm:$0xff]
    %v2527 = vld [vmem:[%s2516 + $0x50] sm:$0xff]
    %v2528 = vld [vmem:[%s2516 + $0x58] sm:$0xff]
    %v2529 = vld [vmem:[%s2516 + $0x60] sm:$0xff]
    %v2530 = vld [vmem:[%s2516 + $0x68] sm:$0xff]
    %v2531 = vld [vmem:[%s2516 + $0x70] sm:$0xff]
    %v2532 = vld [vmem:[%s2516 + $0x78] sm:$0xff]
    %v2533 = vld [vmem:[%s2516 + $0x80] sm:$0xff]
    %v2534 = vld [vmem:[%s2516 + $0x88] sm:$0xff]
    %v2535 = vrot.slane %v2224, 6
    %v2536 = vrot.slane %v2226, 6
    %v2538 = vsel %vm2276, %v2536, 0
    %2540 = vmatprep.subr.mxu0 0.0
    %2541 = vmatpush1.msra.mxu0 %v2517
    %2542 = vmatprep.subr.mxu0 0.0
    %2543 = vmatpush1.msra.mxu0 %v2518
    %2544 = vmatprep.subr.mxu0 0.0
    %2545 = vmatpush1.msra.mxu0 %v2519
    %2546 = vmatprep.subr.mxu0 0.0
    %2547 = vmatpush1.msra.mxu0 %v2520
    %2548 = vmatprep.subr.mxu0 0.0
    %2549 = vmatpush1.msra.mxu0 %v2521
    %2550 = vmatprep.subr.mxu0 0.0
    %2551 = vmatpush1.msra.mxu0 %v2522
    %2552 = vmatprep.subr.mxu0 0.0
    %2553 = vmatpush1.msra.mxu0 %v2523
    %2554 = vmatprep.subr.mxu0 0.0
    %2555 = vmatpush1.msra.mxu0 %v2524
    %2556 = vmatprep.subr.mxu0 0.0
    %2557 = vmatpush1.msra.mxu0 %v2525
    %2558 = vmatprep.subr.mxu0 0.0
    %2559 = vmatpush1.msra.mxu0 %v2526
    %2560 = vmatprep.subr.mxu0 0.0
    %2561 = vmatpush1.msra.mxu0 %v2527
    %2562 = vmatprep.subr.mxu0 0.0
    %2563 = vmatpush1.msra.mxu0 %v2528
    %2564 = vmatprep.subr.mxu0 0.0
    %2565 = vmatpush1.msra.mxu0 %v2529
    %2566 = vmatprep.subr.mxu0 0.0
    %2567 = vmatpush1.msra.mxu0 %v2530
    %2568 = vmatprep.subr.mxu0 0.0
    %2569 = vmatpush1.msra.mxu0 %v2531
    %2570 = vmatprep.subr.mxu0 0.0
    %2571 = vmatpush1.msra.mxu0 %v2532
    %2572 = vmatprep.subr.mxu0 0.0
    %2573 = vmatpush1.msra.mxu0 %v2533
    %2574 = vmatprep.subr.mxu0 0.0
    %2575 = vmatpush1.msra.mxu0 %v2534
    %2576 = vmatprep.subr.mxu0 0.0
    %2577 = vmatpush1.msra.mxu0 0.0
    %2578 = vmatprep.subr.mxu0 0.0
    %2579 = vmatpush1.msra.mxu0 0.0
    %2580 = vmatprep.subr.mxu0 0.0
    %2581 = vmatpush1.msra.mxu0 0.0
    %2582 = vmatprep.subr.mxu0 0.0
    %2583 = vmatpush1.msra.mxu0 0.0
    %2584 = vmatprep.subr.mxu0 0.0
    %2585 = vmatpush1.msra.mxu0 0.0
    %2586 = vmatprep.subr.mxu0 0.0
    %2587 = vmatpush1.msra.mxu0 0.0
    %2588 = vmatprep.subr.mxu0 0.0
    %2589 = vmatpush1.msra.mxu0 0.0
    %2590 = vmatprep.subr.mxu0 0.0
    %2591 = vmatpush1.msra.mxu0 0.0
    %2592 = vmatprep.subr.mxu0 0.0
    %2593 = vmatpush1.msra.mxu0 0.0
    %2594 = vmatprep.subr.mxu0 0.0
    %2595 = vmatpush1.msra.mxu0 0.0
    %2596 = vmatprep.subr.mxu0 0.0
    %2597 = vmatpush1.msra.mxu0 0.0
    %2598 = vmatprep.subr.mxu0 0.0
    %2599 = vmatpush1.msra.mxu0 0.0
    %2600 = vmatprep.subr.mxu0 0.0
    %2601 = vmatpush1.msra.mxu0 0.0
    %2602 = vmatprep.subr.mxu0 0.0
    %2603 = vmatpush1.msra.mxu0 0.0
    %2604 = vmatprep.mubr.f32.mxu0 %v2538
    %2605 = vmatmul.mubr.f32.gmra.mrb[0].mxu0 %v2535
    %v2606 = vpop.f32.mrb[0].mxu0
    %v2607 = vadd.f32 0.0, %v2606
    %v2608 = vpop.f32.mrb[0].mxu0
    %2609 = vdwg.mxu0
    %v2610 = vadd.f32 %v2515, %v2607
    %s2611 = scalar_lea.vmem %s7, 576
    %v2612 = vld [vmem:[%s2611] sm:$0xff]
    %v2613 = vld [vmem:[%s2611 + $0x8] sm:$0xff]
    %v2614 = vld [vmem:[%s2611 + $0x10] sm:$0xff]
    %v2615 = vld [vmem:[%s2611 + $0x18] sm:$0xff]
    %v2616 = vld [vmem:[%s2611 + $0x20] sm:$0xff]
    %v2617 = vld [vmem:[%s2611 + $0x28] sm:$0xff]
    %v2618 = vld [vmem:[%s2611 + $0x30] sm:$0xff]
    %v2619 = vld [vmem:[%s2611 + $0x38] sm:$0xff]
    %v2620 = vld [vmem:[%s2611 + $0x40] sm:$0xff]
    %v2621 = vld [vmem:[%s2611 + $0x48] sm:$0xff]
    %v2622 = vld [vmem:[%s2611 + $0x50] sm:$0xff]
    %v2623 = vld [vmem:[%s2611 + $0x58] sm:$0xff]
    %v2624 = vld [vmem:[%s2611 + $0x60] sm:$0xff]
    %v2625 = vld [vmem:[%s2611 + $0x68] sm:$0xff]
    %v2626 = vld [vmem:[%s2611 + $0x70] sm:$0xff]
    %v2627 = vld [vmem:[%s2611 + $0x78] sm:$0xff]
    %v2628 = vld [vmem:[%s2611 + $0x80] sm:$0xff]
    %v2629 = vld [vmem:[%s2611 + $0x88] sm:$0xff]
    %v2631 = vsel %vm2276, %v2232, 0
    %2633 = vmatprep.subr.mxu0 0.0
    %2634 = vmatpush1.msra.mxu0 %v2612
    %2635 = vmatprep.subr.mxu0 0.0
    %2636 = vmatpush1.msra.mxu0 %v2613
    %2637 = vmatprep.subr.mxu0 0.0
    %2638 = vmatpush1.msra.mxu0 %v2614
    %2639 = vmatprep.subr.mxu0 0.0
    %2640 = vmatpush1.msra.mxu0 %v2615
    %2641 = vmatprep.subr.mxu0 0.0
    %2642 = vmatpush1.msra.mxu0 %v2616
    %2643 = vmatprep.subr.mxu0 0.0
    %2644 = vmatpush1.msra.mxu0 %v2617
    %2645 = vmatprep.subr.mxu0 0.0
    %2646 = vmatpush1.msra.mxu0 %v2618
    %2647 = vmatprep.subr.mxu0 0.0
    %2648 = vmatpush1.msra.mxu0 %v2619
    %2649 = vmatprep.subr.mxu0 0.0
    %2650 = vmatpush1.msra.mxu0 %v2620
    %2651 = vmatprep.subr.mxu0 0.0
    %2652 = vmatpush1.msra.mxu0 %v2621
    %2653 = vmatprep.subr.mxu0 0.0
    %2654 = vmatpush1.msra.mxu0 %v2622
    %2655 = vmatprep.subr.mxu0 0.0
    %2656 = vmatpush1.msra.mxu0 %v2623
    %2657 = vmatprep.subr.mxu0 0.0
    %2658 = vmatpush1.msra.mxu0 %v2624
    %2659 = vmatprep.subr.mxu0 0.0
    %2660 = vmatpush1.msra.mxu0 %v2625
    %2661 = vmatprep.subr.mxu0 0.0
    %2662 = vmatpush1.msra.mxu0 %v2626
    %2663 = vmatprep.subr.mxu0 0.0
    %2664 = vmatpush1.msra.mxu0 %v2627
    %2665 = vmatprep.subr.mxu0 0.0
    %2666 = vmatpush1.msra.mxu0 %v2628
    %2667 = vmatprep.subr.mxu0 0.0
    %2668 = vmatpush1.msra.mxu0 %v2629
    %2669 = vmatprep.subr.mxu0 0.0
    %2670 = vmatpush1.msra.mxu0 0.0
    %2671 = vmatprep.subr.mxu0 0.0
    %2672 = vmatpush1.msra.mxu0 0.0
    %2673 = vmatprep.subr.mxu0 0.0
    %2674 = vmatpush1.msra.mxu0 0.0
    %2675 = vmatprep.subr.mxu0 0.0
    %2676 = vmatpush1.msra.mxu0 0.0
    %2677 = vmatprep.subr.mxu0 0.0
    %2678 = vmatpush1.msra.mxu0 0.0
    %2679 = vmatprep.subr.mxu0 0.0
    %2680 = vmatpush1.msra.mxu0 0.0
    %2681 = vmatprep.subr.mxu0 0.0
    %2682 = vmatpush1.msra.mxu0 0.0
    %2683 = vmatprep.subr.mxu0 0.0
    %2684 = vmatpush1.msra.mxu0 0.0
    %2685 = vmatprep.subr.mxu0 0.0
    %2686 = vmatpush1.msra.mxu0 0.0
    %2687 = vmatprep.subr.mxu0 0.0
    %2688 = vmatpush1.msra.mxu0 0.0
    %2689 = vmatprep.subr.mxu0 0.0
    %2690 = vmatpush1.msra.mxu0 0.0
    %2691 = vmatprep.subr.mxu0 0.0
    %2692 = vmatpush1.msra.mxu0 0.0
    %2693 = vmatprep.subr.mxu0 0.0
    %2694 = vmatpush1.msra.mxu0 0.0
    %2695 = vmatprep.subr.mxu0 0.0
    %2696 = vmatpush1.msra.mxu0 0.0
    %2697 = vmatprep.mubr.f32.mxu0 %v2631
    %2698 = vmatmul.mubr.f32.gmra.mrb[0].mxu0 %v2230
    %v2699 = vpop.f32.mrb[0].mxu0
    %v2700 = vadd.f32 0.0, %v2699
    %v2701 = vpop.f32.mrb[0].mxu0
    %2702 = vdwg.mxu0
    %v2703 = vadd.f32 %v2610, %v2700
    %v2704 = vld [vmem:[%s8] sm:$0x1]
    %v2706 = vlaneseq
    %v2707 = vshrl.u32 %v2706, 7
    %v2708 = vsub.s32 0, %v2707
    %v2709 = vrot.slane %v2704, %v2708
    %v2711 = vadd.f32 %v2703, %v2709
    %v2712 = vmax.f32 %v2711, 0.0
    %v2713 = vld [vmem:[%s9] sm:$0xff]
    %v2714 = vld [vmem:[%s9 + $0x8] sm:$0xff]
    %v2715 = vld [vmem:[%s9 + $0x10] sm:$0xff]
    %v2716 = vld [vmem:[%s9 + $0x18] sm:$0xff]
    %v2717 = vld [vmem:[%s9 + $0x20] sm:$0xff]
    %v2718 = vld [vmem:[%s9 + $0x28] sm:$0xff]
    %v2719 = vld [vmem:[%s9 + $0x30] sm:$0xff]
    %v2720 = vld [vmem:[%s9 + $0x38] sm:$0xff]
    %v2721 = vld [vmem:[%s9 + $0x40] sm:$0xff]
    %v2722 = vld [vmem:[%s9 + $0x48] sm:$0xff]
    %v2723 = vld [vmem:[%s9 + $0x50] sm:$0xff]
    %v2724 = vld [vmem:[%s9 + $0x58] sm:$0xff]
    %v2725 = vld [vmem:[%s9 + $0x60] sm:$0xff]
    %v2726 = vld [vmem:[%s9 + $0x68] sm:$0xff]
    %v2727 = vld [vmem:[%s9 + $0x70] sm:$0xff]
    %v2728 = vld [vmem:[%s10] sm:$0x1]
    %v2730 = vlaneseq
    %v2731 = vshrl.u32 %v2730, 7
    %v2732 = vsub.s32 0, %v2731
    %v2733 = vrot.slane %v2728, %v2732
    %vm2735 = vcmask 982016
    %v2737 = vsel %vm2735, %v2712, 0
    %2739 = vmatprep.subr.mxu0 0.0
    %2740 = vmatpush1.msra.mxu0 %v2713
    %2741 = vmatprep.subr.mxu0 0.0
    %2742 = vmatpush1.msra.mxu0 %v2714
    %2743 = vmatprep.subr.mxu0 0.0
    %2744 = vmatpush1.msra.mxu0 %v2715
    %2745 = vmatprep.subr.mxu0 0.0
    %2746 = vmatpush1.msra.mxu0 %v2716
    %2747 = vmatprep.subr.mxu0 0.0
    %2748 = vmatpush1.msra.mxu0 %v2717
    %2749 = vmatprep.subr.mxu0 0.0
    %2750 = vmatpush1.msra.mxu0 %v2718
    %2751 = vmatprep.subr.mxu0 0.0
    %2752 = vmatpush1.msra.mxu0 %v2719
    %2753 = vmatprep.subr.mxu0 0.0
    %2754 = vmatpush1.msra.mxu0 %v2720
    %2755 = vmatprep.subr.mxu0 0.0
    %2756 = vmatpush1.msra.mxu0 %v2721
    %2757 = vmatprep.subr.mxu0 0.0
    %2758 = vmatpush1.msra.mxu0 %v2722
    %2759 = vmatprep.subr.mxu0 0.0
    %2760 = vmatpush1.msra.mxu0 %v2723
    %2761 = vmatprep.subr.mxu0 0.0
    %2762 = vmatpush1.msra.mxu0 %v2724
    %2763 = vmatprep.subr.mxu0 0.0
    %2764 = vmatpush1.msra.mxu0 %v2725
    %2765 = vmatprep.subr.mxu0 0.0
    %2766 = vmatpush1.msra.mxu0 %v2726
    %2767 = vmatprep.subr.mxu0 0.0
    %2768 = vmatpush1.msra.mxu0 %v2727
    %2769 = vmatprep.subr.mxu0 0.0
    %2770 = vmatpush1.msra.mxu0 0.0
    %2771 = vmatprep.subr.mxu0 0.0
    %2772 = vmatpush1.msra.mxu0 0.0
    %2773 = vmatprep.subr.mxu0 0.0
    %2774 = vmatpush1.msra.mxu0 0.0
    %2775 = vmatprep.subr.mxu0 0.0
    %2776 = vmatpush1.msra.mxu0 0.0
    %2777 = vmatprep.subr.mxu0 0.0
    %2778 = vmatpush1.msra.mxu0 0.0
    %2779 = vmatprep.subr.mxu0 0.0
    %2780 = vmatpush1.msra.mxu0 0.0
    %2781 = vmatprep.subr.mxu0 0.0
    %2782 = vmatpush1.msra.mxu0 0.0
    %2783 = vmatprep.subr.mxu0 0.0
    %2784 = vmatpush1.msra.mxu0 0.0
    %2785 = vmatprep.subr.mxu0 0.0
    %2786 = vmatpush1.msra.mxu0 0.0
    %2787 = vmatprep.subr.mxu0 0.0
    %2788 = vmatpush1.msra.mxu0 0.0
    %2789 = vmatprep.subr.mxu0 0.0
    %2790 = vmatpush1.msra.mxu0 0.0
    %2791 = vmatprep.subr.mxu0 0.0
    %2792 = vmatpush1.msra.mxu0 0.0
    %2793 = vmatprep.subr.mxu0 0.0
    %2794 = vmatpush1.msra.mxu0 0.0
    %2795 = vmatprep.subr.mxu0 0.0
    %2796 = vmatpush1.msra.mxu0 0.0
    %2797 = vmatprep.subr.mxu0 0.0
    %2798 = vmatpush1.msra.mxu0 0.0
    %2799 = vmatprep.subr.mxu0 0.0
    %2800 = vmatpush1.msra.mxu0 0.0
    %2801 = vmatprep.subr.mxu0 0.0
    %2802 = vmatpush1.msra.mxu0 0.0
    %2803 = vmatprep.mubr.f32.mxu0 0.0
    %2804 = vmatmul.mubr.f32.gmra.mrb[0].mxu0 %v2737
    %v2805 = vpop.f32.mrb[0].mxu0
    %v2806 = vadd.f32 %v2733, %v2805
    %v2807 = vpop.f32.mrb[0].mxu0
    %2808 = vdwg.mxu0
    %v2809 = vmax.f32 %v2806, 0.0
    %v2810 = vld [vmem:[%s11] sm:$0xff]
    %v2811 = vld [vmem:[%s11 + $0x8] sm:$0xff]
    %v2812 = vld [vmem:[%s11 + $0x10] sm:$0xff]
    %v2813 = vld [vmem:[%s11 + $0x18] sm:$0xff]
    %v2814 = vld [vmem:[%s11 + $0x20] sm:$0xff]
    %v2815 = vld [vmem:[%s11 + $0x28] sm:$0xff]
    %v2816 = vld [vmem:[%s11 + $0x30] sm:$0xff]
    %v2817 = vld [vmem:[%s11 + $0x38] sm:$0xff]
    %v2818 = vld [vmem:[%s11 + $0x40] sm:$0xff]
    %v2819 = vld [vmem:[%s11 + $0x48] sm:$0xff]
    %v2820 = vld [vmem:[%s11 + $0x50] sm:$0xf]
    %v2821 = vld [vmem:[%s12] sm:$0x1]
    %v2823 = vlaneseq
    %v2824 = vshrl.u32 %v2823, 7
    %v2825 = vsub.s32 0, %v2824
    %v2826 = vrot.slane %v2821, %v2825
    %vm2828 = vcmask 687104
    %v2830 = vsel %vm2828, %v2809, 0
    %v2833 = vsel %vm1937, %v2820, 0
    %2835 = vmatprep.subr.mxu0 0.0
    %2836 = vmatpush1.msra.mxu0 %v2810
    %2837 = vmatprep.subr.mxu0 0.0
    %2838 = vmatpush1.msra.mxu0 %v2811
    %2839 = vmatprep.subr.mxu0 0.0
    %2840 = vmatpush1.msra.mxu0 %v2812
    %2841 = vmatprep.subr.mxu0 0.0
    %2842 = vmatpush1.msra.mxu0 %v2813
    %2843 = vmatprep.subr.mxu0 0.0
    %2844 = vmatpush1.msra.mxu0 %v2814
    %2845 = vmatprep.subr.mxu0 0.0
    %2846 = vmatpush1.msra.mxu0 %v2815
    %2847 = vmatprep.subr.mxu0 0.0
    %2848 = vmatpush1.msra.mxu0 %v2816
    %2849 = vmatprep.subr.mxu0 0.0
    %2850 = vmatpush1.msra.mxu0 %v2817
    %2851 = vmatprep.subr.mxu0 0.0
    %2852 = vmatpush1.msra.mxu0 %v2818
    %2853 = vmatprep.subr.mxu0 0.0
    %2854 = vmatpush1.msra.mxu0 %v2819
    %2855 = vmatprep.subr.mxu0 0.0
    %2856 = vmatpush1.msra.mxu0 %v2833
    %2857 = vmatprep.subr.mxu0 0.0
    %2858 = vmatpush1.msra.mxu0 0.0
    %2859 = vmatprep.subr.mxu0 0.0
    %2860 = vmatpush1.msra.mxu0 0.0
    %2861 = vmatprep.subr.mxu0 0.0
    %2862 = vmatpush1.msra.mxu0 0.0
    %2863 = vmatprep.subr.mxu0 0.0
    %2864 = vmatpush1.msra.mxu0 0.0
    %2865 = vmatprep.subr.mxu0 0.0
    %2866 = vmatpush1.msra.mxu0 0.0
    %2867 = vmatprep.subr.mxu0 0.0
    %2868 = vmatpush1.msra.mxu0 0.0
    %2869 = vmatprep.subr.mxu0 0.0
    %2870 = vmatpush1.msra.mxu0 0.0
    %2871 = vmatprep.subr.mxu0 0.0
    %2872 = vmatpush1.msra.mxu0 0.0
    %2873 = vmatprep.subr.mxu0 0.0
    %2874 = vmatpush1.msra.mxu0 0.0
    %2875 = vmatprep.subr.mxu0 0.0
    %2876 = vmatpush1.msra.mxu0 0.0
    %2877 = vmatprep.subr.mxu0 0.0
    %2878 = vmatpush1.msra.mxu0 0.0
    %2879 = vmatprep.subr.mxu0 0.0
    %2880 = vmatpush1.msra.mxu0 0.0
    %2881 = vmatprep.subr.mxu0 0.0
    %2882 = vmatpush1.msra.mxu0 0.0
    %2883 = vmatprep.subr.mxu0 0.0
    %2884 = vmatpush1.msra.mxu0 0.0
    %2885 = vmatprep.subr.mxu0 0.0
    %2886 = vmatpush1.msra.mxu0 0.0
    %2887 = vmatprep.subr.mxu0 0.0
    %2888 = vmatpush1.msra.mxu0 0.0
    %2889 = vmatprep.subr.mxu0 0.0
    %2890 = vmatpush1.msra.mxu0 0.0
    %2891 = vmatprep.subr.mxu0 0.0
    %2892 = vmatpush1.msra.mxu0 0.0
    %2893 = vmatprep.subr.mxu0 0.0
    %2894 = vmatpush1.msra.mxu0 0.0
    %2895 = vmatprep.subr.mxu0 0.0
    %2896 = vmatpush1.msra.mxu0 0.0
    %2897 = vmatprep.subr.mxu0 0.0
    %2898 = vmatpush1.msra.mxu0 0.0
    %2899 = vmatprep.mubr.f32.mxu0 0.0
    %2900 = vmatmul.mubr.f32.gmra.mrb[0].mxu0 %v2830
    %v2901 = vpop.f32.mrb[0].mxu0
    %v2902 = vadd.f32 %v2826, %v2901
    %v2903 = vpop.f32.mrb[0].mxu0
    %2904 = vdwg.mxu0
    %vm2905 = vcmask 74752
    %2906 = vst.msk [vmem:[#allocation2] sm:$0x3] %vm2905, %v2902
    // Predicated region
    $region54: #{fused_forward.1} parent=1 // pred_check
      _
    $region55: #{fused_forward.1} parent=1 // pred_check_branch
      %2908 = sbr.rel (0) target = $region57
    $region56: #{fused_forward.1} parent=1 // pred_region
      %s2910 = ssub.s32 32, 32
      %2911 = vsyncadd [#allocation3], %s2910
      %s2913 = sshll.u32 [#allocation2], 4
      %s2914 = int_to_ptr.vmem [resolvable:$true] %s2913
      %2916 = dma.vmem_to_hbm [thread:$0]  %s2914, 32, %s13, [#allocation3]
    $region57: #{fused_forward.1} parent=1 // pred_fallthru
      _
    // Predicated region
    $region58: #{fused_forward.1} parent=1 // pred_check
      _
    $region59: #{fused_forward.1} parent=1 // pred_check_branch
      %2918 = sbr.rel (0) target = $region61
    $region60: #{fused_forward.1} parent=1 // pred_region
      %2919 = dma.done [#allocation3], 32
    $region61: #{fused_forward.1} parent=1 // pred_fallthru
      _
    %2920 = vsyncpa [#allocation3], 1

</llo_original>
